<compile_context>
chip_gen: v7x
topology: tpu7x:2x2x1
jax: 0.10.0
libtpu: 0.0.40
codegen_flags: <defaults>
</compile_context>

<pallas_src>
import math

import jax
import jax.numpy as jnp
import numpy as np
from jax.experimental import pallas as pl
from jax.experimental.pallas import tpu as pltpu


# ---------------------------------------------------------------------------
# DCT filter construction (deterministic, plain numpy — this is __init__ glue)
# ---------------------------------------------------------------------------
def _build_filter(pos, freq, max_pos):
    result = math.cos(math.pi * freq * (pos + 0.5) / max_pos) / math.sqrt(max_pos)
    if freq == 0:
        return result
    return result * math.sqrt(2)


def get_dct_filter(tile_size_x, tile_size_y, mapper_x, mapper_y, channel):
    assert len(mapper_x) == len(mapper_y)
    assert channel % len(mapper_x) == 0
    dct_filter = np.zeros((channel, tile_size_x, tile_size_y), dtype=np.float32)
    c_part = channel // len(mapper_x)
    for i, (u_x, v_y) in enumerate(zip(mapper_x, mapper_y)):
        for t_x in range(tile_size_x):
            for t_y in range(tile_size_y):
                dct_filter[i * c_part:(i + 1) * c_part, t_x, t_y] = (
                    _build_filter(t_x, u_x, tile_size_x)
                    * _build_filter(t_y, v_y, tile_size_y)
                )
    return jnp.asarray(dct_filter)


# ---------------------------------------------------------------------------
# Kernels
# ---------------------------------------------------------------------------
def _dct_matmul_kernel(x_ref, w_ref, o_ref):
    # x_ref: (TN, TC*HW) lane-dense; w_ref: (TC*HW, TC) block-diagonal DCT
    # weights; o_ref: (TN, TC).  One MXU matmul, f32 accumulation.  HIGHEST
    # keeps f32 inputs at full precision (no bf16 truncation pass).
    o_ref[...] = jnp.dot(
        x_ref[...], w_ref[...],
        precision=jax.lax.Precision.HIGHEST,
        preferred_element_type=jnp.float32,
    ).astype(o_ref.dtype)


def _dct_elementwise_kernel(x_ref, w_ref, o_ref):
    # Fallback: x_ref (TN, TC, HW), w_ref (TC, HW), o_ref (TN, TC).
    # Upcast to f32 so bf16 inputs accumulate in f32.
    x = x_ref[...].astype(jnp.float32)
    w = w_ref[...].astype(jnp.float32)
    o_ref[...] = jnp.sum(x * w, axis=-1).astype(o_ref.dtype)


# ---------------------------------------------------------------------------
# Tiling / budgeting helpers (generation-aware)
# ---------------------------------------------------------------------------
def _round_up(v, m):
    return ((v + m - 1) // m) * m


def _round_down(v, m):
    return (v // m) * m


def _vmem_capacity_bytes():
    try:
        info = pltpu.get_tpu_info()
        cap = getattr(info, "vmem_capacity_bytes", None)
        if cap:
            return int(cap)
    except Exception:
        pass
    return 64 * 1024 * 1024  # conservative default (v7x per-TensorCore VMEM)


def _vmem_limit(needed_bytes, vmem_cap):
    base = (vmem_cap * 3) // 4                   # ~96 MiB v5e/v6e, ~48 MiB v7x
    limit = max(base, needed_bytes + (4 << 20))
    return int(min(limit, vmem_cap - (2 << 20)))


def _choose_channel_tile(C):
    # Output lane dim: must be a multiple of 128 or the full channel extent.
    # Cap at 128 so the MXU-path arithmetic intensity stays far below the MXU
    # roofline on every generation (kernel stays purely HBM-bound).
    if C > 128 and C % 128 == 0:
        return 128
    return C


def _choose_tn(N, row_bytes, x_budget_bytes, n_c_tiles):
    """Largest sample tile whose double-buffered x slab fits the VMEM budget."""
    tn_fit = max(1, x_budget_bytes // (2 * max(row_bytes, 1)))
    if tn_fit >= N or N <= 8:
        tn = N  # full-extent block along N (always legal for the out spec)
        # TODO(synk): if even an 8-row block overflows the budget (huge
        # unpooled HW), split the contraction dim over a trailing "arbitrary"
        # grid axis with an f32 VMEM accumulator instead of over-sizing TN.
    else:
        tn = max(8, _round_down(int(tn_fit), 8))   # sublane-full blocks, < N
    # Megacore (v7x has 2 TensorCores): avoid collapsing the whole grid to a
    # single program when a legal split along N exists.
    if n_c_tiles == 1 and tn >= N and N >= 16:
        tn = _round_up((N + 1) // 2, 8)
    return tn


# ---------------------------------------------------------------------------
# Wrapper
# ---------------------------------------------------------------------------
def _dct_pool_matmul(x, weight, tc, out_dtype, x_budget, vmem_cap):
    N, C, H, W = x.shape
    HW = H * W
    n_ct = C // tc
    lane_w = tc * HW
    x_item = jnp.dtype(x.dtype).itemsize
    out_item = jnp.dtype(out_dtype).itemsize

    # Contiguous reshape (free): each (TN, TC*HW) block row is a contiguous
    # multi-KB run in HBM -> efficient DMA, 100% lane utilization.
    x_flat = x.reshape(N, C * HW)

    # Per-channel-tile block-diagonal DCT weight: (n_ct, TC*HW, TC) with
    # entry [t, ci*HW + hw, cj] = weight[t*TC + ci, hw] if ci == cj else 0, so
    # x_block @ w_block reproduces the per-channel multiply + spatial-sum
    # exactly.  Cast to x.dtype so bf16 inputs use bf16 MXU contraction with
    # f32 accumulation (halves weight DMA; tiny rounding delta vs f32*f32).
    w_cd = weight.reshape(n_ct, tc, HW).astype(x.dtype)
    eye = jnp.eye(tc, dtype=x.dtype)
    w_bd = (w_cd[:, :, :, None] * eye[:, None, :]).reshape(n_ct, lane_w, tc)

    row_bytes = _round_up(lane_w, 128) * x_item
    tn = _choose_tn(N, row_bytes, x_budget, n_ct)
    # C tiles outer, N tiles INNER: the weight block index only depends on the
    # outer axis, so the resident weight tile is DMA'd once per channel row.
    grid = (n_ct, pl.cdiv(N, tn))

    needed = (2 * tn * row_bytes
              + 2 * _round_up(lane_w, 8) * _round_up(tc, 128) * x_item
              + 2 * _round_up(tn, 8) * _round_up(tc, 128) * out_item)
    cost = pl.CostEstimate(
        flops=2 * N * C * HW * tc,
        transcendentals=0,
        bytes_accessed=N * C * HW * x_item + C * HW * tc * x_item + N * C * out_item,
    )

    return pl.pallas_call(
        _dct_matmul_kernel,
        out_shape=jax.ShapeDtypeStruct((N, C), out_dtype),
        grid_spec=pltpu.PrefetchScalarGridSpec(
            num_scalar_prefetch=0,
            grid=grid,
            in_specs=[
                pl.BlockSpec((tn, lane_w), lambda c, n: (n, c)),
                # Constant along the inner N axis -> fetched once per c row.
                pl.BlockSpec((None, lane_w, tc), lambda c, n: (c, 0, 0)),
            ],
            out_specs=pl.BlockSpec((tn, tc), lambda c, n: (n, c)),
        ),
        compiler_params=pltpu.CompilerParams(
            dimension_semantics=("parallel", "parallel"),
            vmem_limit_bytes=_vmem_limit(needed, vmem_cap),
        ),
        cost_estimate=cost,
    )(x_flat, w_bd)


def _dct_pool_elementwise(x, weight, tc, out_dtype, x_budget, vmem_cap):
    # Fallback for shapes where the block-diagonal weight tile would not fit
    # comfortably in VMEM (e.g. very large C not divisible by 128).
    N, C, H, W = x.shape
    HW = H * W
    n_ct = pl.cdiv(C, tc)
    x_item = jnp.dtype(x.dtype).itemsize
    out_item = jnp.dtype(out_dtype).itemsize

    x_flat = x.reshape(N, C, HW)
    w_flat = weight.reshape(C, HW)

    row_bytes = tc * _round_up(HW, 128) * x_item
    tn = _choose_tn(N, row_bytes, x_budget, n_ct)
    grid = (n_ct, pl.cdiv(N, tn))  # N innermost -> weight tile stays resident

    needed = (2 * tn * row_bytes
              + 2 * _round_up(tc, 8) * _round_up(HW, 128) * x_item
              + 2 * _round_up(tn, 8) * _round_up(tc, 128) * out_item)
    cost = pl.CostEstimate(
        flops=2 * N * C * HW,
        transcendentals=0,
        bytes_accessed=N * C * HW * x_item + C * HW * x_item + N * C * out_item,
    )

    return pl.pallas_call(
        _dct_elementwise_kernel,
        out_shape=jax.ShapeDtypeStruct((N, C), out_dtype),
        grid_spec=pltpu.PrefetchScalarGridSpec(
            num_scalar_prefetch=0,
            grid=grid,
            in_specs=[
                pl.BlockSpec((tn, tc, HW), lambda c, n: (n, c, 0)),
                pl.BlockSpec((tc, HW), lambda c, n: (c, 0)),
            ],
            out_specs=pl.BlockSpec((tn, tc), lambda c, n: (n, c)),
        ),
        compiler_params=pltpu.CompilerParams(
            dimension_semantics=("parallel", "parallel"),
            vmem_limit_bytes=_vmem_limit(needed, vmem_cap),
        ),
        cost_estimate=cost,
    )(x_flat, w_flat)


def multi_spectral_dct_layer(x, weight):
    """x: (N, C, H, W); weight: (C, H, W) -> (N, C)."""
    assert x.ndim == 4, f"x must be 4 dimensions, got {x.ndim}"
    N, C, H, W = x.shape
    assert weight.shape == (C, H, W)
    HW = H * W

    out_dtype = jnp.result_type(x.dtype, weight.dtype)
    x_item = jnp.dtype(x.dtype).itemsize

    vmem_cap = _vmem_capacity_bytes()
    # Double-buffered x-slab budget: ~51 MiB on 128-MiB parts (v5e/v6e),
    # ~25 MiB on v7x (64 MiB per TensorCore).
    x_budget = min((vmem_cap * 2) // 5, 56 * 1024 * 1024)

    tc = _choose_channel_tile(C)
    # Resident block-diagonal weight tile size for the MXU path.
    w_tile_bytes = _round_up(tc * HW, 8) * _round_up(tc, 128) * x_item
    use_matmul = w_tile_bytes <= min(vmem_cap // 6, 12 * 1024 * 1024)

    if use_matmul:
        return _dct_pool_matmul(x, weight, tc, out_dtype, x_budget, vmem_cap)
    return _dct_pool_elementwise(x, weight, tc, out_dtype, x_budget, vmem_cap)


if __name__ == "__main__":
    # Small shapes consistent with the module: N=2, C=4, H=W=16, 2 frequencies.
    N, C, H, W = 2, 4, 16, 16
    mapper_x = [0, 1]
    mapper_y = [0, 2]

    weight = get_dct_filter(H, W, mapper_x, mapper_y, C)

    key = jax.random.PRNGKey(0)
    x = jax.random.normal(key, (N, C, H, W), dtype=jnp.float32)

    out = multi_spectral_dct_layer(x, weight)
    out = jax.block_until_ready(out)

    # Reference check in plain JAX.
    ref = jnp.sum(x * weight[None], axis=(2, 3))
    assert out.shape == (N, C)
    np.testing.assert_allclose(np.asarray(out), np.asarray(ref), rtol=1e-4, atol=1e-4)

    print("KERNEL_OK")
</pallas_src>

<mosaic_0001>
module attributes {stable_mosaic.version = 11 : i64} {
  func.func @_dct_matmul_kernel(%arg0: i32, %arg1: i32, %arg2: memref<2x1024xf32, #tpu.memory_space<vmem>>, %arg3: memref<1x1024x4xf32, #tpu.memory_space<vmem>>, %arg4: memref<2x4xf32, #tpu.memory_space<vmem>>) attributes {dimension_semantics = [#tpu.dimension_semantics<parallel>, #tpu.dimension_semantics<parallel>], iteration_bounds = array<i64: 1, 1>, scalar_prefetch = 0 : i64, scratch_operands = 0 : i64, tpu.core_type = #tpu.core_type<tc>, window_params = [{transform_indices = @transform_0, window_bounds = array<i64: 2, 1024>}, {transform_indices = @transform_1, window_bounds = array<i64: 1, 1024, 4>}, {transform_indices = @transform_2, window_bounds = array<i64: 2, 4>}]} {
    %c0 = arith.constant 0 : index
    %c0_0 = arith.constant 0 : index
    %0 = vector.load %arg2[%c0, %c0_0] : memref<2x1024xf32, #tpu.memory_space<vmem>>, vector<2x1024xf32>
    %c0_1 = arith.constant 0 : index
    %c0_2 = arith.constant 0 : index
    %c0_3 = arith.constant 0 : index
    %1 = vector.load %arg3[%c0_1, %c0_2, %c0_3] : memref<1x1024x4xf32, #tpu.memory_space<vmem>>, vector<1x1024x4xf32>
    %2 = vector.shape_cast %1 : vector<1x1024x4xf32> to vector<1024x4xf32>
    %cst = arith.constant dense<0.000000e+00> : vector<2x4xf32>
    %3 = tpu.matmul %0, %2, %cst {dimension_numbers = #tpu.dot_dimension_numbers<[1], [0], [0], [1], [0, 0, 1, 1], [], []>, precision = #tpu.contract_precision<fp32>} : vector<2x1024xf32>, vector<1024x4xf32>, vector<2x4xf32> -> vector<2x4xf32>
    %c0_4 = arith.constant 0 : index
    %c0_5 = arith.constant 0 : index
    %4 = vector.load %arg4[%c0_4, %c0_5] : memref<2x4xf32, #tpu.memory_space<vmem>>, vector<2x4xf32>
    tpu.vector_store %arg4[%c0_4, %c0_5], %3 {strides = array<i32>} : memref<2x4xf32, #tpu.memory_space<vmem>>, vector<2x4xf32>,
    return
  }
  func.func @transform_0(%arg0: i32, %arg1: i32) -> (i32, i32) {
    %c0_i32 = arith.constant 0 : i32
    return %arg1, %arg0 : i32, i32
  }
  func.func @transform_1(%arg0: i32, %arg1: i32) -> (i32, i32, i32) {
    %c0_i32 = arith.constant 0 : i32
    %c0_i32_0 = arith.constant 0 : i32
    %c0_i32_1 = arith.constant 0 : i32
    return %arg0, %c0_i32, %c0_i32_0 : i32, i32, i32
  }
  func.func @transform_2(%arg0: i32, %arg1: i32) -> (i32, i32) {
    %c0_i32 = arith.constant 0 : i32
    return %arg1, %arg0 : i32, i32
  }
}

</mosaic_0001>

<llo_original>
// kernel: tpu_custom_call.1
$region0: #{tpu_custom_call.1}
  #allocation0 [shape = 'u32[]', space=smem, size = 0x4, offset = 0x4, fixed_abs, tag = 'smem constant byte address 0x4 - core index']
  #allocation1 [shape = 'u32[144,128]{1,0:T(1,128)}', space=vmem, size = 0x12000, scoped, tag = 'internal scratch']
  %s0 = inlined_call_operand.vmem [shape: f32[2,1024], index: 0, kind: input, shape index: {}]
  %s1 = inlined_call_operand.vmem [shape: f32[1,1024,4], index: 1, kind: input, shape index: {}]
  %s2 = inlined_call_operand.hbm [shape: f32[2,4], index: 2, kind: output, shape index: {}]
  %s3 = sld [smem:[#allocation0]]
  $region18: #{tpu_custom_call.1} parent=0
    _
  %s5 = ssub.s32 1, %s3
  %s6 = scalar_select 0, %s5, %s3
  $region1: #{tpu_custom_call.1} parent=0
    #allocation2 [shape = 'u8[1024]{0}', space=vmem, size = 0x400, scoped, tag = 'output window, operand 0, single buffered']
    #allocation3 [shape = 's32[1]{0}', space=sflag, size = 0x4, scoped, tag = 'scoped memory for tpu_custom_call.1']
    %7 = vsyncpa [#allocation3], 0
    // Predicated region
    $region2: #{tpu_custom_call.1} parent=1 // pred_check
      _
    $region3: #{tpu_custom_call.1} parent=1 // pred_check_branch
      %9 = sbr.rel (0) target = $region5
    $region4: #{tpu_custom_call.1} parent=1 // pred_region
      _
    $region5: #{tpu_custom_call.1} parent=1 // pred_fallthru
      _
    // Predicated region
    $region6: #{tpu_custom_call.1} parent=1 // pred_check
      _
    $region7: #{tpu_custom_call.1} parent=1 // pred_check_branch
      %11 = sbr.rel (0) target = $region9
    $region8: #{tpu_custom_call.1} parent=1 // pred_region
      _
    $region9: #{tpu_custom_call.1} parent=1 // pred_fallthru
      _
    %v12 = vld [vmem:[%s0] sm:$0xff]
    %v13 = vld [vmem:[%s0 + $0x8] sm:$0xff]
    %v14 = vld [vmem:[%s1] sm:$0xff]
    %v15 = vld [vmem:[%s1 + $0x8] sm:$0xff]
    %v16 = vld [vmem:[%s1 + $0x10] sm:$0xff]
    %v17 = vld [vmem:[%s1 + $0x18] sm:$0xff]
    %v18 = vld [vmem:[%s1 + $0x20] sm:$0xff]
    %v19 = vld [vmem:[%s1 + $0x28] sm:$0xff]
    %v20 = vld [vmem:[%s1 + $0x30] sm:$0xff]
    %v21 = vld [vmem:[%s1 + $0x38] sm:$0xff]
    %v22 = vld [vmem:[%s1 + $0x40] sm:$0xff]
    %v23 = vld [vmem:[%s1 + $0x48] sm:$0xff]
    %v24 = vld [vmem:[%s1 + $0x50] sm:$0xff]
    %v25 = vld [vmem:[%s1 + $0x58] sm:$0xff]
    %v26 = vld [vmem:[%s1 + $0x60] sm:$0xff]
    %v27 = vld [vmem:[%s1 + $0x68] sm:$0xff]
    %v28 = vld [vmem:[%s1 + $0x70] sm:$0xff]
    %v29 = vld [vmem:[%s1 + $0x78] sm:$0xff]
    %v30 = vld [vmem:[%s1 + $0x80] sm:$0xff]
    %v31 = vld [vmem:[%s1 + $0x88] sm:$0xff]
    %v32 = vld [vmem:[%s1 + $0x90] sm:$0xff]
    %v33 = vld [vmem:[%s1 + $0x98] sm:$0xff]
    %v34 = vld [vmem:[%s1 + $0xa0] sm:$0xff]
    %v35 = vld [vmem:[%s1 + $0xa8] sm:$0xff]
    %v36 = vld [vmem:[%s1 + $0xb0] sm:$0xff]
    %v37 = vld [vmem:[%s1 + $0xb8] sm:$0xff]
    %v38 = vld [vmem:[%s1 + $0xc0] sm:$0xff]
    %v39 = vld [vmem:[%s1 + $0xc8] sm:$0xff]
    %v40 = vld [vmem:[%s1 + $0xd0] sm:$0xff]
    %v41 = vld [vmem:[%s1 + $0xd8] sm:$0xff]
    %v42 = vld [vmem:[%s1 + $0xe0] sm:$0xff]
    %v43 = vld [vmem:[%s1 + $0xe8] sm:$0xff]
    %v44 = vld [vmem:[%s1 + $0xf0] sm:$0xff]
    %v45 = vld [vmem:[%s1 + $0xf8] sm:$0xff]
    %v46 = vld [vmem:[%s1 + $0x100] sm:$0xff]
    %v47 = vld [vmem:[%s1 + $0x108] sm:$0xff]
    %v48 = vld [vmem:[%s1 + $0x110] sm:$0xff]
    %v49 = vld [vmem:[%s1 + $0x118] sm:$0xff]
    %v50 = vld [vmem:[%s1 + $0x120] sm:$0xff]
    %v51 = vld [vmem:[%s1 + $0x128] sm:$0xff]
    %v52 = vld [vmem:[%s1 + $0x130] sm:$0xff]
    %v53 = vld [vmem:[%s1 + $0x138] sm:$0xff]
    %v54 = vld [vmem:[%s1 + $0x140] sm:$0xff]
    %v55 = vld [vmem:[%s1 + $0x148] sm:$0xff]
    %v56 = vld [vmem:[%s1 + $0x150] sm:$0xff]
    %v57 = vld [vmem:[%s1 + $0x158] sm:$0xff]
    %v58 = vld [vmem:[%s1 + $0x160] sm:$0xff]
    %v59 = vld [vmem:[%s1 + $0x168] sm:$0xff]
    %v60 = vld [vmem:[%s1 + $0x170] sm:$0xff]
    %v61 = vld [vmem:[%s1 + $0x178] sm:$0xff]
    %v62 = vld [vmem:[%s1 + $0x180] sm:$0xff]
    %v63 = vld [vmem:[%s1 + $0x188] sm:$0xff]
    %v64 = vld [vmem:[%s1 + $0x190] sm:$0xff]
    %v65 = vld [vmem:[%s1 + $0x198] sm:$0xff]
    %v66 = vld [vmem:[%s1 + $0x1a0] sm:$0xff]
    %v67 = vld [vmem:[%s1 + $0x1a8] sm:$0xff]
    %v68 = vld [vmem:[%s1 + $0x1b0] sm:$0xff]
    %v69 = vld [vmem:[%s1 + $0x1b8] sm:$0xff]
    %v70 = vld [vmem:[%s1 + $0x1c0] sm:$0xff]
    %v71 = vld [vmem:[%s1 + $0x1c8] sm:$0xff]
    %v72 = vld [vmem:[%s1 + $0x1d0] sm:$0xff]
    %v73 = vld [vmem:[%s1 + $0x1d8] sm:$0xff]
    %v74 = vld [vmem:[%s1 + $0x1e0] sm:$0xff]
    %v75 = vld [vmem:[%s1 + $0x1e8] sm:$0xff]
    %v76 = vld [vmem:[%s1 + $0x1f0] sm:$0xff]
    %v77 = vld [vmem:[%s1 + $0x1f8] sm:$0xff]
    %v78 = vld [vmem:[%s1 + $0x200] sm:$0xff]
    %v79 = vld [vmem:[%s1 + $0x208] sm:$0xff]
    %v80 = vld [vmem:[%s1 + $0x210] sm:$0xff]
    %v81 = vld [vmem:[%s1 + $0x218] sm:$0xff]
    %v82 = vld [vmem:[%s1 + $0x220] sm:$0xff]
    %v83 = vld [vmem:[%s1 + $0x228] sm:$0xff]
    %v84 = vld [vmem:[%s1 + $0x230] sm:$0xff]
    %v85 = vld [vmem:[%s1 + $0x238] sm:$0xff]
    %v86 = vld [vmem:[%s1 + $0x240] sm:$0xff]
    %v87 = vld [vmem:[%s1 + $0x248] sm:$0xff]
    %v88 = vld [vmem:[%s1 + $0x250] sm:$0xff]
    %v89 = vld [vmem:[%s1 + $0x258] sm:$0xff]
    %v90 = vld [vmem:[%s1 + $0x260] sm:$0xff]
    %v91 = vld [vmem:[%s1 + $0x268] sm:$0xff]
    %v92 = vld [vmem:[%s1 + $0x270] sm:$0xff]
    %v93 = vld [vmem:[%s1 + $0x278] sm:$0xff]
    %v94 = vld [vmem:[%s1 + $0x280] sm:$0xff]
    %v95 = vld [vmem:[%s1 + $0x288] sm:$0xff]
    %v96 = vld [vmem:[%s1 + $0x290] sm:$0xff]
    %v97 = vld [vmem:[%s1 + $0x298] sm:$0xff]
    %v98 = vld [vmem:[%s1 + $0x2a0] sm:$0xff]
    %v99 = vld [vmem:[%s1 + $0x2a8] sm:$0xff]
    %v100 = vld [vmem:[%s1 + $0x2b0] sm:$0xff]
    %v101 = vld [vmem:[%s1 + $0x2b8] sm:$0xff]
    %v102 = vld [vmem:[%s1 + $0x2c0] sm:$0xff]
    %v103 = vld [vmem:[%s1 + $0x2c8] sm:$0xff]
    %v104 = vld [vmem:[%s1 + $0x2d0] sm:$0xff]
    %v105 = vld [vmem:[%s1 + $0x2d8] sm:$0xff]
    %v106 = vld [vmem:[%s1 + $0x2e0] sm:$0xff]
    %v107 = vld [vmem:[%s1 + $0x2e8] sm:$0xff]
    %v108 = vld [vmem:[%s1 + $0x2f0] sm:$0xff]
    %v109 = vld [vmem:[%s1 + $0x2f8] sm:$0xff]
    %v110 = vld [vmem:[%s1 + $0x300] sm:$0xff]
    %v111 = vld [vmem:[%s1 + $0x308] sm:$0xff]
    %v112 = vld [vmem:[%s1 + $0x310] sm:$0xff]
    %v113 = vld [vmem:[%s1 + $0x318] sm:$0xff]
    %v114 = vld [vmem:[%s1 + $0x320] sm:$0xff]
    %v115 = vld [vmem:[%s1 + $0x328] sm:$0xff]
    %v116 = vld [vmem:[%s1 + $0x330] sm:$0xff]
    %v117 = vld [vmem:[%s1 + $0x338] sm:$0xff]
    %v118 = vld [vmem:[%s1 + $0x340] sm:$0xff]
    %v119 = vld [vmem:[%s1 + $0x348] sm:$0xff]
    %v120 = vld [vmem:[%s1 + $0x350] sm:$0xff]
    %v121 = vld [vmem:[%s1 + $0x358] sm:$0xff]
    %v122 = vld [vmem:[%s1 + $0x360] sm:$0xff]
    %v123 = vld [vmem:[%s1 + $0x368] sm:$0xff]
    %v124 = vld [vmem:[%s1 + $0x370] sm:$0xff]
    %v125 = vld [vmem:[%s1 + $0x378] sm:$0xff]
    %v126 = vld [vmem:[%s1 + $0x380] sm:$0xff]
    %v127 = vld [vmem:[%s1 + $0x388] sm:$0xff]
    %v128 = vld [vmem:[%s1 + $0x390] sm:$0xff]
    %v129 = vld [vmem:[%s1 + $0x398] sm:$0xff]
    %v130 = vld [vmem:[%s1 + $0x3a0] sm:$0xff]
    %v131 = vld [vmem:[%s1 + $0x3a8] sm:$0xff]
    %v132 = vld [vmem:[%s1 + $0x3b0] sm:$0xff]
    %v133 = vld [vmem:[%s1 + $0x3b8] sm:$0xff]
    %v134 = vld [vmem:[%s1 + $0x3c0] sm:$0xff]
    %v135 = vld [vmem:[%s1 + $0x3c8] sm:$0xff]
    %v136 = vld [vmem:[%s1 + $0x3d0] sm:$0xff]
    %v137 = vld [vmem:[%s1 + $0x3d8] sm:$0xff]
    %v138 = vld [vmem:[%s1 + $0x3e0] sm:$0xff]
    %v139 = vld [vmem:[%s1 + $0x3e8] sm:$0xff]
    %v140 = vld [vmem:[%s1 + $0x3f0] sm:$0xff]
    %v141 = vld [vmem:[%s1 + $0x3f8] sm:$0xff]
    %v144 = vcombine.high %v12, %v12
    %v146 = vunpack.c.l.s4 1983009808
    %v147 = vunpack.c.0.s8 %v146
    %v148 = vlaneseq
    %v149 = vshrl.u32 %v148, 7
    %v150 = vsub.s32 %v147, %v149
    %v151 = vrot.slane %v12, %v150
    %v153 = vunpack.c.l.s4 1983009808
    %v154 = vunpack.c.0.s8 %v153
    %v155 = vlaneseq
    %v156 = vshrl.u32 %v155, 7
    %v157 = vsub.s32 %v154, %v156
    %v158 = vrot.slane %v144, %v157
    %v159 = vcombine.high %v151, %v151
    %v160 = vcombine.high %v158, %v158
    %v161 = vcombine.high %v13, %v13
    %v163 = vunpack.c.l.s4 1983009808
    %v164 = vunpack.c.0.s8 %v163
    %v165 = vlaneseq
    %v166 = vshrl.u32 %v165, 7
    %v167 = vsub.s32 %v164, %v166
    %v168 = vrot.slane %v13, %v167
    %v170 = vunpack.c.l.s4 1983009808
    %v171 = vunpack.c.0.s8 %v170
    %v172 = vlaneseq
    %v173 = vshrl.u32 %v172, 7
    %v174 = vsub.s32 %v171, %v173
    %v175 = vrot.slane %v161, %v174
    %v176 = vcombine.high %v168, %v168
    %v177 = vcombine.high %v175, %v175
    %186 = vmatprep.subr.mxu0 0.0
    %v187 = vand.u32 %v14, 4294901760
    %188 = vmatpush1.msra.mxu0 %v187
    %189 = vmatprep.subr.mxu0 0.0
    %v190 = vand.u32 %v15, 4294901760
    %191 = vmatpush1.msra.mxu0 %v190
    %192 = vmatprep.subr.mxu0 0.0
    %v193 = vand.u32 %v16, 4294901760
    %194 = vmatpush1.msra.mxu0 %v193
    %195 = vmatprep.subr.mxu0 0.0
    %v196 = vand.u32 %v17, 4294901760
    %197 = vmatpush1.msra.mxu0 %v196
    %198 = vmatprep.subr.mxu0 0.0
    %v199 = vand.u32 %v18, 4294901760
    %200 = vmatpush1.msra.mxu0 %v199
    %201 = vmatprep.subr.mxu0 0.0
    %v202 = vand.u32 %v19, 4294901760
    %203 = vmatpush1.msra.mxu0 %v202
    %204 = vmatprep.subr.mxu0 0.0
    %v205 = vand.u32 %v20, 4294901760
    %206 = vmatpush1.msra.mxu0 %v205
    %207 = vmatprep.subr.mxu0 0.0
    %v208 = vand.u32 %v21, 4294901760
    %209 = vmatpush1.msra.mxu0 %v208
    %210 = vmatprep.subr.mxu0 0.0
    %v211 = vand.u32 %v22, 4294901760
    %212 = vmatpush1.msra.mxu0 %v211
    %213 = vmatprep.subr.mxu0 0.0
    %v214 = vand.u32 %v23, 4294901760
    %215 = vmatpush1.msra.mxu0 %v214
    %216 = vmatprep.subr.mxu0 0.0
    %v217 = vand.u32 %v24, 4294901760
    %218 = vmatpush1.msra.mxu0 %v217
    %219 = vmatprep.subr.mxu0 0.0
    %v220 = vand.u32 %v25, 4294901760
    %221 = vmatpush1.msra.mxu0 %v220
    %222 = vmatprep.subr.mxu0 0.0
    %v223 = vand.u32 %v26, 4294901760
    %224 = vmatpush1.msra.mxu0 %v223
    %225 = vmatprep.subr.mxu0 0.0
    %v226 = vand.u32 %v27, 4294901760
    %227 = vmatpush1.msra.mxu0 %v226
    %228 = vmatprep.subr.mxu0 0.0
    %v229 = vand.u32 %v28, 4294901760
    %230 = vmatpush1.msra.mxu0 %v229
    %231 = vmatprep.subr.mxu0 0.0
    %v232 = vand.u32 %v29, 4294901760
    %233 = vmatpush1.msra.mxu0 %v232
    %234 = vmatprep.subr.mxu0 0.0
    %v235 = vand.u32 %v30, 4294901760
    %236 = vmatpush1.msra.mxu0 %v235
    %237 = vmatprep.subr.mxu0 0.0
    %v238 = vand.u32 %v31, 4294901760
    %239 = vmatpush1.msra.mxu0 %v238
    %240 = vmatprep.subr.mxu0 0.0
    %v241 = vand.u32 %v32, 4294901760
    %242 = vmatpush1.msra.mxu0 %v241
    %243 = vmatprep.subr.mxu0 0.0
    %v244 = vand.u32 %v33, 4294901760
    %245 = vmatpush1.msra.mxu0 %v244
    %246 = vmatprep.subr.mxu0 0.0
    %v247 = vand.u32 %v34, 4294901760
    %248 = vmatpush1.msra.mxu0 %v247
    %249 = vmatprep.subr.mxu0 0.0
    %v250 = vand.u32 %v35, 4294901760
    %251 = vmatpush1.msra.mxu0 %v250
    %252 = vmatprep.subr.mxu0 0.0
    %v253 = vand.u32 %v36, 4294901760
    %254 = vmatpush1.msra.mxu0 %v253
    %255 = vmatprep.subr.mxu0 0.0
    %v256 = vand.u32 %v37, 4294901760
    %257 = vmatpush1.msra.mxu0 %v256
    %258 = vmatprep.subr.mxu0 0.0
    %v259 = vand.u32 %v38, 4294901760
    %260 = vmatpush1.msra.mxu0 %v259
    %261 = vmatprep.subr.mxu0 0.0
    %v262 = vand.u32 %v39, 4294901760
    %263 = vmatpush1.msra.mxu0 %v262
    %264 = vmatprep.subr.mxu0 0.0
    %v265 = vand.u32 %v40, 4294901760
    %266 = vmatpush1.msra.mxu0 %v265
    %267 = vmatprep.subr.mxu0 0.0
    %v268 = vand.u32 %v41, 4294901760
    %269 = vmatpush1.msra.mxu0 %v268
    %270 = vmatprep.subr.mxu0 0.0
    %v271 = vand.u32 %v42, 4294901760
    %272 = vmatpush1.msra.mxu0 %v271
    %273 = vmatprep.subr.mxu0 0.0
    %v274 = vand.u32 %v43, 4294901760
    %275 = vmatpush1.msra.mxu0 %v274
    %276 = vmatprep.subr.mxu0 0.0
    %v277 = vand.u32 %v44, 4294901760
    %278 = vmatpush1.msra.mxu0 %v277
    %279 = vmatprep.subr.mxu0 0.0
    %v280 = vand.u32 %v45, 4294901760
    %281 = vmatpush1.msra.mxu0 %v280
    %v282 = vand.u32 %v159, 4294901760
    %v283 = vsub.f32 %v159, %v282
    %v284 = vand.u32 %v283, 4294901760
    %v285 = vsub.f32 %v283, %v284
    %v286 = vand.u32 %v285, 4294901760
    %287 = vmatprep.mubr.f32.mxu0 %v286
    %v288 = vand.u32 %v151, 4294901760
    %v289 = vsub.f32 %v151, %v288
    %v290 = vand.u32 %v289, 4294901760
    %v291 = vsub.f32 %v289, %v290
    %v292 = vand.u32 %v291, 4294901760
    %293 = vmatmul.mubr.f32.gmra.mrb[0].mxu0 %v292
    %v294 = vpop.f32.mrb[0].mxu0
    %v295 = vadd.f32 0.0, %v294
    %v296 = vpop.f32.mrb[0].mxu0
    %297 = vdwg.mxu0
    %298 = vmatprep.subr.mxu0 0.0
    %v299 = vand.u32 %v14, 4294901760
    %v300 = vsub.f32 %v14, %v299
    %v301 = vand.u32 %v300, 4294901760
    %v302 = vsub.f32 %v300, %v301
    %v303 = vand.u32 %v302, 4294901760
    %304 = vmatpush1.msra.mxu0 %v303
    %305 = vmatprep.subr.mxu0 0.0
    %v306 = vand.u32 %v15, 4294901760
    %v307 = vsub.f32 %v15, %v306
    %v308 = vand.u32 %v307, 4294901760
    %v309 = vsub.f32 %v307, %v308
    %v310 = vand.u32 %v309, 4294901760
    %311 = vmatpush1.msra.mxu0 %v310
    %312 = vmatprep.subr.mxu0 0.0
    %v313 = vand.u32 %v16, 4294901760
    %v314 = vsub.f32 %v16, %v313
    %v315 = vand.u32 %v314, 4294901760
    %v316 = vsub.f32 %v314, %v315
    %v317 = vand.u32 %v316, 4294901760
    %318 = vmatpush1.msra.mxu0 %v317
    %319 = vmatprep.subr.mxu0 0.0
    %v320 = vand.u32 %v17, 4294901760
    %v321 = vsub.f32 %v17, %v320
    %v322 = vand.u32 %v321, 4294901760
    %v323 = vsub.f32 %v321, %v322
    %v324 = vand.u32 %v323, 4294901760
    %325 = vmatpush1.msra.mxu0 %v324
    %326 = vmatprep.subr.mxu0 0.0
    %v327 = vand.u32 %v18, 4294901760
    %v328 = vsub.f32 %v18, %v327
    %v329 = vand.u32 %v328, 4294901760
    %v330 = vsub.f32 %v328, %v329
    %v331 = vand.u32 %v330, 4294901760
    %332 = vmatpush1.msra.mxu0 %v331
    %333 = vmatprep.subr.mxu0 0.0
    %v334 = vand.u32 %v19, 4294901760
    %v335 = vsub.f32 %v19, %v334
    %v336 = vand.u32 %v335, 4294901760
    %v337 = vsub.f32 %v335, %v336
    %v338 = vand.u32 %v337, 4294901760
    %339 = vmatpush1.msra.mxu0 %v338
    %340 = vmatprep.subr.mxu0 0.0
    %v341 = vand.u32 %v20, 4294901760
    %v342 = vsub.f32 %v20, %v341
    %v343 = vand.u32 %v342, 4294901760
    %v344 = vsub.f32 %v342, %v343
    %v345 = vand.u32 %v344, 4294901760
    %346 = vmatpush1.msra.mxu0 %v345
    %347 = vmatprep.subr.mxu0 0.0
    %v348 = vand.u32 %v21, 4294901760
    %v349 = vsub.f32 %v21, %v348
    %v350 = vand.u32 %v349, 4294901760
    %v351 = vsub.f32 %v349, %v350
    %v352 = vand.u32 %v351, 4294901760
    %353 = vmatpush1.msra.mxu0 %v352
    %354 = vmatprep.subr.mxu0 0.0
    %v355 = vand.u32 %v22, 4294901760
    %v356 = vsub.f32 %v22, %v355
    %v357 = vand.u32 %v356, 4294901760
    %v358 = vsub.f32 %v356, %v357
    %v359 = vand.u32 %v358, 4294901760
    %360 = vmatpush1.msra.mxu0 %v359
    %361 = vmatprep.subr.mxu0 0.0
    %v362 = vand.u32 %v23, 4294901760
    %v363 = vsub.f32 %v23, %v362
    %v364 = vand.u32 %v363, 4294901760
    %v365 = vsub.f32 %v363, %v364
    %v366 = vand.u32 %v365, 4294901760
    %367 = vmatpush1.msra.mxu0 %v366
    %368 = vmatprep.subr.mxu0 0.0
    %v369 = vand.u32 %v24, 4294901760
    %v370 = vsub.f32 %v24, %v369
    %v371 = vand.u32 %v370, 4294901760
    %v372 = vsub.f32 %v370, %v371
    %v373 = vand.u32 %v372, 4294901760
    %374 = vmatpush1.msra.mxu0 %v373
    %375 = vmatprep.subr.mxu0 0.0
    %v376 = vand.u32 %v25, 4294901760
    %v377 = vsub.f32 %v25, %v376
    %v378 = vand.u32 %v377, 4294901760
    %v379 = vsub.f32 %v377, %v378
    %v380 = vand.u32 %v379, 4294901760
    %381 = vmatpush1.msra.mxu0 %v380
    %382 = vmatprep.subr.mxu0 0.0
    %v383 = vand.u32 %v26, 4294901760
    %v384 = vsub.f32 %v26, %v383
    %v385 = vand.u32 %v384, 4294901760
    %v386 = vsub.f32 %v384, %v385
    %v387 = vand.u32 %v386, 4294901760
    %388 = vmatpush1.msra.mxu0 %v387
    %389 = vmatprep.subr.mxu0 0.0
    %v390 = vand.u32 %v27, 4294901760
    %v391 = vsub.f32 %v27, %v390
    %v392 = vand.u32 %v391, 4294901760
    %v393 = vsub.f32 %v391, %v392
    %v394 = vand.u32 %v393, 4294901760
    %395 = vmatpush1.msra.mxu0 %v394
    %396 = vmatprep.subr.mxu0 0.0
    %v397 = vand.u32 %v28, 4294901760
    %v398 = vsub.f32 %v28, %v397
    %v399 = vand.u32 %v398, 4294901760
    %v400 = vsub.f32 %v398, %v399
    %v401 = vand.u32 %v400, 4294901760
    %402 = vmatpush1.msra.mxu0 %v401
    %403 = vmatprep.subr.mxu0 0.0
    %v404 = vand.u32 %v29, 4294901760
    %v405 = vsub.f32 %v29, %v404
    %v406 = vand.u32 %v405, 4294901760
    %v407 = vsub.f32 %v405, %v406
    %v408 = vand.u32 %v407, 4294901760
    %409 = vmatpush1.msra.mxu0 %v408
    %410 = vmatprep.subr.mxu0 0.0
    %v411 = vand.u32 %v30, 4294901760
    %v412 = vsub.f32 %v30, %v411
    %v413 = vand.u32 %v412, 4294901760
    %v414 = vsub.f32 %v412, %v413
    %v415 = vand.u32 %v414, 4294901760
    %416 = vmatpush1.msra.mxu0 %v415
    %417 = vmatprep.subr.mxu0 0.0
    %v418 = vand.u32 %v31, 4294901760
    %v419 = vsub.f32 %v31, %v418
    %v420 = vand.u32 %v419, 4294901760
    %v421 = vsub.f32 %v419, %v420
    %v422 = vand.u32 %v421, 4294901760
    %423 = vmatpush1.msra.mxu0 %v422
    %424 = vmatprep.subr.mxu0 0.0
    %v425 = vand.u32 %v32, 4294901760
    %v426 = vsub.f32 %v32, %v425
    %v427 = vand.u32 %v426, 4294901760
    %v428 = vsub.f32 %v426, %v427
    %v429 = vand.u32 %v428, 4294901760
    %430 = vmatpush1.msra.mxu0 %v429
    %431 = vmatprep.subr.mxu0 0.0
    %v432 = vand.u32 %v33, 4294901760
    %v433 = vsub.f32 %v33, %v432
    %v434 = vand.u32 %v433, 4294901760
    %v435 = vsub.f32 %v433, %v434
    %v436 = vand.u32 %v435, 4294901760
    %437 = vmatpush1.msra.mxu0 %v436
    %438 = vmatprep.subr.mxu0 0.0
    %v439 = vand.u32 %v34, 4294901760
    %v440 = vsub.f32 %v34, %v439
    %v441 = vand.u32 %v440, 4294901760
    %v442 = vsub.f32 %v440, %v441
    %v443 = vand.u32 %v442, 4294901760
    %444 = vmatpush1.msra.mxu0 %v443
    %445 = vmatprep.subr.mxu0 0.0
    %v446 = vand.u32 %v35, 4294901760
    %v447 = vsub.f32 %v35, %v446
    %v448 = vand.u32 %v447, 4294901760
    %v449 = vsub.f32 %v447, %v448
    %v450 = vand.u32 %v449, 4294901760
    %451 = vmatpush1.msra.mxu0 %v450
    %452 = vmatprep.subr.mxu0 0.0
    %v453 = vand.u32 %v36, 4294901760
    %v454 = vsub.f32 %v36, %v453
    %v455 = vand.u32 %v454, 4294901760
    %v456 = vsub.f32 %v454, %v455
    %v457 = vand.u32 %v456, 4294901760
    %458 = vmatpush1.msra.mxu0 %v457
    %459 = vmatprep.subr.mxu0 0.0
    %v460 = vand.u32 %v37, 4294901760
    %v461 = vsub.f32 %v37, %v460
    %v462 = vand.u32 %v461, 4294901760
    %v463 = vsub.f32 %v461, %v462
    %v464 = vand.u32 %v463, 4294901760
    %465 = vmatpush1.msra.mxu0 %v464
    %466 = vmatprep.subr.mxu0 0.0
    %v467 = vand.u32 %v38, 4294901760
    %v468 = vsub.f32 %v38, %v467
    %v469 = vand.u32 %v468, 4294901760
    %v470 = vsub.f32 %v468, %v469
    %v471 = vand.u32 %v470, 4294901760
    %472 = vmatpush1.msra.mxu0 %v471
    %473 = vmatprep.subr.mxu0 0.0
    %v474 = vand.u32 %v39, 4294901760
    %v475 = vsub.f32 %v39, %v474
    %v476 = vand.u32 %v475, 4294901760
    %v477 = vsub.f32 %v475, %v476
    %v478 = vand.u32 %v477, 4294901760
    %479 = vmatpush1.msra.mxu0 %v478
    %480 = vmatprep.subr.mxu0 0.0
    %v481 = vand.u32 %v40, 4294901760
    %v482 = vsub.f32 %v40, %v481
    %v483 = vand.u32 %v482, 4294901760
    %v484 = vsub.f32 %v482, %v483
    %v485 = vand.u32 %v484, 4294901760
    %486 = vmatpush1.msra.mxu0 %v485
    %487 = vmatprep.subr.mxu0 0.0
    %v488 = vand.u32 %v41, 4294901760
    %v489 = vsub.f32 %v41, %v488
    %v490 = vand.u32 %v489, 4294901760
    %v491 = vsub.f32 %v489, %v490
    %v492 = vand.u32 %v491, 4294901760
    %493 = vmatpush1.msra.mxu0 %v492
    %494 = vmatprep.subr.mxu0 0.0
    %v495 = vand.u32 %v42, 4294901760
    %v496 = vsub.f32 %v42, %v495
    %v497 = vand.u32 %v496, 4294901760
    %v498 = vsub.f32 %v496, %v497
    %v499 = vand.u32 %v498, 4294901760
    %500 = vmatpush1.msra.mxu0 %v499
    %501 = vmatprep.subr.mxu0 0.0
    %v502 = vand.u32 %v43, 4294901760
    %v503 = vsub.f32 %v43, %v502
    %v504 = vand.u32 %v503, 4294901760
    %v505 = vsub.f32 %v503, %v504
    %v506 = vand.u32 %v505, 4294901760
    %507 = vmatpush1.msra.mxu0 %v506
    %508 = vmatprep.subr.mxu0 0.0
    %v509 = vand.u32 %v44, 4294901760
    %v510 = vsub.f32 %v44, %v509
    %v511 = vand.u32 %v510, 4294901760
    %v512 = vsub.f32 %v510, %v511
    %v513 = vand.u32 %v512, 4294901760
    %514 = vmatpush1.msra.mxu0 %v513
    %515 = vmatprep.subr.mxu0 0.0
    %v516 = vand.u32 %v45, 4294901760
    %v517 = vsub.f32 %v45, %v516
    %v518 = vand.u32 %v517, 4294901760
    %v519 = vsub.f32 %v517, %v518
    %v520 = vand.u32 %v519, 4294901760
    %521 = vmatpush1.msra.mxu0 %v520
    %v522 = vand.u32 %v159, 4294901760
    %523 = vmatprep.mubr.f32.mxu0 %v522
    %v524 = vand.u32 %v151, 4294901760
    %525 = vmatmul.mubr.f32.gmra.mrb[0].mxu0 %v524
    %v526 = vpop.f32.mrb[0].mxu0
    %v527 = vadd.f32 %v295, %v526
    %v528 = vpop.f32.mrb[0].mxu0
    %529 = vdwg.mxu0
    %530 = vmatprep.subr.mxu0 0.0
    %v531 = vand.u32 %v14, 4294901760
    %v532 = vsub.f32 %v14, %v531
    %533 = vmatpush1.msra.mxu0 %v532
    %534 = vmatprep.subr.mxu0 0.0
    %v535 = vand.u32 %v15, 4294901760
    %v536 = vsub.f32 %v15, %v535
    %537 = vmatpush1.msra.mxu0 %v536
    %538 = vmatprep.subr.mxu0 0.0
    %v539 = vand.u32 %v16, 4294901760
    %v540 = vsub.f32 %v16, %v539
    %541 = vmatpush1.msra.mxu0 %v540
    %542 = vmatprep.subr.mxu0 0.0
    %v543 = vand.u32 %v17, 4294901760
    %v544 = vsub.f32 %v17, %v543
    %545 = vmatpush1.msra.mxu0 %v544
    %546 = vmatprep.subr.mxu0 0.0
    %v547 = vand.u32 %v18, 4294901760
    %v548 = vsub.f32 %v18, %v547
    %549 = vmatpush1.msra.mxu0 %v548
    %550 = vmatprep.subr.mxu0 0.0
    %v551 = vand.u32 %v19, 4294901760
    %v552 = vsub.f32 %v19, %v551
    %553 = vmatpush1.msra.mxu0 %v552
    %554 = vmatprep.subr.mxu0 0.0
    %v555 = vand.u32 %v20, 4294901760
    %v556 = vsub.f32 %v20, %v555
    %557 = vmatpush1.msra.mxu0 %v556
    %558 = vmatprep.subr.mxu0 0.0
    %v559 = vand.u32 %v21, 4294901760
    %v560 = vsub.f32 %v21, %v559
    %561 = vmatpush1.msra.mxu0 %v560
    %562 = vmatprep.subr.mxu0 0.0
    %v563 = vand.u32 %v22, 4294901760
    %v564 = vsub.f32 %v22, %v563
    %565 = vmatpush1.msra.mxu0 %v564
    %566 = vmatprep.subr.mxu0 0.0
    %v567 = vand.u32 %v23, 4294901760
    %v568 = vsub.f32 %v23, %v567
    %569 = vmatpush1.msra.mxu0 %v568
    %570 = vmatprep.subr.mxu0 0.0
    %v571 = vand.u32 %v24, 4294901760
    %v572 = vsub.f32 %v24, %v571
    %573 = vmatpush1.msra.mxu0 %v572
    %574 = vmatprep.subr.mxu0 0.0
    %v575 = vand.u32 %v25, 4294901760
    %v576 = vsub.f32 %v25, %v575
    %577 = vmatpush1.msra.mxu0 %v576
    %578 = vmatprep.subr.mxu0 0.0
    %v579 = vand.u32 %v26, 4294901760
    %v580 = vsub.f32 %v26, %v579
    %581 = vmatpush1.msra.mxu0 %v580
    %582 = vmatprep.subr.mxu0 0.0
    %v583 = vand.u32 %v27, 4294901760
    %v584 = vsub.f32 %v27, %v583
    %585 = vmatpush1.msra.mxu0 %v584
    %586 = vmatprep.subr.mxu0 0.0
    %v587 = vand.u32 %v28, 4294901760
    %v588 = vsub.f32 %v28, %v587
    %589 = vmatpush1.msra.mxu0 %v588
    %590 = vmatprep.subr.mxu0 0.0
    %v591 = vand.u32 %v29, 4294901760
    %v592 = vsub.f32 %v29, %v591
    %593 = vmatpush1.msra.mxu0 %v592
    %594 = vmatprep.subr.mxu0 0.0
    %v595 = vand.u32 %v30, 4294901760
    %v596 = vsub.f32 %v30, %v595
    %597 = vmatpush1.msra.mxu0 %v596
    %598 = vmatprep.subr.mxu0 0.0
    %v599 = vand.u32 %v31, 4294901760
    %v600 = vsub.f32 %v31, %v599
    %601 = vmatpush1.msra.mxu0 %v600
    %602 = vmatprep.subr.mxu0 0.0
    %v603 = vand.u32 %v32, 4294901760
    %v604 = vsub.f32 %v32, %v603
    %605 = vmatpush1.msra.mxu0 %v604
    %606 = vmatprep.subr.mxu0 0.0
    %v607 = vand.u32 %v33, 4294901760
    %v608 = vsub.f32 %v33, %v607
    %609 = vmatpush1.msra.mxu0 %v608
    %610 = vmatprep.subr.mxu0 0.0
    %v611 = vand.u32 %v34, 4294901760
    %v612 = vsub.f32 %v34, %v611
    %613 = vmatpush1.msra.mxu0 %v612
    %614 = vmatprep.subr.mxu0 0.0
    %v615 = vand.u32 %v35, 4294901760
    %v616 = vsub.f32 %v35, %v615
    %617 = vmatpush1.msra.mxu0 %v616
    %618 = vmatprep.subr.mxu0 0.0
    %v619 = vand.u32 %v36, 4294901760
    %v620 = vsub.f32 %v36, %v619
    %621 = vmatpush1.msra.mxu0 %v620
    %622 = vmatprep.subr.mxu0 0.0
    %v623 = vand.u32 %v37, 4294901760
    %v624 = vsub.f32 %v37, %v623
    %625 = vmatpush1.msra.mxu0 %v624
    %626 = vmatprep.subr.mxu0 0.0
    %v627 = vand.u32 %v38, 4294901760
    %v628 = vsub.f32 %v38, %v627
    %629 = vmatpush1.msra.mxu0 %v628
    %630 = vmatprep.subr.mxu0 0.0
    %v631 = vand.u32 %v39, 4294901760
    %v632 = vsub.f32 %v39, %v631
    %633 = vmatpush1.msra.mxu0 %v632
    %634 = vmatprep.subr.mxu0 0.0
    %v635 = vand.u32 %v40, 4294901760
    %v636 = vsub.f32 %v40, %v635
    %637 = vmatpush1.msra.mxu0 %v636
    %638 = vmatprep.subr.mxu0 0.0
    %v639 = vand.u32 %v41, 4294901760
    %v640 = vsub.f32 %v41, %v639
    %641 = vmatpush1.msra.mxu0 %v640
    %642 = vmatprep.subr.mxu0 0.0
    %v643 = vand.u32 %v42, 4294901760
    %v644 = vsub.f32 %v42, %v643
    %645 = vmatpush1.msra.mxu0 %v644
    %646 = vmatprep.subr.mxu0 0.0
    %v647 = vand.u32 %v43, 4294901760
    %v648 = vsub.f32 %v43, %v647
    %649 = vmatpush1.msra.mxu0 %v648
    %650 = vmatprep.subr.mxu0 0.0
    %v651 = vand.u32 %v44, 4294901760
    %v652 = vsub.f32 %v44, %v651
    %653 = vmatpush1.msra.mxu0 %v652
    %654 = vmatprep.subr.mxu0 0.0
    %v655 = vand.u32 %v45, 4294901760
    %v656 = vsub.f32 %v45, %v655
    %657 = vmatpush1.msra.mxu0 %v656
    %v658 = vand.u32 %v159, 4294901760
    %v659 = vsub.f32 %v159, %v658
    %660 = vmatprep.mubr.f32.mxu0 %v659
    %v661 = vand.u32 %v151, 4294901760
    %v662 = vsub.f32 %v151, %v661
    %663 = vmatmul.mubr.f32.gmra.mrb[0].mxu0 %v662
    %v664 = vpop.f32.mrb[0].mxu0
    %v665 = vadd.f32 %v527, %v664
    %v666 = vpop.f32.mrb[0].mxu0
    %667 = vdwg.mxu0
    %668 = vmatprep.subr.mxu0 0.0
    %v669 = vand.u32 %v14, 4294901760
    %670 = vmatpush1.msra.mxu0 %v669
    %671 = vmatprep.subr.mxu0 0.0
    %v672 = vand.u32 %v15, 4294901760
    %673 = vmatpush1.msra.mxu0 %v672
    %674 = vmatprep.subr.mxu0 0.0
    %v675 = vand.u32 %v16, 4294901760
    %676 = vmatpush1.msra.mxu0 %v675
    %677 = vmatprep.subr.mxu0 0.0
    %v678 = vand.u32 %v17, 4294901760
    %679 = vmatpush1.msra.mxu0 %v678
    %680 = vmatprep.subr.mxu0 0.0
    %v681 = vand.u32 %v18, 4294901760
    %682 = vmatpush1.msra.mxu0 %v681
    %683 = vmatprep.subr.mxu0 0.0
    %v684 = vand.u32 %v19, 4294901760
    %685 = vmatpush1.msra.mxu0 %v684
    %686 = vmatprep.subr.mxu0 0.0
    %v687 = vand.u32 %v20, 4294901760
    %688 = vmatpush1.msra.mxu0 %v687
    %689 = vmatprep.subr.mxu0 0.0
    %v690 = vand.u32 %v21, 4294901760
    %691 = vmatpush1.msra.mxu0 %v690
    %692 = vmatprep.subr.mxu0 0.0
    %v693 = vand.u32 %v22, 4294901760
    %694 = vmatpush1.msra.mxu0 %v693
    %695 = vmatprep.subr.mxu0 0.0
    %v696 = vand.u32 %v23, 4294901760
    %697 = vmatpush1.msra.mxu0 %v696
    %698 = vmatprep.subr.mxu0 0.0
    %v699 = vand.u32 %v24, 4294901760
    %700 = vmatpush1.msra.mxu0 %v699
    %701 = vmatprep.subr.mxu0 0.0
    %v702 = vand.u32 %v25, 4294901760
    %703 = vmatpush1.msra.mxu0 %v702
    %704 = vmatprep.subr.mxu0 0.0
    %v705 = vand.u32 %v26, 4294901760
    %706 = vmatpush1.msra.mxu0 %v705
    %707 = vmatprep.subr.mxu0 0.0
    %v708 = vand.u32 %v27, 4294901760
    %709 = vmatpush1.msra.mxu0 %v708
    %710 = vmatprep.subr.mxu0 0.0
    %v711 = vand.u32 %v28, 4294901760
    %712 = vmatpush1.msra.mxu0 %v711
    %713 = vmatprep.subr.mxu0 0.0
    %v714 = vand.u32 %v29, 4294901760
    %715 = vmatpush1.msra.mxu0 %v714
    %716 = vmatprep.subr.mxu0 0.0
    %v717 = vand.u32 %v30, 4294901760
    %718 = vmatpush1.msra.mxu0 %v717
    %719 = vmatprep.subr.mxu0 0.0
    %v720 = vand.u32 %v31, 4294901760
    %721 = vmatpush1.msra.mxu0 %v720
    %722 = vmatprep.subr.mxu0 0.0
    %v723 = vand.u32 %v32, 4294901760
    %724 = vmatpush1.msra.mxu0 %v723
    %725 = vmatprep.subr.mxu0 0.0
    %v726 = vand.u32 %v33, 4294901760
    %727 = vmatpush1.msra.mxu0 %v726
    %728 = vmatprep.subr.mxu0 0.0
    %v729 = vand.u32 %v34, 4294901760
    %730 = vmatpush1.msra.mxu0 %v729
    %731 = vmatprep.subr.mxu0 0.0
    %v732 = vand.u32 %v35, 4294901760
    %733 = vmatpush1.msra.mxu0 %v732
    %734 = vmatprep.subr.mxu0 0.0
    %v735 = vand.u32 %v36, 4294901760
    %736 = vmatpush1.msra.mxu0 %v735
    %737 = vmatprep.subr.mxu0 0.0
    %v738 = vand.u32 %v37, 4294901760
    %739 = vmatpush1.msra.mxu0 %v738
    %740 = vmatprep.subr.mxu0 0.0
    %v741 = vand.u32 %v38, 4294901760
    %742 = vmatpush1.msra.mxu0 %v741
    %743 = vmatprep.subr.mxu0 0.0
    %v744 = vand.u32 %v39, 4294901760
    %745 = vmatpush1.msra.mxu0 %v744
    %746 = vmatprep.subr.mxu0 0.0
    %v747 = vand.u32 %v40, 4294901760
    %748 = vmatpush1.msra.mxu0 %v747
    %749 = vmatprep.subr.mxu0 0.0
    %v750 = vand.u32 %v41, 4294901760
    %751 = vmatpush1.msra.mxu0 %v750
    %752 = vmatprep.subr.mxu0 0.0
    %v753 = vand.u32 %v42, 4294901760
    %754 = vmatpush1.msra.mxu0 %v753
    %755 = vmatprep.subr.mxu0 0.0
    %v756 = vand.u32 %v43, 4294901760
    %757 = vmatpush1.msra.mxu0 %v756
    %758 = vmatprep.subr.mxu0 0.0
    %v759 = vand.u32 %v44, 4294901760
    %760 = vmatpush1.msra.mxu0 %v759
    %761 = vmatprep.subr.mxu0 0.0
    %v762 = vand.u32 %v45, 4294901760
    %763 = vmatpush1.msra.mxu0 %v762
    %v764 = vand.u32 %v159, 4294901760
    %v765 = vsub.f32 %v159, %v764
    %v766 = vand.u32 %v765, 4294901760
    %767 = vmatprep.mubr.f32.mxu0 %v766
    %v768 = vand.u32 %v151, 4294901760
    %v769 = vsub.f32 %v151, %v768
    %v770 = vand.u32 %v769, 4294901760
    %771 = vmatmul.mubr.f32.gmra.mrb[0].mxu0 %v770
    %v772 = vpop.f32.mrb[0].mxu0
    %v773 = vadd.f32 %v665, %v772
    %v774 = vpop.f32.mrb[0].mxu0
    %775 = vdwg.mxu0
    %776 = vmatprep.subr.mxu0 0.0
    %v777 = vand.u32 %v14, 4294901760
    %v778 = vsub.f32 %v14, %v777
    %v779 = vand.u32 %v778, 4294901760
    %780 = vmatpush1.msra.mxu0 %v779
    %781 = vmatprep.subr.mxu0 0.0
    %v782 = vand.u32 %v15, 4294901760
    %v783 = vsub.f32 %v15, %v782
    %v784 = vand.u32 %v783, 4294901760
    %785 = vmatpush1.msra.mxu0 %v784
    %786 = vmatprep.subr.mxu0 0.0
    %v787 = vand.u32 %v16, 4294901760
    %v788 = vsub.f32 %v16, %v787
    %v789 = vand.u32 %v788, 4294901760
    %790 = vmatpush1.msra.mxu0 %v789
    %791 = vmatprep.subr.mxu0 0.0
    %v792 = vand.u32 %v17, 4294901760
    %v793 = vsub.f32 %v17, %v792
    %v794 = vand.u32 %v793, 4294901760
    %795 = vmatpush1.msra.mxu0 %v794
    %796 = vmatprep.subr.mxu0 0.0
    %v797 = vand.u32 %v18, 4294901760
    %v798 = vsub.f32 %v18, %v797
    %v799 = vand.u32 %v798, 4294901760
    %800 = vmatpush1.msra.mxu0 %v799
    %801 = vmatprep.subr.mxu0 0.0
    %v802 = vand.u32 %v19, 4294901760
    %v803 = vsub.f32 %v19, %v802
    %v804 = vand.u32 %v803, 4294901760
    %805 = vmatpush1.msra.mxu0 %v804
    %806 = vmatprep.subr.mxu0 0.0
    %v807 = vand.u32 %v20, 4294901760
    %v808 = vsub.f32 %v20, %v807
    %v809 = vand.u32 %v808, 4294901760
    %810 = vmatpush1.msra.mxu0 %v809
    %811 = vmatprep.subr.mxu0 0.0
    %v812 = vand.u32 %v21, 4294901760
    %v813 = vsub.f32 %v21, %v812
    %v814 = vand.u32 %v813, 4294901760
    %815 = vmatpush1.msra.mxu0 %v814
    %816 = vmatprep.subr.mxu0 0.0
    %v817 = vand.u32 %v22, 4294901760
    %v818 = vsub.f32 %v22, %v817
    %v819 = vand.u32 %v818, 4294901760
    %820 = vmatpush1.msra.mxu0 %v819
    %821 = vmatprep.subr.mxu0 0.0
    %v822 = vand.u32 %v23, 4294901760
    %v823 = vsub.f32 %v23, %v822
    %v824 = vand.u32 %v823, 4294901760
    %825 = vmatpush1.msra.mxu0 %v824
    %826 = vmatprep.subr.mxu0 0.0
    %v827 = vand.u32 %v24, 4294901760
    %v828 = vsub.f32 %v24, %v827
    %v829 = vand.u32 %v828, 4294901760
    %830 = vmatpush1.msra.mxu0 %v829
    %831 = vmatprep.subr.mxu0 0.0
    %v832 = vand.u32 %v25, 4294901760
    %v833 = vsub.f32 %v25, %v832
    %v834 = vand.u32 %v833, 4294901760
    %835 = vmatpush1.msra.mxu0 %v834
    %836 = vmatprep.subr.mxu0 0.0
    %v837 = vand.u32 %v26, 4294901760
    %v838 = vsub.f32 %v26, %v837
    %v839 = vand.u32 %v838, 4294901760
    %840 = vmatpush1.msra.mxu0 %v839
    %841 = vmatprep.subr.mxu0 0.0
    %v842 = vand.u32 %v27, 4294901760
    %v843 = vsub.f32 %v27, %v842
    %v844 = vand.u32 %v843, 4294901760
    %845 = vmatpush1.msra.mxu0 %v844
    %846 = vmatprep.subr.mxu0 0.0
    %v847 = vand.u32 %v28, 4294901760
    %v848 = vsub.f32 %v28, %v847
    %v849 = vand.u32 %v848, 4294901760
    %850 = vmatpush1.msra.mxu0 %v849
    %851 = vmatprep.subr.mxu0 0.0
    %v852 = vand.u32 %v29, 4294901760
    %v853 = vsub.f32 %v29, %v852
    %v854 = vand.u32 %v853, 4294901760
    %855 = vmatpush1.msra.mxu0 %v854
    %856 = vmatprep.subr.mxu0 0.0
    %v857 = vand.u32 %v30, 4294901760
    %v858 = vsub.f32 %v30, %v857
    %v859 = vand.u32 %v858, 4294901760
    %860 = vmatpush1.msra.mxu0 %v859
    %861 = vmatprep.subr.mxu0 0.0
    %v862 = vand.u32 %v31, 4294901760
    %v863 = vsub.f32 %v31, %v862
    %v864 = vand.u32 %v863, 4294901760
    %865 = vmatpush1.msra.mxu0 %v864
    %866 = vmatprep.subr.mxu0 0.0
    %v867 = vand.u32 %v32, 4294901760
    %v868 = vsub.f32 %v32, %v867
    %v869 = vand.u32 %v868, 4294901760
    %870 = vmatpush1.msra.mxu0 %v869
    %871 = vmatprep.subr.mxu0 0.0
    %v872 = vand.u32 %v33, 4294901760
    %v873 = vsub.f32 %v33, %v872
    %v874 = vand.u32 %v873, 4294901760
    %875 = vmatpush1.msra.mxu0 %v874
    %876 = vmatprep.subr.mxu0 0.0
    %v877 = vand.u32 %v34, 4294901760
    %v878 = vsub.f32 %v34, %v877
    %v879 = vand.u32 %v878, 4294901760
    %880 = vmatpush1.msra.mxu0 %v879
    %881 = vmatprep.subr.mxu0 0.0
    %v882 = vand.u32 %v35, 4294901760
    %v883 = vsub.f32 %v35, %v882
    %v884 = vand.u32 %v883, 4294901760
    %885 = vmatpush1.msra.mxu0 %v884
    %886 = vmatprep.subr.mxu0 0.0
    %v887 = vand.u32 %v36, 4294901760
    %v888 = vsub.f32 %v36, %v887
    %v889 = vand.u32 %v888, 4294901760
    %890 = vmatpush1.msra.mxu0 %v889
    %891 = vmatprep.subr.mxu0 0.0
    %v892 = vand.u32 %v37, 4294901760
    %v893 = vsub.f32 %v37, %v892
    %v894 = vand.u32 %v893, 4294901760
    %895 = vmatpush1.msra.mxu0 %v894
    %896 = vmatprep.subr.mxu0 0.0
    %v897 = vand.u32 %v38, 4294901760
    %v898 = vsub.f32 %v38, %v897
    %v899 = vand.u32 %v898, 4294901760
    %900 = vmatpush1.msra.mxu0 %v899
    %901 = vmatprep.subr.mxu0 0.0
    %v902 = vand.u32 %v39, 4294901760
    %v903 = vsub.f32 %v39, %v902
    %v904 = vand.u32 %v903, 4294901760
    %905 = vmatpush1.msra.mxu0 %v904
    %906 = vmatprep.subr.mxu0 0.0
    %v907 = vand.u32 %v40, 4294901760
    %v908 = vsub.f32 %v40, %v907
    %v909 = vand.u32 %v908, 4294901760
    %910 = vmatpush1.msra.mxu0 %v909
    %911 = vmatprep.subr.mxu0 0.0
    %v912 = vand.u32 %v41, 4294901760
    %v913 = vsub.f32 %v41, %v912
    %v914 = vand.u32 %v913, 4294901760
    %915 = vmatpush1.msra.mxu0 %v914
    %916 = vmatprep.subr.mxu0 0.0
    %v917 = vand.u32 %v42, 4294901760
    %v918 = vsub.f32 %v42, %v917
    %v919 = vand.u32 %v918, 4294901760
    %920 = vmatpush1.msra.mxu0 %v919
    %921 = vmatprep.subr.mxu0 0.0
    %v922 = vand.u32 %v43, 4294901760
    %v923 = vsub.f32 %v43, %v922
    %v924 = vand.u32 %v923, 4294901760
    %925 = vmatpush1.msra.mxu0 %v924
    %926 = vmatprep.subr.mxu0 0.0
    %v927 = vand.u32 %v44, 4294901760
    %v928 = vsub.f32 %v44, %v927
    %v929 = vand.u32 %v928, 4294901760
    %930 = vmatpush1.msra.mxu0 %v929
    %931 = vmatprep.subr.mxu0 0.0
    %v932 = vand.u32 %v45, 4294901760
    %v933 = vsub.f32 %v45, %v932
    %v934 = vand.u32 %v933, 4294901760
    %935 = vmatpush1.msra.mxu0 %v934
    %v936 = vand.u32 %v159, 4294901760
    %937 = vmatprep.mubr.f32.mxu0 %v936
    %v938 = vand.u32 %v151, 4294901760
    %939 = vmatmul.mubr.f32.gmra.mrb[0].mxu0 %v938
    %v940 = vpop.f32.mrb[0].mxu0
    %v941 = vadd.f32 %v773, %v940
    %v942 = vpop.f32.mrb[0].mxu0
    %943 = vdwg.mxu0
    %944 = vmatprep.subr.mxu0 0.0
    %v945 = vand.u32 %v14, 4294901760
    %946 = vmatpush1.msra.mxu0 %v945
    %947 = vmatprep.subr.mxu0 0.0
    %v948 = vand.u32 %v15, 4294901760
    %949 = vmatpush1.msra.mxu0 %v948
    %950 = vmatprep.subr.mxu0 0.0
    %v951 = vand.u32 %v16, 4294901760
    %952 = vmatpush1.msra.mxu0 %v951
    %953 = vmatprep.subr.mxu0 0.0
    %v954 = vand.u32 %v17, 4294901760
    %955 = vmatpush1.msra.mxu0 %v954
    %956 = vmatprep.subr.mxu0 0.0
    %v957 = vand.u32 %v18, 4294901760
    %958 = vmatpush1.msra.mxu0 %v957
    %959 = vmatprep.subr.mxu0 0.0
    %v960 = vand.u32 %v19, 4294901760
    %961 = vmatpush1.msra.mxu0 %v960
    %962 = vmatprep.subr.mxu0 0.0
    %v963 = vand.u32 %v20, 4294901760
    %964 = vmatpush1.msra.mxu0 %v963
    %965 = vmatprep.subr.mxu0 0.0
    %v966 = vand.u32 %v21, 4294901760
    %967 = vmatpush1.msra.mxu0 %v966
    %968 = vmatprep.subr.mxu0 0.0
    %v969 = vand.u32 %v22, 4294901760
    %970 = vmatpush1.msra.mxu0 %v969
    %971 = vmatprep.subr.mxu0 0.0
    %v972 = vand.u32 %v23, 4294901760
    %973 = vmatpush1.msra.mxu0 %v972
    %974 = vmatprep.subr.mxu0 0.0
    %v975 = vand.u32 %v24, 4294901760
    %976 = vmatpush1.msra.mxu0 %v975
    %977 = vmatprep.subr.mxu0 0.0
    %v978 = vand.u32 %v25, 4294901760
    %979 = vmatpush1.msra.mxu0 %v978
    %980 = vmatprep.subr.mxu0 0.0
    %v981 = vand.u32 %v26, 4294901760
    %982 = vmatpush1.msra.mxu0 %v981
    %983 = vmatprep.subr.mxu0 0.0
    %v984 = vand.u32 %v27, 4294901760
    %985 = vmatpush1.msra.mxu0 %v984
    %986 = vmatprep.subr.mxu0 0.0
    %v987 = vand.u32 %v28, 4294901760
    %988 = vmatpush1.msra.mxu0 %v987
    %989 = vmatprep.subr.mxu0 0.0
    %v990 = vand.u32 %v29, 4294901760
    %991 = vmatpush1.msra.mxu0 %v990
    %992 = vmatprep.subr.mxu0 0.0
    %v993 = vand.u32 %v30, 4294901760
    %994 = vmatpush1.msra.mxu0 %v993
    %995 = vmatprep.subr.mxu0 0.0
    %v996 = vand.u32 %v31, 4294901760
    %997 = vmatpush1.msra.mxu0 %v996
    %998 = vmatprep.subr.mxu0 0.0
    %v999 = vand.u32 %v32, 4294901760
    %1000 = vmatpush1.msra.mxu0 %v999
    %1001 = vmatprep.subr.mxu0 0.0
    %v1002 = vand.u32 %v33, 4294901760
    %1003 = vmatpush1.msra.mxu0 %v1002
    %1004 = vmatprep.subr.mxu0 0.0
    %v1005 = vand.u32 %v34, 4294901760
    %1006 = vmatpush1.msra.mxu0 %v1005
    %1007 = vmatprep.subr.mxu0 0.0
    %v1008 = vand.u32 %v35, 4294901760
    %1009 = vmatpush1.msra.mxu0 %v1008
    %1010 = vmatprep.subr.mxu0 0.0
    %v1011 = vand.u32 %v36, 4294901760
    %1012 = vmatpush1.msra.mxu0 %v1011
    %1013 = vmatprep.subr.mxu0 0.0
    %v1014 = vand.u32 %v37, 4294901760
    %1015 = vmatpush1.msra.mxu0 %v1014
    %1016 = vmatprep.subr.mxu0 0.0
    %v1017 = vand.u32 %v38, 4294901760
    %1018 = vmatpush1.msra.mxu0 %v1017
    %1019 = vmatprep.subr.mxu0 0.0
    %v1020 = vand.u32 %v39, 4294901760
    %1021 = vmatpush1.msra.mxu0 %v1020
    %1022 = vmatprep.subr.mxu0 0.0
    %v1023 = vand.u32 %v40, 4294901760
    %1024 = vmatpush1.msra.mxu0 %v1023
    %1025 = vmatprep.subr.mxu0 0.0
    %v1026 = vand.u32 %v41, 4294901760
    %1027 = vmatpush1.msra.mxu0 %v1026
    %1028 = vmatprep.subr.mxu0 0.0
    %v1029 = vand.u32 %v42, 4294901760
    %1030 = vmatpush1.msra.mxu0 %v1029
    %1031 = vmatprep.subr.mxu0 0.0
    %v1032 = vand.u32 %v43, 4294901760
    %1033 = vmatpush1.msra.mxu0 %v1032
    %1034 = vmatprep.subr.mxu0 0.0
    %v1035 = vand.u32 %v44, 4294901760
    %1036 = vmatpush1.msra.mxu0 %v1035
    %1037 = vmatprep.subr.mxu0 0.0
    %v1038 = vand.u32 %v45, 4294901760
    %1039 = vmatpush1.msra.mxu0 %v1038
    %v1040 = vand.u32 %v159, 4294901760
    %1041 = vmatprep.mubr.f32.mxu0 %v1040
    %v1042 = vand.u32 %v151, 4294901760
    %1043 = vmatmul.mubr.f32.gmra.mrb[0].mxu0 %v1042
    %v1044 = vpop.f32.mrb[0].mxu0
    %v1045 = vadd.f32 %v941, %v1044
    %v1046 = vpop.f32.mrb[0].mxu0
    %1047 = vdwg.mxu0
    %1048 = vmatprep.subr.mxu0 0.0
    %v1049 = vand.u32 %v46, 4294901760
    %1050 = vmatpush1.msra.mxu0 %v1049
    %1051 = vmatprep.subr.mxu0 0.0
    %v1052 = vand.u32 %v47, 4294901760
    %1053 = vmatpush1.msra.mxu0 %v1052
    %1054 = vmatprep.subr.mxu0 0.0
    %v1055 = vand.u32 %v48, 4294901760
    %1056 = vmatpush1.msra.mxu0 %v1055
    %1057 = vmatprep.subr.mxu0 0.0
    %v1058 = vand.u32 %v49, 4294901760
    %1059 = vmatpush1.msra.mxu0 %v1058
    %1060 = vmatprep.subr.mxu0 0.0
    %v1061 = vand.u32 %v50, 4294901760
    %1062 = vmatpush1.msra.mxu0 %v1061
    %1063 = vmatprep.subr.mxu0 0.0
    %v1064 = vand.u32 %v51, 4294901760
    %1065 = vmatpush1.msra.mxu0 %v1064
    %1066 = vmatprep.subr.mxu0 0.0
    %v1067 = vand.u32 %v52, 4294901760
    %1068 = vmatpush1.msra.mxu0 %v1067
    %1069 = vmatprep.subr.mxu0 0.0
    %v1070 = vand.u32 %v53, 4294901760
    %1071 = vmatpush1.msra.mxu0 %v1070
    %1072 = vmatprep.subr.mxu0 0.0
    %v1073 = vand.u32 %v54, 4294901760
    %1074 = vmatpush1.msra.mxu0 %v1073
    %1075 = vmatprep.subr.mxu0 0.0
    %v1076 = vand.u32 %v55, 4294901760
    %1077 = vmatpush1.msra.mxu0 %v1076
    %1078 = vmatprep.subr.mxu0 0.0
    %v1079 = vand.u32 %v56, 4294901760
    %1080 = vmatpush1.msra.mxu0 %v1079
    %1081 = vmatprep.subr.mxu0 0.0
    %v1082 = vand.u32 %v57, 4294901760
    %1083 = vmatpush1.msra.mxu0 %v1082
    %1084 = vmatprep.subr.mxu0 0.0
    %v1085 = vand.u32 %v58, 4294901760
    %1086 = vmatpush1.msra.mxu0 %v1085
    %1087 = vmatprep.subr.mxu0 0.0
    %v1088 = vand.u32 %v59, 4294901760
    %1089 = vmatpush1.msra.mxu0 %v1088
    %1090 = vmatprep.subr.mxu0 0.0
    %v1091 = vand.u32 %v60, 4294901760
    %1092 = vmatpush1.msra.mxu0 %v1091
    %1093 = vmatprep.subr.mxu0 0.0
    %v1094 = vand.u32 %v61, 4294901760
    %1095 = vmatpush1.msra.mxu0 %v1094
    %1096 = vmatprep.subr.mxu0 0.0
    %v1097 = vand.u32 %v62, 4294901760
    %1098 = vmatpush1.msra.mxu0 %v1097
    %1099 = vmatprep.subr.mxu0 0.0
    %v1100 = vand.u32 %v63, 4294901760
    %1101 = vmatpush1.msra.mxu0 %v1100
    %1102 = vmatprep.subr.mxu0 0.0
    %v1103 = vand.u32 %v64, 4294901760
    %1104 = vmatpush1.msra.mxu0 %v1103
    %1105 = vmatprep.subr.mxu0 0.0
    %v1106 = vand.u32 %v65, 4294901760
    %1107 = vmatpush1.msra.mxu0 %v1106
    %1108 = vmatprep.subr.mxu0 0.0
    %v1109 = vand.u32 %v66, 4294901760
    %1110 = vmatpush1.msra.mxu0 %v1109
    %1111 = vmatprep.subr.mxu0 0.0
    %v1112 = vand.u32 %v67, 4294901760
    %1113 = vmatpush1.msra.mxu0 %v1112
    %1114 = vmatprep.subr.mxu0 0.0
    %v1115 = vand.u32 %v68, 4294901760
    %1116 = vmatpush1.msra.mxu0 %v1115
    %1117 = vmatprep.subr.mxu0 0.0
    %v1118 = vand.u32 %v69, 4294901760
    %1119 = vmatpush1.msra.mxu0 %v1118
    %1120 = vmatprep.subr.mxu0 0.0
    %v1121 = vand.u32 %v70, 4294901760
    %1122 = vmatpush1.msra.mxu0 %v1121
    %1123 = vmatprep.subr.mxu0 0.0
    %v1124 = vand.u32 %v71, 4294901760
    %1125 = vmatpush1.msra.mxu0 %v1124
    %1126 = vmatprep.subr.mxu0 0.0
    %v1127 = vand.u32 %v72, 4294901760
    %1128 = vmatpush1.msra.mxu0 %v1127
    %1129 = vmatprep.subr.mxu0 0.0
    %v1130 = vand.u32 %v73, 4294901760
    %1131 = vmatpush1.msra.mxu0 %v1130
    %1132 = vmatprep.subr.mxu0 0.0
    %v1133 = vand.u32 %v74, 4294901760
    %1134 = vmatpush1.msra.mxu0 %v1133
    %1135 = vmatprep.subr.mxu0 0.0
    %v1136 = vand.u32 %v75, 4294901760
    %1137 = vmatpush1.msra.mxu0 %v1136
    %1138 = vmatprep.subr.mxu0 0.0
    %v1139 = vand.u32 %v76, 4294901760
    %1140 = vmatpush1.msra.mxu0 %v1139
    %1141 = vmatprep.subr.mxu0 0.0
    %v1142 = vand.u32 %v77, 4294901760
    %1143 = vmatpush1.msra.mxu0 %v1142
    %v1144 = vand.u32 %v160, 4294901760
    %v1145 = vsub.f32 %v160, %v1144
    %v1146 = vand.u32 %v1145, 4294901760
    %v1147 = vsub.f32 %v1145, %v1146
    %v1148 = vand.u32 %v1147, 4294901760
    %1149 = vmatprep.mubr.f32.mxu0 %v1148
    %v1150 = vand.u32 %v158, 4294901760
    %v1151 = vsub.f32 %v158, %v1150
    %v1152 = vand.u32 %v1151, 4294901760
    %v1153 = vsub.f32 %v1151, %v1152
    %v1154 = vand.u32 %v1153, 4294901760
    %1155 = vmatmul.mubr.f32.gmra.mrb[0].mxu0 %v1154
    %v1156 = vpop.f32.mrb[0].mxu0
    %v1157 = vadd.f32 %v1045, %v1156
    %v1158 = vpop.f32.mrb[0].mxu0
    %1159 = vdwg.mxu0
    %1160 = vmatprep.subr.mxu0 0.0
    %v1161 = vand.u32 %v46, 4294901760
    %v1162 = vsub.f32 %v46, %v1161
    %v1163 = vand.u32 %v1162, 4294901760
    %v1164 = vsub.f32 %v1162, %v1163
    %v1165 = vand.u32 %v1164, 4294901760
    %1166 = vmatpush1.msra.mxu0 %v1165
    %1167 = vmatprep.subr.mxu0 0.0
    %v1168 = vand.u32 %v47, 4294901760
    %v1169 = vsub.f32 %v47, %v1168
    %v1170 = vand.u32 %v1169, 4294901760
    %v1171 = vsub.f32 %v1169, %v1170
    %v1172 = vand.u32 %v1171, 4294901760
    %1173 = vmatpush1.msra.mxu0 %v1172
    %1174 = vmatprep.subr.mxu0 0.0
    %v1175 = vand.u32 %v48, 4294901760
    %v1176 = vsub.f32 %v48, %v1175
    %v1177 = vand.u32 %v1176, 4294901760
    %v1178 = vsub.f32 %v1176, %v1177
    %v1179 = vand.u32 %v1178, 4294901760
    %1180 = vmatpush1.msra.mxu0 %v1179
    %1181 = vmatprep.subr.mxu0 0.0
    %v1182 = vand.u32 %v49, 4294901760
    %v1183 = vsub.f32 %v49, %v1182
    %v1184 = vand.u32 %v1183, 4294901760
    %v1185 = vsub.f32 %v1183, %v1184
    %v1186 = vand.u32 %v1185, 4294901760
    %1187 = vmatpush1.msra.mxu0 %v1186
    %1188 = vmatprep.subr.mxu0 0.0
    %v1189 = vand.u32 %v50, 4294901760
    %v1190 = vsub.f32 %v50, %v1189
    %v1191 = vand.u32 %v1190, 4294901760
    %v1192 = vsub.f32 %v1190, %v1191
    %v1193 = vand.u32 %v1192, 4294901760
    %1194 = vmatpush1.msra.mxu0 %v1193
    %1195 = vmatprep.subr.mxu0 0.0
    %v1196 = vand.u32 %v51, 4294901760
    %v1197 = vsub.f32 %v51, %v1196
    %v1198 = vand.u32 %v1197, 4294901760
    %v1199 = vsub.f32 %v1197, %v1198
    %v1200 = vand.u32 %v1199, 4294901760
    %1201 = vmatpush1.msra.mxu0 %v1200
    %1202 = vmatprep.subr.mxu0 0.0
    %v1203 = vand.u32 %v52, 4294901760
    %v1204 = vsub.f32 %v52, %v1203
    %v1205 = vand.u32 %v1204, 4294901760
    %v1206 = vsub.f32 %v1204, %v1205
    %v1207 = vand.u32 %v1206, 4294901760
    %1208 = vmatpush1.msra.mxu0 %v1207
    %1209 = vmatprep.subr.mxu0 0.0
    %v1210 = vand.u32 %v53, 4294901760
    %v1211 = vsub.f32 %v53, %v1210
    %v1212 = vand.u32 %v1211, 4294901760
    %v1213 = vsub.f32 %v1211, %v1212
    %v1214 = vand.u32 %v1213, 4294901760
    %1215 = vmatpush1.msra.mxu0 %v1214
    %1216 = vmatprep.subr.mxu0 0.0
    %v1217 = vand.u32 %v54, 4294901760
    %v1218 = vsub.f32 %v54, %v1217
    %v1219 = vand.u32 %v1218, 4294901760
    %v1220 = vsub.f32 %v1218, %v1219
    %v1221 = vand.u32 %v1220, 4294901760
    %1222 = vmatpush1.msra.mxu0 %v1221
    %1223 = vmatprep.subr.mxu0 0.0
    %v1224 = vand.u32 %v55, 4294901760
    %v1225 = vsub.f32 %v55, %v1224
    %v1226 = vand.u32 %v1225, 4294901760
    %v1227 = vsub.f32 %v1225, %v1226
    %v1228 = vand.u32 %v1227, 4294901760
    %1229 = vmatpush1.msra.mxu0 %v1228
    %1230 = vmatprep.subr.mxu0 0.0
    %v1231 = vand.u32 %v56, 4294901760
    %v1232 = vsub.f32 %v56, %v1231
    %v1233 = vand.u32 %v1232, 4294901760
    %v1234 = vsub.f32 %v1232, %v1233
    %v1235 = vand.u32 %v1234, 4294901760
    %1236 = vmatpush1.msra.mxu0 %v1235
    %1237 = vmatprep.subr.mxu0 0.0
    %v1238 = vand.u32 %v57, 4294901760
    %v1239 = vsub.f32 %v57, %v1238
    %v1240 = vand.u32 %v1239, 4294901760
    %v1241 = vsub.f32 %v1239, %v1240
    %v1242 = vand.u32 %v1241, 4294901760
    %1243 = vmatpush1.msra.mxu0 %v1242
    %1244 = vmatprep.subr.mxu0 0.0
    %v1245 = vand.u32 %v58, 4294901760
    %v1246 = vsub.f32 %v58, %v1245
    %v1247 = vand.u32 %v1246, 4294901760
    %v1248 = vsub.f32 %v1246, %v1247
    %v1249 = vand.u32 %v1248, 4294901760
    %1250 = vmatpush1.msra.mxu0 %v1249
    %1251 = vmatprep.subr.mxu0 0.0
    %v1252 = vand.u32 %v59, 4294901760
    %v1253 = vsub.f32 %v59, %v1252
    %v1254 = vand.u32 %v1253, 4294901760
    %v1255 = vsub.f32 %v1253, %v1254
    %v1256 = vand.u32 %v1255, 4294901760
    %1257 = vmatpush1.msra.mxu0 %v1256
    %1258 = vmatprep.subr.mxu0 0.0
    %v1259 = vand.u32 %v60, 4294901760
    %v1260 = vsub.f32 %v60, %v1259
    %v1261 = vand.u32 %v1260, 4294901760
    %v1262 = vsub.f32 %v1260, %v1261
    %v1263 = vand.u32 %v1262, 4294901760
    %1264 = vmatpush1.msra.mxu0 %v1263
    %1265 = vmatprep.subr.mxu0 0.0
    %v1266 = vand.u32 %v61, 4294901760
    %v1267 = vsub.f32 %v61, %v1266
    %v1268 = vand.u32 %v1267, 4294901760
    %v1269 = vsub.f32 %v1267, %v1268
    %v1270 = vand.u32 %v1269, 4294901760
    %1271 = vmatpush1.msra.mxu0 %v1270
    %1272 = vmatprep.subr.mxu0 0.0
    %v1273 = vand.u32 %v62, 4294901760
    %v1274 = vsub.f32 %v62, %v1273
    %v1275 = vand.u32 %v1274, 4294901760
    %v1276 = vsub.f32 %v1274, %v1275
    %v1277 = vand.u32 %v1276, 4294901760
    %1278 = vmatpush1.msra.mxu0 %v1277
    %1279 = vmatprep.subr.mxu0 0.0
    %v1280 = vand.u32 %v63, 4294901760
    %v1281 = vsub.f32 %v63, %v1280
    %v1282 = vand.u32 %v1281, 4294901760
    %v1283 = vsub.f32 %v1281, %v1282
    %v1284 = vand.u32 %v1283, 4294901760
    %1285 = vmatpush1.msra.mxu0 %v1284
    %1286 = vmatprep.subr.mxu0 0.0
    %v1287 = vand.u32 %v64, 4294901760
    %v1288 = vsub.f32 %v64, %v1287
    %v1289 = vand.u32 %v1288, 4294901760
    %v1290 = vsub.f32 %v1288, %v1289
    %v1291 = vand.u32 %v1290, 4294901760
    %1292 = vmatpush1.msra.mxu0 %v1291
    %1293 = vmatprep.subr.mxu0 0.0
    %v1294 = vand.u32 %v65, 4294901760
    %v1295 = vsub.f32 %v65, %v1294
    %v1296 = vand.u32 %v1295, 4294901760
    %v1297 = vsub.f32 %v1295, %v1296
    %v1298 = vand.u32 %v1297, 4294901760
    %1299 = vmatpush1.msra.mxu0 %v1298
    %1300 = vmatprep.subr.mxu0 0.0
    %v1301 = vand.u32 %v66, 4294901760
    %v1302 = vsub.f32 %v66, %v1301
    %v1303 = vand.u32 %v1302, 4294901760
    %v1304 = vsub.f32 %v1302, %v1303
    %v1305 = vand.u32 %v1304, 4294901760
    %1306 = vmatpush1.msra.mxu0 %v1305
    %1307 = vmatprep.subr.mxu0 0.0
    %v1308 = vand.u32 %v67, 4294901760
    %v1309 = vsub.f32 %v67, %v1308
    %v1310 = vand.u32 %v1309, 4294901760
    %v1311 = vsub.f32 %v1309, %v1310
    %v1312 = vand.u32 %v1311, 4294901760
    %1313 = vmatpush1.msra.mxu0 %v1312
    %1314 = vmatprep.subr.mxu0 0.0
    %v1315 = vand.u32 %v68, 4294901760
    %v1316 = vsub.f32 %v68, %v1315
    %v1317 = vand.u32 %v1316, 4294901760
    %v1318 = vsub.f32 %v1316, %v1317
    %v1319 = vand.u32 %v1318, 4294901760
    %1320 = vmatpush1.msra.mxu0 %v1319
    %1321 = vmatprep.subr.mxu0 0.0
    %v1322 = vand.u32 %v69, 4294901760
    %v1323 = vsub.f32 %v69, %v1322
    %v1324 = vand.u32 %v1323, 4294901760
    %v1325 = vsub.f32 %v1323, %v1324
    %v1326 = vand.u32 %v1325, 4294901760
    %1327 = vmatpush1.msra.mxu0 %v1326
    %1328 = vmatprep.subr.mxu0 0.0
    %v1329 = vand.u32 %v70, 4294901760
    %v1330 = vsub.f32 %v70, %v1329
    %v1331 = vand.u32 %v1330, 4294901760
    %v1332 = vsub.f32 %v1330, %v1331
    %v1333 = vand.u32 %v1332, 4294901760
    %1334 = vmatpush1.msra.mxu0 %v1333
    %1335 = vmatprep.subr.mxu0 0.0
    %v1336 = vand.u32 %v71, 4294901760
    %v1337 = vsub.f32 %v71, %v1336
    %v1338 = vand.u32 %v1337, 4294901760
    %v1339 = vsub.f32 %v1337, %v1338
    %v1340 = vand.u32 %v1339, 4294901760
    %1341 = vmatpush1.msra.mxu0 %v1340
    %1342 = vmatprep.subr.mxu0 0.0
    %v1343 = vand.u32 %v72, 4294901760
    %v1344 = vsub.f32 %v72, %v1343
    %v1345 = vand.u32 %v1344, 4294901760
    %v1346 = vsub.f32 %v1344, %v1345
    %v1347 = vand.u32 %v1346, 4294901760
    %1348 = vmatpush1.msra.mxu0 %v1347
    %1349 = vmatprep.subr.mxu0 0.0
    %v1350 = vand.u32 %v73, 4294901760
    %v1351 = vsub.f32 %v73, %v1350
    %v1352 = vand.u32 %v1351, 4294901760
    %v1353 = vsub.f32 %v1351, %v1352
    %v1354 = vand.u32 %v1353, 4294901760
    %1355 = vmatpush1.msra.mxu0 %v1354
    %1356 = vmatprep.subr.mxu0 0.0
    %v1357 = vand.u32 %v74, 4294901760
    %v1358 = vsub.f32 %v74, %v1357
    %v1359 = vand.u32 %v1358, 4294901760
    %v1360 = vsub.f32 %v1358, %v1359
    %v1361 = vand.u32 %v1360, 4294901760
    %1362 = vmatpush1.msra.mxu0 %v1361
    %1363 = vmatprep.subr.mxu0 0.0
    %v1364 = vand.u32 %v75, 4294901760
    %v1365 = vsub.f32 %v75, %v1364
    %v1366 = vand.u32 %v1365, 4294901760
    %v1367 = vsub.f32 %v1365, %v1366
    %v1368 = vand.u32 %v1367, 4294901760
    %1369 = vmatpush1.msra.mxu0 %v1368
    %1370 = vmatprep.subr.mxu0 0.0
    %v1371 = vand.u32 %v76, 4294901760
    %v1372 = vsub.f32 %v76, %v1371
    %v1373 = vand.u32 %v1372, 4294901760
    %v1374 = vsub.f32 %v1372, %v1373
    %v1375 = vand.u32 %v1374, 4294901760
    %1376 = vmatpush1.msra.mxu0 %v1375
    %1377 = vmatprep.subr.mxu0 0.0
    %v1378 = vand.u32 %v77, 4294901760
    %v1379 = vsub.f32 %v77, %v1378
    %v1380 = vand.u32 %v1379, 4294901760
    %v1381 = vsub.f32 %v1379, %v1380
    %v1382 = vand.u32 %v1381, 4294901760
    %1383 = vmatpush1.msra.mxu0 %v1382
    %v1384 = vand.u32 %v160, 4294901760
    %1385 = vmatprep.mubr.f32.mxu0 %v1384
    %v1386 = vand.u32 %v158, 4294901760
    %1387 = vmatmul.mubr.f32.gmra.mrb[0].mxu0 %v1386
    %v1388 = vpop.f32.mrb[0].mxu0
    %v1389 = vadd.f32 %v1157, %v1388
    %v1390 = vpop.f32.mrb[0].mxu0
    %1391 = vdwg.mxu0
    %1392 = vmatprep.subr.mxu0 0.0
    %v1393 = vand.u32 %v46, 4294901760
    %v1394 = vsub.f32 %v46, %v1393
    %1395 = vmatpush1.msra.mxu0 %v1394
    %1396 = vmatprep.subr.mxu0 0.0
    %v1397 = vand.u32 %v47, 4294901760
    %v1398 = vsub.f32 %v47, %v1397
    %1399 = vmatpush1.msra.mxu0 %v1398
    %1400 = vmatprep.subr.mxu0 0.0
    %v1401 = vand.u32 %v48, 4294901760
    %v1402 = vsub.f32 %v48, %v1401
    %1403 = vmatpush1.msra.mxu0 %v1402
    %1404 = vmatprep.subr.mxu0 0.0
    %v1405 = vand.u32 %v49, 4294901760
    %v1406 = vsub.f32 %v49, %v1405
    %1407 = vmatpush1.msra.mxu0 %v1406
    %1408 = vmatprep.subr.mxu0 0.0
    %v1409 = vand.u32 %v50, 4294901760
    %v1410 = vsub.f32 %v50, %v1409
    %1411 = vmatpush1.msra.mxu0 %v1410
    %1412 = vmatprep.subr.mxu0 0.0
    %v1413 = vand.u32 %v51, 4294901760
    %v1414 = vsub.f32 %v51, %v1413
    %1415 = vmatpush1.msra.mxu0 %v1414
    %1416 = vmatprep.subr.mxu0 0.0
    %v1417 = vand.u32 %v52, 4294901760
    %v1418 = vsub.f32 %v52, %v1417
    %1419 = vmatpush1.msra.mxu0 %v1418
    %1420 = vmatprep.subr.mxu0 0.0
    %v1421 = vand.u32 %v53, 4294901760
    %v1422 = vsub.f32 %v53, %v1421
    %1423 = vmatpush1.msra.mxu0 %v1422
    %1424 = vmatprep.subr.mxu0 0.0
    %v1425 = vand.u32 %v54, 4294901760
    %v1426 = vsub.f32 %v54, %v1425
    %1427 = vmatpush1.msra.mxu0 %v1426
    %1428 = vmatprep.subr.mxu0 0.0
    %v1429 = vand.u32 %v55, 4294901760
    %v1430 = vsub.f32 %v55, %v1429
    %1431 = vmatpush1.msra.mxu0 %v1430
    %1432 = vmatprep.subr.mxu0 0.0
    %v1433 = vand.u32 %v56, 4294901760
    %v1434 = vsub.f32 %v56, %v1433
    %1435 = vmatpush1.msra.mxu0 %v1434
    %1436 = vmatprep.subr.mxu0 0.0
    %v1437 = vand.u32 %v57, 4294901760
    %v1438 = vsub.f32 %v57, %v1437
    %1439 = vmatpush1.msra.mxu0 %v1438
    %1440 = vmatprep.subr.mxu0 0.0
    %v1441 = vand.u32 %v58, 4294901760
    %v1442 = vsub.f32 %v58, %v1441
    %1443 = vmatpush1.msra.mxu0 %v1442
    %1444 = vmatprep.subr.mxu0 0.0
    %v1445 = vand.u32 %v59, 4294901760
    %v1446 = vsub.f32 %v59, %v1445
    %1447 = vmatpush1.msra.mxu0 %v1446
    %1448 = vmatprep.subr.mxu0 0.0
    %v1449 = vand.u32 %v60, 4294901760
    %v1450 = vsub.f32 %v60, %v1449
    %1451 = vmatpush1.msra.mxu0 %v1450
    %1452 = vmatprep.subr.mxu0 0.0
    %v1453 = vand.u32 %v61, 4294901760
    %v1454 = vsub.f32 %v61, %v1453
    %1455 = vmatpush1.msra.mxu0 %v1454
    %1456 = vmatprep.subr.mxu0 0.0
    %v1457 = vand.u32 %v62, 4294901760
    %v1458 = vsub.f32 %v62, %v1457
    %1459 = vmatpush1.msra.mxu0 %v1458
    %1460 = vmatprep.subr.mxu0 0.0
    %v1461 = vand.u32 %v63, 4294901760
    %v1462 = vsub.f32 %v63, %v1461
    %1463 = vmatpush1.msra.mxu0 %v1462
    %1464 = vmatprep.subr.mxu0 0.0
    %v1465 = vand.u32 %v64, 4294901760
    %v1466 = vsub.f32 %v64, %v1465
    %1467 = vmatpush1.msra.mxu0 %v1466
    %1468 = vmatprep.subr.mxu0 0.0
    %v1469 = vand.u32 %v65, 4294901760
    %v1470 = vsub.f32 %v65, %v1469
    %1471 = vmatpush1.msra.mxu0 %v1470
    %1472 = vmatprep.subr.mxu0 0.0
    %v1473 = vand.u32 %v66, 4294901760
    %v1474 = vsub.f32 %v66, %v1473
    %1475 = vmatpush1.msra.mxu0 %v1474
    %1476 = vmatprep.subr.mxu0 0.0
    %v1477 = vand.u32 %v67, 4294901760
    %v1478 = vsub.f32 %v67, %v1477
    %1479 = vmatpush1.msra.mxu0 %v1478
    %1480 = vmatprep.subr.mxu0 0.0
    %v1481 = vand.u32 %v68, 4294901760
    %v1482 = vsub.f32 %v68, %v1481
    %1483 = vmatpush1.msra.mxu0 %v1482
    %1484 = vmatprep.subr.mxu0 0.0
    %v1485 = vand.u32 %v69, 4294901760
    %v1486 = vsub.f32 %v69, %v1485
    %1487 = vmatpush1.msra.mxu0 %v1486
    %1488 = vmatprep.subr.mxu0 0.0
    %v1489 = vand.u32 %v70, 4294901760
    %v1490 = vsub.f32 %v70, %v1489
    %1491 = vmatpush1.msra.mxu0 %v1490
    %1492 = vmatprep.subr.mxu0 0.0
    %v1493 = vand.u32 %v71, 4294901760
    %v1494 = vsub.f32 %v71, %v1493
    %1495 = vmatpush1.msra.mxu0 %v1494
    %1496 = vmatprep.subr.mxu0 0.0
    %v1497 = vand.u32 %v72, 4294901760
    %v1498 = vsub.f32 %v72, %v1497
    %1499 = vmatpush1.msra.mxu0 %v1498
    %1500 = vmatprep.subr.mxu0 0.0
    %v1501 = vand.u32 %v73, 4294901760
    %v1502 = vsub.f32 %v73, %v1501
    %1503 = vmatpush1.msra.mxu0 %v1502
    %1504 = vmatprep.subr.mxu0 0.0
    %v1505 = vand.u32 %v74, 4294901760
    %v1506 = vsub.f32 %v74, %v1505
    %1507 = vmatpush1.msra.mxu0 %v1506
    %1508 = vmatprep.subr.mxu0 0.0
    %v1509 = vand.u32 %v75, 4294901760
    %v1510 = vsub.f32 %v75, %v1509
    %1511 = vmatpush1.msra.mxu0 %v1510
    %1512 = vmatprep.subr.mxu0 0.0
    %v1513 = vand.u32 %v76, 4294901760
    %v1514 = vsub.f32 %v76, %v1513
    %1515 = vmatpush1.msra.mxu0 %v1514
    %1516 = vmatprep.subr.mxu0 0.0
    %v1517 = vand.u32 %v77, 4294901760
    %v1518 = vsub.f32 %v77, %v1517
    %1519 = vmatpush1.msra.mxu0 %v1518
    %v1520 = vand.u32 %v160, 4294901760
    %v1521 = vsub.f32 %v160, %v1520
    %1522 = vmatprep.mubr.f32.mxu0 %v1521
    %v1523 = vand.u32 %v158, 4294901760
    %v1524 = vsub.f32 %v158, %v1523
    %1525 = vmatmul.mubr.f32.gmra.mrb[0].mxu0 %v1524
    %v1526 = vpop.f32.mrb[0].mxu0
    %v1527 = vadd.f32 %v1389, %v1526
    %v1528 = vpop.f32.mrb[0].mxu0
    %1529 = vdwg.mxu0
    %1530 = vmatprep.subr.mxu0 0.0
    %v1531 = vand.u32 %v46, 4294901760
    %1532 = vmatpush1.msra.mxu0 %v1531
    %1533 = vmatprep.subr.mxu0 0.0
    %v1534 = vand.u32 %v47, 4294901760
    %1535 = vmatpush1.msra.mxu0 %v1534
    %1536 = vmatprep.subr.mxu0 0.0
    %v1537 = vand.u32 %v48, 4294901760
    %1538 = vmatpush1.msra.mxu0 %v1537
    %1539 = vmatprep.subr.mxu0 0.0
    %v1540 = vand.u32 %v49, 4294901760
    %1541 = vmatpush1.msra.mxu0 %v1540
    %1542 = vmatprep.subr.mxu0 0.0
    %v1543 = vand.u32 %v50, 4294901760
    %1544 = vmatpush1.msra.mxu0 %v1543
    %1545 = vmatprep.subr.mxu0 0.0
    %v1546 = vand.u32 %v51, 4294901760
    %1547 = vmatpush1.msra.mxu0 %v1546
    %1548 = vmatprep.subr.mxu0 0.0
    %v1549 = vand.u32 %v52, 4294901760
    %1550 = vmatpush1.msra.mxu0 %v1549
    %1551 = vmatprep.subr.mxu0 0.0
    %v1552 = vand.u32 %v53, 4294901760
    %1553 = vmatpush1.msra.mxu0 %v1552
    %1554 = vmatprep.subr.mxu0 0.0
    %v1555 = vand.u32 %v54, 4294901760
    %1556 = vmatpush1.msra.mxu0 %v1555
    %1557 = vmatprep.subr.mxu0 0.0
    %v1558 = vand.u32 %v55, 4294901760
    %1559 = vmatpush1.msra.mxu0 %v1558
    %1560 = vmatprep.subr.mxu0 0.0
    %v1561 = vand.u32 %v56, 4294901760
    %1562 = vmatpush1.msra.mxu0 %v1561
    %1563 = vmatprep.subr.mxu0 0.0
    %v1564 = vand.u32 %v57, 4294901760
    %1565 = vmatpush1.msra.mxu0 %v1564
    %1566 = vmatprep.subr.mxu0 0.0
    %v1567 = vand.u32 %v58, 4294901760
    %1568 = vmatpush1.msra.mxu0 %v1567
    %1569 = vmatprep.subr.mxu0 0.0
    %v1570 = vand.u32 %v59, 4294901760
    %1571 = vmatpush1.msra.mxu0 %v1570
    %1572 = vmatprep.subr.mxu0 0.0
    %v1573 = vand.u32 %v60, 4294901760
    %1574 = vmatpush1.msra.mxu0 %v1573
    %1575 = vmatprep.subr.mxu0 0.0
    %v1576 = vand.u32 %v61, 4294901760
    %1577 = vmatpush1.msra.mxu0 %v1576
    %1578 = vmatprep.subr.mxu0 0.0
    %v1579 = vand.u32 %v62, 4294901760
    %1580 = vmatpush1.msra.mxu0 %v1579
    %1581 = vmatprep.subr.mxu0 0.0
    %v1582 = vand.u32 %v63, 4294901760
    %1583 = vmatpush1.msra.mxu0 %v1582
    %1584 = vmatprep.subr.mxu0 0.0
    %v1585 = vand.u32 %v64, 4294901760
    %1586 = vmatpush1.msra.mxu0 %v1585
    %1587 = vmatprep.subr.mxu0 0.0
    %v1588 = vand.u32 %v65, 4294901760
    %1589 = vmatpush1.msra.mxu0 %v1588
    %1590 = vmatprep.subr.mxu0 0.0
    %v1591 = vand.u32 %v66, 4294901760
    %1592 = vmatpush1.msra.mxu0 %v1591
    %1593 = vmatprep.subr.mxu0 0.0
    %v1594 = vand.u32 %v67, 4294901760
    %1595 = vmatpush1.msra.mxu0 %v1594
    %1596 = vmatprep.subr.mxu0 0.0
    %v1597 = vand.u32 %v68, 4294901760
    %1598 = vmatpush1.msra.mxu0 %v1597
    %1599 = vmatprep.subr.mxu0 0.0
    %v1600 = vand.u32 %v69, 4294901760
    %1601 = vmatpush1.msra.mxu0 %v1600
    %1602 = vmatprep.subr.mxu0 0.0
    %v1603 = vand.u32 %v70, 4294901760
    %1604 = vmatpush1.msra.mxu0 %v1603
    %1605 = vmatprep.subr.mxu0 0.0
    %v1606 = vand.u32 %v71, 4294901760
    %1607 = vmatpush1.msra.mxu0 %v1606
    %1608 = vmatprep.subr.mxu0 0.0
    %v1609 = vand.u32 %v72, 4294901760
    %1610 = vmatpush1.msra.mxu0 %v1609
    %1611 = vmatprep.subr.mxu0 0.0
    %v1612 = vand.u32 %v73, 4294901760
    %1613 = vmatpush1.msra.mxu0 %v1612
    %1614 = vmatprep.subr.mxu0 0.0
    %v1615 = vand.u32 %v74, 4294901760
    %1616 = vmatpush1.msra.mxu0 %v1615
    %1617 = vmatprep.subr.mxu0 0.0
    %v1618 = vand.u32 %v75, 4294901760
    %1619 = vmatpush1.msra.mxu0 %v1618
    %1620 = vmatprep.subr.mxu0 0.0
    %v1621 = vand.u32 %v76, 4294901760
    %1622 = vmatpush1.msra.mxu0 %v1621
    %1623 = vmatprep.subr.mxu0 0.0
    %v1624 = vand.u32 %v77, 4294901760
    %1625 = vmatpush1.msra.mxu0 %v1624
    %v1626 = vand.u32 %v160, 4294901760
    %v1627 = vsub.f32 %v160, %v1626
    %v1628 = vand.u32 %v1627, 4294901760
    %1629 = vmatprep.mubr.f32.mxu0 %v1628
    %v1630 = vand.u32 %v158, 4294901760
    %v1631 = vsub.f32 %v158, %v1630
    %v1632 = vand.u32 %v1631, 4294901760
    %1633 = vmatmul.mubr.f32.gmra.mrb[0].mxu0 %v1632
    %v1634 = vpop.f32.mrb[0].mxu0
    %v1635 = vadd.f32 %v1527, %v1634
    %v1636 = vpop.f32.mrb[0].mxu0
    %1637 = vdwg.mxu0
    %1638 = vmatprep.subr.mxu0 0.0
    %v1639 = vand.u32 %v46, 4294901760
    %v1640 = vsub.f32 %v46, %v1639
    %v1641 = vand.u32 %v1640, 4294901760
    %1642 = vmatpush1.msra.mxu0 %v1641
    %1643 = vmatprep.subr.mxu0 0.0
    %v1644 = vand.u32 %v47, 4294901760
    %v1645 = vsub.f32 %v47, %v1644
    %v1646 = vand.u32 %v1645, 4294901760
    %1647 = vmatpush1.msra.mxu0 %v1646
    %1648 = vmatprep.subr.mxu0 0.0
    %v1649 = vand.u32 %v48, 4294901760
    %v1650 = vsub.f32 %v48, %v1649
    %v1651 = vand.u32 %v1650, 4294901760
    %1652 = vmatpush1.msra.mxu0 %v1651
    %1653 = vmatprep.subr.mxu0 0.0
    %v1654 = vand.u32 %v49, 4294901760
    %v1655 = vsub.f32 %v49, %v1654
    %v1656 = vand.u32 %v1655, 4294901760
    %1657 = vmatpush1.msra.mxu0 %v1656
    %1658 = vmatprep.subr.mxu0 0.0
    %v1659 = vand.u32 %v50, 4294901760
    %v1660 = vsub.f32 %v50, %v1659
    %v1661 = vand.u32 %v1660, 4294901760
    %1662 = vmatpush1.msra.mxu0 %v1661
    %1663 = vmatprep.subr.mxu0 0.0
    %v1664 = vand.u32 %v51, 4294901760
    %v1665 = vsub.f32 %v51, %v1664
    %v1666 = vand.u32 %v1665, 4294901760
    %1667 = vmatpush1.msra.mxu0 %v1666
    %1668 = vmatprep.subr.mxu0 0.0
    %v1669 = vand.u32 %v52, 4294901760
    %v1670 = vsub.f32 %v52, %v1669
    %v1671 = vand.u32 %v1670, 4294901760
    %1672 = vmatpush1.msra.mxu0 %v1671
    %1673 = vmatprep.subr.mxu0 0.0
    %v1674 = vand.u32 %v53, 4294901760
    %v1675 = vsub.f32 %v53, %v1674
    %v1676 = vand.u32 %v1675, 4294901760
    %1677 = vmatpush1.msra.mxu0 %v1676
    %1678 = vmatprep.subr.mxu0 0.0
    %v1679 = vand.u32 %v54, 4294901760
    %v1680 = vsub.f32 %v54, %v1679
    %v1681 = vand.u32 %v1680, 4294901760
    %1682 = vmatpush1.msra.mxu0 %v1681
    %1683 = vmatprep.subr.mxu0 0.0
    %v1684 = vand.u32 %v55, 4294901760
    %v1685 = vsub.f32 %v55, %v1684
    %v1686 = vand.u32 %v1685, 4294901760
    %1687 = vmatpush1.msra.mxu0 %v1686
    %1688 = vmatprep.subr.mxu0 0.0
    %v1689 = vand.u32 %v56, 4294901760
    %v1690 = vsub.f32 %v56, %v1689
    %v1691 = vand.u32 %v1690, 4294901760
    %1692 = vmatpush1.msra.mxu0 %v1691
    %1693 = vmatprep.subr.mxu0 0.0
    %v1694 = vand.u32 %v57, 4294901760
    %v1695 = vsub.f32 %v57, %v1694
    %v1696 = vand.u32 %v1695, 4294901760
    %1697 = vmatpush1.msra.mxu0 %v1696
    %1698 = vmatprep.subr.mxu0 0.0
    %v1699 = vand.u32 %v58, 4294901760
    %v1700 = vsub.f32 %v58, %v1699
    %v1701 = vand.u32 %v1700, 4294901760
    %1702 = vmatpush1.msra.mxu0 %v1701
    %1703 = vmatprep.subr.mxu0 0.0
    %v1704 = vand.u32 %v59, 4294901760
    %v1705 = vsub.f32 %v59, %v1704
    %v1706 = vand.u32 %v1705, 4294901760
    %1707 = vmatpush1.msra.mxu0 %v1706
    %1708 = vmatprep.subr.mxu0 0.0
    %v1709 = vand.u32 %v60, 4294901760
    %v1710 = vsub.f32 %v60, %v1709
    %v1711 = vand.u32 %v1710, 4294901760
    %1712 = vmatpush1.msra.mxu0 %v1711
    %1713 = vmatprep.subr.mxu0 0.0
    %v1714 = vand.u32 %v61, 4294901760
    %v1715 = vsub.f32 %v61, %v1714
    %v1716 = vand.u32 %v1715, 4294901760
    %1717 = vmatpush1.msra.mxu0 %v1716
    %1718 = vmatprep.subr.mxu0 0.0
    %v1719 = vand.u32 %v62, 4294901760
    %v1720 = vsub.f32 %v62, %v1719
    %v1721 = vand.u32 %v1720, 4294901760
    %1722 = vmatpush1.msra.mxu0 %v1721
    %1723 = vmatprep.subr.mxu0 0.0
    %v1724 = vand.u32 %v63, 4294901760
    %v1725 = vsub.f32 %v63, %v1724
    %v1726 = vand.u32 %v1725, 4294901760
    %1727 = vmatpush1.msra.mxu0 %v1726
    %1728 = vmatprep.subr.mxu0 0.0
    %v1729 = vand.u32 %v64, 4294901760
    %v1730 = vsub.f32 %v64, %v1729
    %v1731 = vand.u32 %v1730, 4294901760
    %1732 = vmatpush1.msra.mxu0 %v1731
    %1733 = vmatprep.subr.mxu0 0.0
    %v1734 = vand.u32 %v65, 4294901760
    %v1735 = vsub.f32 %v65, %v1734
    %v1736 = vand.u32 %v1735, 4294901760
    %1737 = vmatpush1.msra.mxu0 %v1736
    %1738 = vmatprep.subr.mxu0 0.0
    %v1739 = vand.u32 %v66, 4294901760
    %v1740 = vsub.f32 %v66, %v1739
    %v1741 = vand.u32 %v1740, 4294901760
    %1742 = vmatpush1.msra.mxu0 %v1741
    %1743 = vmatprep.subr.mxu0 0.0
    %v1744 = vand.u32 %v67, 4294901760
    %v1745 = vsub.f32 %v67, %v1744
    %v1746 = vand.u32 %v1745, 4294901760
    %1747 = vmatpush1.msra.mxu0 %v1746
    %1748 = vmatprep.subr.mxu0 0.0
    %v1749 = vand.u32 %v68, 4294901760
    %v1750 = vsub.f32 %v68, %v1749
    %v1751 = vand.u32 %v1750, 4294901760
    %1752 = vmatpush1.msra.mxu0 %v1751
    %1753 = vmatprep.subr.mxu0 0.0
    %v1754 = vand.u32 %v69, 4294901760
    %v1755 = vsub.f32 %v69, %v1754
    %v1756 = vand.u32 %v1755, 4294901760
    %1757 = vmatpush1.msra.mxu0 %v1756
    %1758 = vmatprep.subr.mxu0 0.0
    %v1759 = vand.u32 %v70, 4294901760
    %v1760 = vsub.f32 %v70, %v1759
    %v1761 = vand.u32 %v1760, 4294901760
    %1762 = vmatpush1.msra.mxu0 %v1761
    %1763 = vmatprep.subr.mxu0 0.0
    %v1764 = vand.u32 %v71, 4294901760
    %v1765 = vsub.f32 %v71, %v1764
    %v1766 = vand.u32 %v1765, 4294901760
    %1767 = vmatpush1.msra.mxu0 %v1766
    %1768 = vmatprep.subr.mxu0 0.0
    %v1769 = vand.u32 %v72, 4294901760
    %v1770 = vsub.f32 %v72, %v1769
    %v1771 = vand.u32 %v1770, 4294901760
    %1772 = vmatpush1.msra.mxu0 %v1771
    %1773 = vmatprep.subr.mxu0 0.0
    %v1774 = vand.u32 %v73, 4294901760
    %v1775 = vsub.f32 %v73, %v1774
    %v1776 = vand.u32 %v1775, 4294901760
    %1777 = vmatpush1.msra.mxu0 %v1776
    %1778 = vmatprep.subr.mxu0 0.0
    %v1779 = vand.u32 %v74, 4294901760
    %v1780 = vsub.f32 %v74, %v1779
    %v1781 = vand.u32 %v1780, 4294901760
    %1782 = vmatpush1.msra.mxu0 %v1781
    %1783 = vmatprep.subr.mxu0 0.0
    %v1784 = vand.u32 %v75, 4294901760
    %v1785 = vsub.f32 %v75, %v1784
    %v1786 = vand.u32 %v1785, 4294901760
    %1787 = vmatpush1.msra.mxu0 %v1786
    %1788 = vmatprep.subr.mxu0 0.0
    %v1789 = vand.u32 %v76, 4294901760
    %v1790 = vsub.f32 %v76, %v1789
    %v1791 = vand.u32 %v1790, 4294901760
    %1792 = vmatpush1.msra.mxu0 %v1791
    %1793 = vmatprep.subr.mxu0 0.0
    %v1794 = vand.u32 %v77, 4294901760
    %v1795 = vsub.f32 %v77, %v1794
    %v1796 = vand.u32 %v1795, 4294901760
    %1797 = vmatpush1.msra.mxu0 %v1796
    %v1798 = vand.u32 %v160, 4294901760
    %1799 = vmatprep.mubr.f32.mxu0 %v1798
    %v1800 = vand.u32 %v158, 4294901760
    %1801 = vmatmul.mubr.f32.gmra.mrb[0].mxu0 %v1800
    %v1802 = vpop.f32.mrb[0].mxu0
    %v1803 = vadd.f32 %v1635, %v1802
    %v1804 = vpop.f32.mrb[0].mxu0
    %1805 = vdwg.mxu0
    %1806 = vmatprep.subr.mxu0 0.0
    %v1807 = vand.u32 %v46, 4294901760
    %1808 = vmatpush1.msra.mxu0 %v1807
    %1809 = vmatprep.subr.mxu0 0.0
    %v1810 = vand.u32 %v47, 4294901760
    %1811 = vmatpush1.msra.mxu0 %v1810
    %1812 = vmatprep.subr.mxu0 0.0
    %v1813 = vand.u32 %v48, 4294901760
    %1814 = vmatpush1.msra.mxu0 %v1813
    %1815 = vmatprep.subr.mxu0 0.0
    %v1816 = vand.u32 %v49, 4294901760
    %1817 = vmatpush1.msra.mxu0 %v1816
    %1818 = vmatprep.subr.mxu0 0.0
    %v1819 = vand.u32 %v50, 4294901760
    %1820 = vmatpush1.msra.mxu0 %v1819
    %1821 = vmatprep.subr.mxu0 0.0
    %v1822 = vand.u32 %v51, 4294901760
    %1823 = vmatpush1.msra.mxu0 %v1822
    %1824 = vmatprep.subr.mxu0 0.0
    %v1825 = vand.u32 %v52, 4294901760
    %1826 = vmatpush1.msra.mxu0 %v1825
    %1827 = vmatprep.subr.mxu0 0.0
    %v1828 = vand.u32 %v53, 4294901760
    %1829 = vmatpush1.msra.mxu0 %v1828
    %1830 = vmatprep.subr.mxu0 0.0
    %v1831 = vand.u32 %v54, 4294901760
    %1832 = vmatpush1.msra.mxu0 %v1831
    %1833 = vmatprep.subr.mxu0 0.0
    %v1834 = vand.u32 %v55, 4294901760
    %1835 = vmatpush1.msra.mxu0 %v1834
    %1836 = vmatprep.subr.mxu0 0.0
    %v1837 = vand.u32 %v56, 4294901760
    %1838 = vmatpush1.msra.mxu0 %v1837
    %1839 = vmatprep.subr.mxu0 0.0
    %v1840 = vand.u32 %v57, 4294901760
    %1841 = vmatpush1.msra.mxu0 %v1840
    %1842 = vmatprep.subr.mxu0 0.0
    %v1843 = vand.u32 %v58, 4294901760
    %1844 = vmatpush1.msra.mxu0 %v1843
    %1845 = vmatprep.subr.mxu0 0.0
    %v1846 = vand.u32 %v59, 4294901760
    %1847 = vmatpush1.msra.mxu0 %v1846
    %1848 = vmatprep.subr.mxu0 0.0
    %v1849 = vand.u32 %v60, 4294901760
    %1850 = vmatpush1.msra.mxu0 %v1849
    %1851 = vmatprep.subr.mxu0 0.0
    %v1852 = vand.u32 %v61, 4294901760
    %1853 = vmatpush1.msra.mxu0 %v1852
    %1854 = vmatprep.subr.mxu0 0.0
    %v1855 = vand.u32 %v62, 4294901760
    %1856 = vmatpush1.msra.mxu0 %v1855
    %1857 = vmatprep.subr.mxu0 0.0
    %v1858 = vand.u32 %v63, 4294901760
    %1859 = vmatpush1.msra.mxu0 %v1858
    %1860 = vmatprep.subr.mxu0 0.0
    %v1861 = vand.u32 %v64, 4294901760
    %1862 = vmatpush1.msra.mxu0 %v1861
    %1863 = vmatprep.subr.mxu0 0.0
    %v1864 = vand.u32 %v65, 4294901760
    %1865 = vmatpush1.msra.mxu0 %v1864
    %1866 = vmatprep.subr.mxu0 0.0
    %v1867 = vand.u32 %v66, 4294901760
    %1868 = vmatpush1.msra.mxu0 %v1867
    %1869 = vmatprep.subr.mxu0 0.0
    %v1870 = vand.u32 %v67, 4294901760
    %1871 = vmatpush1.msra.mxu0 %v1870
    %1872 = vmatprep.subr.mxu0 0.0
    %v1873 = vand.u32 %v68, 4294901760
    %1874 = vmatpush1.msra.mxu0 %v1873
    %1875 = vmatprep.subr.mxu0 0.0
    %v1876 = vand.u32 %v69, 4294901760
    %1877 = vmatpush1.msra.mxu0 %v1876
    %1878 = vmatprep.subr.mxu0 0.0
    %v1879 = vand.u32 %v70, 4294901760
    %1880 = vmatpush1.msra.mxu0 %v1879
    %1881 = vmatprep.subr.mxu0 0.0
    %v1882 = vand.u32 %v71, 4294901760
    %1883 = vmatpush1.msra.mxu0 %v1882
    %1884 = vmatprep.subr.mxu0 0.0
    %v1885 = vand.u32 %v72, 4294901760
    %1886 = vmatpush1.msra.mxu0 %v1885
    %1887 = vmatprep.subr.mxu0 0.0
    %v1888 = vand.u32 %v73, 4294901760
    %1889 = vmatpush1.msra.mxu0 %v1888
    %1890 = vmatprep.subr.mxu0 0.0
    %v1891 = vand.u32 %v74, 4294901760
    %1892 = vmatpush1.msra.mxu0 %v1891
    %1893 = vmatprep.subr.mxu0 0.0
    %v1894 = vand.u32 %v75, 4294901760
    %1895 = vmatpush1.msra.mxu0 %v1894
    %1896 = vmatprep.subr.mxu0 0.0
    %v1897 = vand.u32 %v76, 4294901760
    %1898 = vmatpush1.msra.mxu0 %v1897
    %1899 = vmatprep.subr.mxu0 0.0
    %v1900 = vand.u32 %v77, 4294901760
    %1901 = vmatpush1.msra.mxu0 %v1900
    %v1902 = vand.u32 %v160, 4294901760
    %1903 = vmatprep.mubr.f32.mxu0 %v1902
    %v1904 = vand.u32 %v158, 4294901760
    %1905 = vmatmul.mubr.f32.gmra.mrb[0].mxu0 %v1904
    %v1906 = vpop.f32.mrb[0].mxu0
    %v1907 = vadd.f32 %v1803, %v1906
    %v1908 = vpop.f32.mrb[0].mxu0
    %1909 = vdwg.mxu0
    %1910 = vmatprep.subr.mxu0 0.0
    %v1911 = vand.u32 %v78, 4294901760
    %1912 = vmatpush1.msra.mxu0 %v1911
    %1913 = vmatprep.subr.mxu0 0.0
    %v1914 = vand.u32 %v79, 4294901760
    %1915 = vmatpush1.msra.mxu0 %v1914
    %1916 = vmatprep.subr.mxu0 0.0
    %v1917 = vand.u32 %v80, 4294901760
    %1918 = vmatpush1.msra.mxu0 %v1917
    %1919 = vmatprep.subr.mxu0 0.0
    %v1920 = vand.u32 %v81, 4294901760
    %1921 = vmatpush1.msra.mxu0 %v1920
    %1922 = vmatprep.subr.mxu0 0.0
    %v1923 = vand.u32 %v82, 4294901760
    %1924 = vmatpush1.msra.mxu0 %v1923
    %1925 = vmatprep.subr.mxu0 0.0
    %v1926 = vand.u32 %v83, 4294901760
    %1927 = vmatpush1.msra.mxu0 %v1926
    %1928 = vmatprep.subr.mxu0 0.0
    %v1929 = vand.u32 %v84, 4294901760
    %1930 = vmatpush1.msra.mxu0 %v1929
    %1931 = vmatprep.subr.mxu0 0.0
    %v1932 = vand.u32 %v85, 4294901760
    %1933 = vmatpush1.msra.mxu0 %v1932
    %1934 = vmatprep.subr.mxu0 0.0
    %v1935 = vand.u32 %v86, 4294901760
    %1936 = vmatpush1.msra.mxu0 %v1935
    %1937 = vmatprep.subr.mxu0 0.0
    %v1938 = vand.u32 %v87, 4294901760
    %1939 = vmatpush1.msra.mxu0 %v1938
    %1940 = vmatprep.subr.mxu0 0.0
    %v1941 = vand.u32 %v88, 4294901760
    %1942 = vmatpush1.msra.mxu0 %v1941
    %1943 = vmatprep.subr.mxu0 0.0
    %v1944 = vand.u32 %v89, 4294901760
    %1945 = vmatpush1.msra.mxu0 %v1944
    %1946 = vmatprep.subr.mxu0 0.0
    %v1947 = vand.u32 %v90, 4294901760
    %1948 = vmatpush1.msra.mxu0 %v1947
    %1949 = vmatprep.subr.mxu0 0.0
    %v1950 = vand.u32 %v91, 4294901760
    %1951 = vmatpush1.msra.mxu0 %v1950
    %1952 = vmatprep.subr.mxu0 0.0
    %v1953 = vand.u32 %v92, 4294901760
    %1954 = vmatpush1.msra.mxu0 %v1953
    %1955 = vmatprep.subr.mxu0 0.0
    %v1956 = vand.u32 %v93, 4294901760
    %1957 = vmatpush1.msra.mxu0 %v1956
    %1958 = vmatprep.subr.mxu0 0.0
    %v1959 = vand.u32 %v94, 4294901760
    %1960 = vmatpush1.msra.mxu0 %v1959
    %1961 = vmatprep.subr.mxu0 0.0
    %v1962 = vand.u32 %v95, 4294901760
    %1963 = vmatpush1.msra.mxu0 %v1962
    %1964 = vmatprep.subr.mxu0 0.0
    %v1965 = vand.u32 %v96, 4294901760
    %1966 = vmatpush1.msra.mxu0 %v1965
    %1967 = vmatprep.subr.mxu0 0.0
    %v1968 = vand.u32 %v97, 4294901760
    %1969 = vmatpush1.msra.mxu0 %v1968
    %1970 = vmatprep.subr.mxu0 0.0
    %v1971 = vand.u32 %v98, 4294901760
    %1972 = vmatpush1.msra.mxu0 %v1971
    %1973 = vmatprep.subr.mxu0 0.0
    %v1974 = vand.u32 %v99, 4294901760
    %1975 = vmatpush1.msra.mxu0 %v1974
    %1976 = vmatprep.subr.mxu0 0.0
    %v1977 = vand.u32 %v100, 4294901760
    %1978 = vmatpush1.msra.mxu0 %v1977
    %1979 = vmatprep.subr.mxu0 0.0
    %v1980 = vand.u32 %v101, 4294901760
    %1981 = vmatpush1.msra.mxu0 %v1980
    %1982 = vmatprep.subr.mxu0 0.0
    %v1983 = vand.u32 %v102, 4294901760
    %1984 = vmatpush1.msra.mxu0 %v1983
    %1985 = vmatprep.subr.mxu0 0.0
    %v1986 = vand.u32 %v103, 4294901760
    %1987 = vmatpush1.msra.mxu0 %v1986
    %1988 = vmatprep.subr.mxu0 0.0
    %v1989 = vand.u32 %v104, 4294901760
    %1990 = vmatpush1.msra.mxu0 %v1989
    %1991 = vmatprep.subr.mxu0 0.0
    %v1992 = vand.u32 %v105, 4294901760
    %1993 = vmatpush1.msra.mxu0 %v1992
    %1994 = vmatprep.subr.mxu0 0.0
    %v1995 = vand.u32 %v106, 4294901760
    %1996 = vmatpush1.msra.mxu0 %v1995
    %1997 = vmatprep.subr.mxu0 0.0
    %v1998 = vand.u32 %v107, 4294901760
    %1999 = vmatpush1.msra.mxu0 %v1998
    %2000 = vmatprep.subr.mxu0 0.0
    %v2001 = vand.u32 %v108, 4294901760
    %2002 = vmatpush1.msra.mxu0 %v2001
    %2003 = vmatprep.subr.mxu0 0.0
    %v2004 = vand.u32 %v109, 4294901760
    %2005 = vmatpush1.msra.mxu0 %v2004
    %v2006 = vand.u32 %v176, 4294901760
    %v2007 = vsub.f32 %v176, %v2006
    %v2008 = vand.u32 %v2007, 4294901760
    %v2009 = vsub.f32 %v2007, %v2008
    %v2010 = vand.u32 %v2009, 4294901760
    %2011 = vmatprep.mubr.f32.mxu0 %v2010
    %v2012 = vand.u32 %v168, 4294901760
    %v2013 = vsub.f32 %v168, %v2012
    %v2014 = vand.u32 %v2013, 4294901760
    %v2015 = vsub.f32 %v2013, %v2014
    %v2016 = vand.u32 %v2015, 4294901760
    %2017 = vmatmul.mubr.f32.gmra.mrb[0].mxu0 %v2016
    %v2018 = vpop.f32.mrb[0].mxu0
    %v2019 = vadd.f32 %v1907, %v2018
    %v2020 = vpop.f32.mrb[0].mxu0
    %2021 = vdwg.mxu0
    %2022 = vmatprep.subr.mxu0 0.0
    %v2023 = vand.u32 %v78, 4294901760
    %v2024 = vsub.f32 %v78, %v2023
    %v2025 = vand.u32 %v2024, 4294901760
    %v2026 = vsub.f32 %v2024, %v2025
    %v2027 = vand.u32 %v2026, 4294901760
    %2028 = vmatpush1.msra.mxu0 %v2027
    %2029 = vmatprep.subr.mxu0 0.0
    %v2030 = vand.u32 %v79, 4294901760
    %v2031 = vsub.f32 %v79, %v2030
    %v2032 = vand.u32 %v2031, 4294901760
    %v2033 = vsub.f32 %v2031, %v2032
    %v2034 = vand.u32 %v2033, 4294901760
    %2035 = vmatpush1.msra.mxu0 %v2034
    %2036 = vmatprep.subr.mxu0 0.0
    %v2037 = vand.u32 %v80, 4294901760
    %v2038 = vsub.f32 %v80, %v2037
    %v2039 = vand.u32 %v2038, 4294901760
    %v2040 = vsub.f32 %v2038, %v2039
    %v2041 = vand.u32 %v2040, 4294901760
    %2042 = vmatpush1.msra.mxu0 %v2041
    %2043 = vmatprep.subr.mxu0 0.0
    %v2044 = vand.u32 %v81, 4294901760
    %v2045 = vsub.f32 %v81, %v2044
    %v2046 = vand.u32 %v2045, 4294901760
    %v2047 = vsub.f32 %v2045, %v2046
    %v2048 = vand.u32 %v2047, 4294901760
    %2049 = vmatpush1.msra.mxu0 %v2048
    %2050 = vmatprep.subr.mxu0 0.0
    %v2051 = vand.u32 %v82, 4294901760
    %v2052 = vsub.f32 %v82, %v2051
    %v2053 = vand.u32 %v2052, 4294901760
    %v2054 = vsub.f32 %v2052, %v2053
    %v2055 = vand.u32 %v2054, 4294901760
    %2056 = vmatpush1.msra.mxu0 %v2055
    %2057 = vmatprep.subr.mxu0 0.0
    %v2058 = vand.u32 %v83, 4294901760
    %v2059 = vsub.f32 %v83, %v2058
    %v2060 = vand.u32 %v2059, 4294901760
    %v2061 = vsub.f32 %v2059, %v2060
    %v2062 = vand.u32 %v2061, 4294901760
    %2063 = vmatpush1.msra.mxu0 %v2062
    %2064 = vmatprep.subr.mxu0 0.0
    %v2065 = vand.u32 %v84, 4294901760
    %v2066 = vsub.f32 %v84, %v2065
    %v2067 = vand.u32 %v2066, 4294901760
    %v2068 = vsub.f32 %v2066, %v2067
    %v2069 = vand.u32 %v2068, 4294901760
    %2070 = vmatpush1.msra.mxu0 %v2069
    %2071 = vmatprep.subr.mxu0 0.0
    %v2072 = vand.u32 %v85, 4294901760
    %v2073 = vsub.f32 %v85, %v2072
    %v2074 = vand.u32 %v2073, 4294901760
    %v2075 = vsub.f32 %v2073, %v2074
    %v2076 = vand.u32 %v2075, 4294901760
    %2077 = vmatpush1.msra.mxu0 %v2076
    %2078 = vmatprep.subr.mxu0 0.0
    %v2079 = vand.u32 %v86, 4294901760
    %v2080 = vsub.f32 %v86, %v2079
    %v2081 = vand.u32 %v2080, 4294901760
    %v2082 = vsub.f32 %v2080, %v2081
    %v2083 = vand.u32 %v2082, 4294901760
    %2084 = vmatpush1.msra.mxu0 %v2083
    %2085 = vmatprep.subr.mxu0 0.0
    %v2086 = vand.u32 %v87, 4294901760
    %v2087 = vsub.f32 %v87, %v2086
    %v2088 = vand.u32 %v2087, 4294901760
    %v2089 = vsub.f32 %v2087, %v2088
    %v2090 = vand.u32 %v2089, 4294901760
    %2091 = vmatpush1.msra.mxu0 %v2090
    %2092 = vmatprep.subr.mxu0 0.0
    %v2093 = vand.u32 %v88, 4294901760
    %v2094 = vsub.f32 %v88, %v2093
    %v2095 = vand.u32 %v2094, 4294901760
    %v2096 = vsub.f32 %v2094, %v2095
    %v2097 = vand.u32 %v2096, 4294901760
    %2098 = vmatpush1.msra.mxu0 %v2097
    %2099 = vmatprep.subr.mxu0 0.0
    %v2100 = vand.u32 %v89, 4294901760
    %v2101 = vsub.f32 %v89, %v2100
    %v2102 = vand.u32 %v2101, 4294901760
    %v2103 = vsub.f32 %v2101, %v2102
    %v2104 = vand.u32 %v2103, 4294901760
    %2105 = vmatpush1.msra.mxu0 %v2104
    %2106 = vmatprep.subr.mxu0 0.0
    %v2107 = vand.u32 %v90, 4294901760
    %v2108 = vsub.f32 %v90, %v2107
    %v2109 = vand.u32 %v2108, 4294901760
    %v2110 = vsub.f32 %v2108, %v2109
    %v2111 = vand.u32 %v2110, 4294901760
    %2112 = vmatpush1.msra.mxu0 %v2111
    %2113 = vmatprep.subr.mxu0 0.0
    %v2114 = vand.u32 %v91, 4294901760
    %v2115 = vsub.f32 %v91, %v2114
    %v2116 = vand.u32 %v2115, 4294901760
    %v2117 = vsub.f32 %v2115, %v2116
    %v2118 = vand.u32 %v2117, 4294901760
    %2119 = vmatpush1.msra.mxu0 %v2118
    %2120 = vmatprep.subr.mxu0 0.0
    %v2121 = vand.u32 %v92, 4294901760
    %v2122 = vsub.f32 %v92, %v2121
    %v2123 = vand.u32 %v2122, 4294901760
    %v2124 = vsub.f32 %v2122, %v2123
    %v2125 = vand.u32 %v2124, 4294901760
    %2126 = vmatpush1.msra.mxu0 %v2125
    %2127 = vmatprep.subr.mxu0 0.0
    %v2128 = vand.u32 %v93, 4294901760
    %v2129 = vsub.f32 %v93, %v2128
    %v2130 = vand.u32 %v2129, 4294901760
    %v2131 = vsub.f32 %v2129, %v2130
    %v2132 = vand.u32 %v2131, 4294901760
    %2133 = vmatpush1.msra.mxu0 %v2132
    %2134 = vmatprep.subr.mxu0 0.0
    %v2135 = vand.u32 %v94, 4294901760
    %v2136 = vsub.f32 %v94, %v2135
    %v2137 = vand.u32 %v2136, 4294901760
    %v2138 = vsub.f32 %v2136, %v2137
    %v2139 = vand.u32 %v2138, 4294901760
    %2140 = vmatpush1.msra.mxu0 %v2139
    %2141 = vmatprep.subr.mxu0 0.0
    %v2142 = vand.u32 %v95, 4294901760
    %v2143 = vsub.f32 %v95, %v2142
    %v2144 = vand.u32 %v2143, 4294901760
    %v2145 = vsub.f32 %v2143, %v2144
    %v2146 = vand.u32 %v2145, 4294901760
    %2147 = vmatpush1.msra.mxu0 %v2146
    %2148 = vmatprep.subr.mxu0 0.0
    %v2149 = vand.u32 %v96, 4294901760
    %v2150 = vsub.f32 %v96, %v2149
    %v2151 = vand.u32 %v2150, 4294901760
    %v2152 = vsub.f32 %v2150, %v2151
    %v2153 = vand.u32 %v2152, 4294901760
    %2154 = vmatpush1.msra.mxu0 %v2153
    %2155 = vmatprep.subr.mxu0 0.0
    %v2156 = vand.u32 %v97, 4294901760
    %v2157 = vsub.f32 %v97, %v2156
    %v2158 = vand.u32 %v2157, 4294901760
    %v2159 = vsub.f32 %v2157, %v2158
    %v2160 = vand.u32 %v2159, 4294901760
    %2161 = vmatpush1.msra.mxu0 %v2160
    %2162 = vmatprep.subr.mxu0 0.0
    %v2163 = vand.u32 %v98, 4294901760
    %v2164 = vsub.f32 %v98, %v2163
    %v2165 = vand.u32 %v2164, 4294901760
    %v2166 = vsub.f32 %v2164, %v2165
    %v2167 = vand.u32 %v2166, 4294901760
    %2168 = vmatpush1.msra.mxu0 %v2167
    %2169 = vmatprep.subr.mxu0 0.0
    %v2170 = vand.u32 %v99, 4294901760
    %v2171 = vsub.f32 %v99, %v2170
    %v2172 = vand.u32 %v2171, 4294901760
    %v2173 = vsub.f32 %v2171, %v2172
    %v2174 = vand.u32 %v2173, 4294901760
    %2175 = vmatpush1.msra.mxu0 %v2174
    %2176 = vmatprep.subr.mxu0 0.0
    %v2177 = vand.u32 %v100, 4294901760
    %v2178 = vsub.f32 %v100, %v2177
    %v2179 = vand.u32 %v2178, 4294901760
    %v2180 = vsub.f32 %v2178, %v2179
    %v2181 = vand.u32 %v2180, 4294901760
    %2182 = vmatpush1.msra.mxu0 %v2181
    %2183 = vmatprep.subr.mxu0 0.0
    %v2184 = vand.u32 %v101, 4294901760
    %v2185 = vsub.f32 %v101, %v2184
    %v2186 = vand.u32 %v2185, 4294901760
    %v2187 = vsub.f32 %v2185, %v2186
    %v2188 = vand.u32 %v2187, 4294901760
    %2189 = vmatpush1.msra.mxu0 %v2188
    %2190 = vmatprep.subr.mxu0 0.0
    %v2191 = vand.u32 %v102, 4294901760
    %v2192 = vsub.f32 %v102, %v2191
    %v2193 = vand.u32 %v2192, 4294901760
    %v2194 = vsub.f32 %v2192, %v2193
    %v2195 = vand.u32 %v2194, 4294901760
    %2196 = vmatpush1.msra.mxu0 %v2195
    %2197 = vmatprep.subr.mxu0 0.0
    %v2198 = vand.u32 %v103, 4294901760
    %v2199 = vsub.f32 %v103, %v2198
    %v2200 = vand.u32 %v2199, 4294901760
    %v2201 = vsub.f32 %v2199, %v2200
    %v2202 = vand.u32 %v2201, 4294901760
    %2203 = vmatpush1.msra.mxu0 %v2202
    %2204 = vmatprep.subr.mxu0 0.0
    %v2205 = vand.u32 %v104, 4294901760
    %v2206 = vsub.f32 %v104, %v2205
    %v2207 = vand.u32 %v2206, 4294901760
    %v2208 = vsub.f32 %v2206, %v2207
    %v2209 = vand.u32 %v2208, 4294901760
    %2210 = vmatpush1.msra.mxu0 %v2209
    %2211 = vmatprep.subr.mxu0 0.0
    %v2212 = vand.u32 %v105, 4294901760
    %v2213 = vsub.f32 %v105, %v2212
    %v2214 = vand.u32 %v2213, 4294901760
    %v2215 = vsub.f32 %v2213, %v2214
    %v2216 = vand.u32 %v2215, 4294901760
    %2217 = vmatpush1.msra.mxu0 %v2216
    %2218 = vmatprep.subr.mxu0 0.0
    %v2219 = vand.u32 %v106, 4294901760
    %v2220 = vsub.f32 %v106, %v2219
    %v2221 = vand.u32 %v2220, 4294901760
    %v2222 = vsub.f32 %v2220, %v2221
    %v2223 = vand.u32 %v2222, 4294901760
    %2224 = vmatpush1.msra.mxu0 %v2223
    %2225 = vmatprep.subr.mxu0 0.0
    %v2226 = vand.u32 %v107, 4294901760
    %v2227 = vsub.f32 %v107, %v2226
    %v2228 = vand.u32 %v2227, 4294901760
    %v2229 = vsub.f32 %v2227, %v2228
    %v2230 = vand.u32 %v2229, 4294901760
    %2231 = vmatpush1.msra.mxu0 %v2230
    %2232 = vmatprep.subr.mxu0 0.0
    %v2233 = vand.u32 %v108, 4294901760
    %v2234 = vsub.f32 %v108, %v2233
    %v2235 = vand.u32 %v2234, 4294901760
    %v2236 = vsub.f32 %v2234, %v2235
    %v2237 = vand.u32 %v2236, 4294901760
    %2238 = vmatpush1.msra.mxu0 %v2237
    %2239 = vmatprep.subr.mxu0 0.0
    %v2240 = vand.u32 %v109, 4294901760
    %v2241 = vsub.f32 %v109, %v2240
    %v2242 = vand.u32 %v2241, 4294901760
    %v2243 = vsub.f32 %v2241, %v2242
    %v2244 = vand.u32 %v2243, 4294901760
    %2245 = vmatpush1.msra.mxu0 %v2244
    %v2246 = vand.u32 %v176, 4294901760
    %2247 = vmatprep.mubr.f32.mxu0 %v2246
    %v2248 = vand.u32 %v168, 4294901760
    %2249 = vmatmul.mubr.f32.gmra.mrb[0].mxu0 %v2248
    %v2250 = vpop.f32.mrb[0].mxu0
    %v2251 = vadd.f32 %v2019, %v2250
    %v2252 = vpop.f32.mrb[0].mxu0
    %2253 = vdwg.mxu0
    %2254 = vmatprep.subr.mxu0 0.0
    %v2255 = vand.u32 %v78, 4294901760
    %v2256 = vsub.f32 %v78, %v2255
    %2257 = vmatpush1.msra.mxu0 %v2256
    %2258 = vmatprep.subr.mxu0 0.0
    %v2259 = vand.u32 %v79, 4294901760
    %v2260 = vsub.f32 %v79, %v2259
    %2261 = vmatpush1.msra.mxu0 %v2260
    %2262 = vmatprep.subr.mxu0 0.0
    %v2263 = vand.u32 %v80, 4294901760
    %v2264 = vsub.f32 %v80, %v2263
    %2265 = vmatpush1.msra.mxu0 %v2264
    %2266 = vmatprep.subr.mxu0 0.0
    %v2267 = vand.u32 %v81, 4294901760
    %v2268 = vsub.f32 %v81, %v2267
    %2269 = vmatpush1.msra.mxu0 %v2268
    %2270 = vmatprep.subr.mxu0 0.0
    %v2271 = vand.u32 %v82, 4294901760
    %v2272 = vsub.f32 %v82, %v2271
    %2273 = vmatpush1.msra.mxu0 %v2272
    %2274 = vmatprep.subr.mxu0 0.0
    %v2275 = vand.u32 %v83, 4294901760
    %v2276 = vsub.f32 %v83, %v2275
    %2277 = vmatpush1.msra.mxu0 %v2276
    %2278 = vmatprep.subr.mxu0 0.0
    %v2279 = vand.u32 %v84, 4294901760
    %v2280 = vsub.f32 %v84, %v2279
    %2281 = vmatpush1.msra.mxu0 %v2280
    %2282 = vmatprep.subr.mxu0 0.0
    %v2283 = vand.u32 %v85, 4294901760
    %v2284 = vsub.f32 %v85, %v2283
    %2285 = vmatpush1.msra.mxu0 %v2284
    %2286 = vmatprep.subr.mxu0 0.0
    %v2287 = vand.u32 %v86, 4294901760
    %v2288 = vsub.f32 %v86, %v2287
    %2289 = vmatpush1.msra.mxu0 %v2288
    %2290 = vmatprep.subr.mxu0 0.0
    %v2291 = vand.u32 %v87, 4294901760
    %v2292 = vsub.f32 %v87, %v2291
    %2293 = vmatpush1.msra.mxu0 %v2292
    %2294 = vmatprep.subr.mxu0 0.0
    %v2295 = vand.u32 %v88, 4294901760
    %v2296 = vsub.f32 %v88, %v2295
    %2297 = vmatpush1.msra.mxu0 %v2296
    %2298 = vmatprep.subr.mxu0 0.0
    %v2299 = vand.u32 %v89, 4294901760
    %v2300 = vsub.f32 %v89, %v2299
    %2301 = vmatpush1.msra.mxu0 %v2300
    %2302 = vmatprep.subr.mxu0 0.0
    %v2303 = vand.u32 %v90, 4294901760
    %v2304 = vsub.f32 %v90, %v2303
    %2305 = vmatpush1.msra.mxu0 %v2304
    %2306 = vmatprep.subr.mxu0 0.0
    %v2307 = vand.u32 %v91, 4294901760
    %v2308 = vsub.f32 %v91, %v2307
    %2309 = vmatpush1.msra.mxu0 %v2308
    %2310 = vmatprep.subr.mxu0 0.0
    %v2311 = vand.u32 %v92, 4294901760
    %v2312 = vsub.f32 %v92, %v2311
    %2313 = vmatpush1.msra.mxu0 %v2312
    %2314 = vmatprep.subr.mxu0 0.0
    %v2315 = vand.u32 %v93, 4294901760
    %v2316 = vsub.f32 %v93, %v2315
    %2317 = vmatpush1.msra.mxu0 %v2316
    %2318 = vmatprep.subr.mxu0 0.0
    %v2319 = vand.u32 %v94, 4294901760
    %v2320 = vsub.f32 %v94, %v2319
    %2321 = vmatpush1.msra.mxu0 %v2320
    %2322 = vmatprep.subr.mxu0 0.0
    %v2323 = vand.u32 %v95, 4294901760
    %v2324 = vsub.f32 %v95, %v2323
    %2325 = vmatpush1.msra.mxu0 %v2324
    %2326 = vmatprep.subr.mxu0 0.0
    %v2327 = vand.u32 %v96, 4294901760
    %v2328 = vsub.f32 %v96, %v2327
    %2329 = vmatpush1.msra.mxu0 %v2328
    %2330 = vmatprep.subr.mxu0 0.0
    %v2331 = vand.u32 %v97, 4294901760
    %v2332 = vsub.f32 %v97, %v2331
    %2333 = vmatpush1.msra.mxu0 %v2332
    %2334 = vmatprep.subr.mxu0 0.0
    %v2335 = vand.u32 %v98, 4294901760
    %v2336 = vsub.f32 %v98, %v2335
    %2337 = vmatpush1.msra.mxu0 %v2336
    %2338 = vmatprep.subr.mxu0 0.0
    %v2339 = vand.u32 %v99, 4294901760
    %v2340 = vsub.f32 %v99, %v2339
    %2341 = vmatpush1.msra.mxu0 %v2340
    %2342 = vmatprep.subr.mxu0 0.0
    %v2343 = vand.u32 %v100, 4294901760
    %v2344 = vsub.f32 %v100, %v2343
    %2345 = vmatpush1.msra.mxu0 %v2344
    %2346 = vmatprep.subr.mxu0 0.0
    %v2347 = vand.u32 %v101, 4294901760
    %v2348 = vsub.f32 %v101, %v2347
    %2349 = vmatpush1.msra.mxu0 %v2348
    %2350 = vmatprep.subr.mxu0 0.0
    %v2351 = vand.u32 %v102, 4294901760
    %v2352 = vsub.f32 %v102, %v2351
    %2353 = vmatpush1.msra.mxu0 %v2352
    %2354 = vmatprep.subr.mxu0 0.0
    %v2355 = vand.u32 %v103, 4294901760
    %v2356 = vsub.f32 %v103, %v2355
    %2357 = vmatpush1.msra.mxu0 %v2356
    %2358 = vmatprep.subr.mxu0 0.0
    %v2359 = vand.u32 %v104, 4294901760
    %v2360 = vsub.f32 %v104, %v2359
    %2361 = vmatpush1.msra.mxu0 %v2360
    %2362 = vmatprep.subr.mxu0 0.0
    %v2363 = vand.u32 %v105, 4294901760
    %v2364 = vsub.f32 %v105, %v2363
    %2365 = vmatpush1.msra.mxu0 %v2364
    %2366 = vmatprep.subr.mxu0 0.0
    %v2367 = vand.u32 %v106, 4294901760
    %v2368 = vsub.f32 %v106, %v2367
    %2369 = vmatpush1.msra.mxu0 %v2368
    %2370 = vmatprep.subr.mxu0 0.0
    %v2371 = vand.u32 %v107, 4294901760
    %v2372 = vsub.f32 %v107, %v2371
    %2373 = vmatpush1.msra.mxu0 %v2372
    %2374 = vmatprep.subr.mxu0 0.0
    %v2375 = vand.u32 %v108, 4294901760
    %v2376 = vsub.f32 %v108, %v2375
    %2377 = vmatpush1.msra.mxu0 %v2376
    %2378 = vmatprep.subr.mxu0 0.0
    %v2379 = vand.u32 %v109, 4294901760
    %v2380 = vsub.f32 %v109, %v2379
    %2381 = vmatpush1.msra.mxu0 %v2380
    %v2382 = vand.u32 %v176, 4294901760
    %v2383 = vsub.f32 %v176, %v2382
    %2384 = vmatprep.mubr.f32.mxu0 %v2383
    %v2385 = vand.u32 %v168, 4294901760
    %v2386 = vsub.f32 %v168, %v2385
    %2387 = vmatmul.mubr.f32.gmra.mrb[0].mxu0 %v2386
    %v2388 = vpop.f32.mrb[0].mxu0
    %v2389 = vadd.f32 %v2251, %v2388
    %v2390 = vpop.f32.mrb[0].mxu0
    %2391 = vdwg.mxu0
    %2392 = vmatprep.subr.mxu0 0.0
    %v2393 = vand.u32 %v78, 4294901760
    %2394 = vmatpush1.msra.mxu0 %v2393
    %2395 = vmatprep.subr.mxu0 0.0
    %v2396 = vand.u32 %v79, 4294901760
    %2397 = vmatpush1.msra.mxu0 %v2396
    %2398 = vmatprep.subr.mxu0 0.0
    %v2399 = vand.u32 %v80, 4294901760
    %2400 = vmatpush1.msra.mxu0 %v2399
    %2401 = vmatprep.subr.mxu0 0.0
    %v2402 = vand.u32 %v81, 4294901760
    %2403 = vmatpush1.msra.mxu0 %v2402
    %2404 = vmatprep.subr.mxu0 0.0
    %v2405 = vand.u32 %v82, 4294901760
    %2406 = vmatpush1.msra.mxu0 %v2405
    %2407 = vmatprep.subr.mxu0 0.0
    %v2408 = vand.u32 %v83, 4294901760
    %2409 = vmatpush1.msra.mxu0 %v2408
    %2410 = vmatprep.subr.mxu0 0.0
    %v2411 = vand.u32 %v84, 4294901760
    %2412 = vmatpush1.msra.mxu0 %v2411
    %2413 = vmatprep.subr.mxu0 0.0
    %v2414 = vand.u32 %v85, 4294901760
    %2415 = vmatpush1.msra.mxu0 %v2414
    %2416 = vmatprep.subr.mxu0 0.0
    %v2417 = vand.u32 %v86, 4294901760
    %2418 = vmatpush1.msra.mxu0 %v2417
    %2419 = vmatprep.subr.mxu0 0.0
    %v2420 = vand.u32 %v87, 4294901760
    %2421 = vmatpush1.msra.mxu0 %v2420
    %2422 = vmatprep.subr.mxu0 0.0
    %v2423 = vand.u32 %v88, 4294901760
    %2424 = vmatpush1.msra.mxu0 %v2423
    %2425 = vmatprep.subr.mxu0 0.0
    %v2426 = vand.u32 %v89, 4294901760
    %2427 = vmatpush1.msra.mxu0 %v2426
    %2428 = vmatprep.subr.mxu0 0.0
    %v2429 = vand.u32 %v90, 4294901760
    %2430 = vmatpush1.msra.mxu0 %v2429
    %2431 = vmatprep.subr.mxu0 0.0
    %v2432 = vand.u32 %v91, 4294901760
    %2433 = vmatpush1.msra.mxu0 %v2432
    %2434 = vmatprep.subr.mxu0 0.0
    %v2435 = vand.u32 %v92, 4294901760
    %2436 = vmatpush1.msra.mxu0 %v2435
    %2437 = vmatprep.subr.mxu0 0.0
    %v2438 = vand.u32 %v93, 4294901760
    %2439 = vmatpush1.msra.mxu0 %v2438
    %2440 = vmatprep.subr.mxu0 0.0
    %v2441 = vand.u32 %v94, 4294901760
    %2442 = vmatpush1.msra.mxu0 %v2441
    %2443 = vmatprep.subr.mxu0 0.0
    %v2444 = vand.u32 %v95, 4294901760
    %2445 = vmatpush1.msra.mxu0 %v2444
    %2446 = vmatprep.subr.mxu0 0.0
    %v2447 = vand.u32 %v96, 4294901760
    %2448 = vmatpush1.msra.mxu0 %v2447
    %2449 = vmatprep.subr.mxu0 0.0
    %v2450 = vand.u32 %v97, 4294901760
    %2451 = vmatpush1.msra.mxu0 %v2450
    %2452 = vmatprep.subr.mxu0 0.0
    %v2453 = vand.u32 %v98, 4294901760
    %2454 = vmatpush1.msra.mxu0 %v2453
    %2455 = vmatprep.subr.mxu0 0.0
    %v2456 = vand.u32 %v99, 4294901760
    %2457 = vmatpush1.msra.mxu0 %v2456
    %2458 = vmatprep.subr.mxu0 0.0
    %v2459 = vand.u32 %v100, 4294901760
    %2460 = vmatpush1.msra.mxu0 %v2459
    %2461 = vmatprep.subr.mxu0 0.0
    %v2462 = vand.u32 %v101, 4294901760
    %2463 = vmatpush1.msra.mxu0 %v2462
    %2464 = vmatprep.subr.mxu0 0.0
    %v2465 = vand.u32 %v102, 4294901760
    %2466 = vmatpush1.msra.mxu0 %v2465
    %2467 = vmatprep.subr.mxu0 0.0
    %v2468 = vand.u32 %v103, 4294901760
    %2469 = vmatpush1.msra.mxu0 %v2468
    %2470 = vmatprep.subr.mxu0 0.0
    %v2471 = vand.u32 %v104, 4294901760
    %2472 = vmatpush1.msra.mxu0 %v2471
    %2473 = vmatprep.subr.mxu0 0.0
    %v2474 = vand.u32 %v105, 4294901760
    %2475 = vmatpush1.msra.mxu0 %v2474
    %2476 = vmatprep.subr.mxu0 0.0
    %v2477 = vand.u32 %v106, 4294901760
    %2478 = vmatpush1.msra.mxu0 %v2477
    %2479 = vmatprep.subr.mxu0 0.0
    %v2480 = vand.u32 %v107, 4294901760
    %2481 = vmatpush1.msra.mxu0 %v2480
    %2482 = vmatprep.subr.mxu0 0.0
    %v2483 = vand.u32 %v108, 4294901760
    %2484 = vmatpush1.msra.mxu0 %v2483
    %2485 = vmatprep.subr.mxu0 0.0
    %v2486 = vand.u32 %v109, 4294901760
    %2487 = vmatpush1.msra.mxu0 %v2486
    %v2488 = vand.u32 %v176, 4294901760
    %v2489 = vsub.f32 %v176, %v2488
    %v2490 = vand.u32 %v2489, 4294901760
    %2491 = vmatprep.mubr.f32.mxu0 %v2490
    %v2492 = vand.u32 %v168, 4294901760
    %v2493 = vsub.f32 %v168, %v2492
    %v2494 = vand.u32 %v2493, 4294901760
    %2495 = vmatmul.mubr.f32.gmra.mrb[0].mxu0 %v2494
    %v2496 = vpop.f32.mrb[0].mxu0
    %v2497 = vadd.f32 %v2389, %v2496
    %v2498 = vpop.f32.mrb[0].mxu0
    %2499 = vdwg.mxu0
    %2500 = vmatprep.subr.mxu0 0.0
    %v2501 = vand.u32 %v78, 4294901760
    %v2502 = vsub.f32 %v78, %v2501
    %v2503 = vand.u32 %v2502, 4294901760
    %2504 = vmatpush1.msra.mxu0 %v2503
    %2505 = vmatprep.subr.mxu0 0.0
    %v2506 = vand.u32 %v79, 4294901760
    %v2507 = vsub.f32 %v79, %v2506
    %v2508 = vand.u32 %v2507, 4294901760
    %2509 = vmatpush1.msra.mxu0 %v2508
    %2510 = vmatprep.subr.mxu0 0.0
    %v2511 = vand.u32 %v80, 4294901760
    %v2512 = vsub.f32 %v80, %v2511
    %v2513 = vand.u32 %v2512, 4294901760
    %2514 = vmatpush1.msra.mxu0 %v2513
    %2515 = vmatprep.subr.mxu0 0.0
    %v2516 = vand.u32 %v81, 4294901760
    %v2517 = vsub.f32 %v81, %v2516
    %v2518 = vand.u32 %v2517, 4294901760
    %2519 = vmatpush1.msra.mxu0 %v2518
    %2520 = vmatprep.subr.mxu0 0.0
    %v2521 = vand.u32 %v82, 4294901760
    %v2522 = vsub.f32 %v82, %v2521
    %v2523 = vand.u32 %v2522, 4294901760
    %2524 = vmatpush1.msra.mxu0 %v2523
    %2525 = vmatprep.subr.mxu0 0.0
    %v2526 = vand.u32 %v83, 4294901760
    %v2527 = vsub.f32 %v83, %v2526
    %v2528 = vand.u32 %v2527, 4294901760
    %2529 = vmatpush1.msra.mxu0 %v2528
    %2530 = vmatprep.subr.mxu0 0.0
    %v2531 = vand.u32 %v84, 4294901760
    %v2532 = vsub.f32 %v84, %v2531
    %v2533 = vand.u32 %v2532, 4294901760
    %2534 = vmatpush1.msra.mxu0 %v2533
    %2535 = vmatprep.subr.mxu0 0.0
    %v2536 = vand.u32 %v85, 4294901760
    %v2537 = vsub.f32 %v85, %v2536
    %v2538 = vand.u32 %v2537, 4294901760
    %2539 = vmatpush1.msra.mxu0 %v2538
    %2540 = vmatprep.subr.mxu0 0.0
    %v2541 = vand.u32 %v86, 4294901760
    %v2542 = vsub.f32 %v86, %v2541
    %v2543 = vand.u32 %v2542, 4294901760
    %2544 = vmatpush1.msra.mxu0 %v2543
    %2545 = vmatprep.subr.mxu0 0.0
    %v2546 = vand.u32 %v87, 4294901760
    %v2547 = vsub.f32 %v87, %v2546
    %v2548 = vand.u32 %v2547, 4294901760
    %2549 = vmatpush1.msra.mxu0 %v2548
    %2550 = vmatprep.subr.mxu0 0.0
    %v2551 = vand.u32 %v88, 4294901760
    %v2552 = vsub.f32 %v88, %v2551
    %v2553 = vand.u32 %v2552, 4294901760
    %2554 = vmatpush1.msra.mxu0 %v2553
    %2555 = vmatprep.subr.mxu0 0.0
    %v2556 = vand.u32 %v89, 4294901760
    %v2557 = vsub.f32 %v89, %v2556
    %v2558 = vand.u32 %v2557, 4294901760
    %2559 = vmatpush1.msra.mxu0 %v2558
    %2560 = vmatprep.subr.mxu0 0.0
    %v2561 = vand.u32 %v90, 4294901760
    %v2562 = vsub.f32 %v90, %v2561
    %v2563 = vand.u32 %v2562, 4294901760
    %2564 = vmatpush1.msra.mxu0 %v2563
    %2565 = vmatprep.subr.mxu0 0.0
    %v2566 = vand.u32 %v91, 4294901760
    %v2567 = vsub.f32 %v91, %v2566
    %v2568 = vand.u32 %v2567, 4294901760
    %2569 = vmatpush1.msra.mxu0 %v2568
    %2570 = vmatprep.subr.mxu0 0.0
    %v2571 = vand.u32 %v92, 4294901760
    %v2572 = vsub.f32 %v92, %v2571
    %v2573 = vand.u32 %v2572, 4294901760
    %2574 = vmatpush1.msra.mxu0 %v2573
    %2575 = vmatprep.subr.mxu0 0.0
    %v2576 = vand.u32 %v93, 4294901760
    %v2577 = vsub.f32 %v93, %v2576
    %v2578 = vand.u32 %v2577, 4294901760
    %2579 = vmatpush1.msra.mxu0 %v2578
    %2580 = vmatprep.subr.mxu0 0.0
    %v2581 = vand.u32 %v94, 4294901760
    %v2582 = vsub.f32 %v94, %v2581
    %v2583 = vand.u32 %v2582, 4294901760
    %2584 = vmatpush1.msra.mxu0 %v2583
    %2585 = vmatprep.subr.mxu0 0.0
    %v2586 = vand.u32 %v95, 4294901760
    %v2587 = vsub.f32 %v95, %v2586
    %v2588 = vand.u32 %v2587, 4294901760
    %2589 = vmatpush1.msra.mxu0 %v2588
    %2590 = vmatprep.subr.mxu0 0.0
    %v2591 = vand.u32 %v96, 4294901760
    %v2592 = vsub.f32 %v96, %v2591
    %v2593 = vand.u32 %v2592, 4294901760
    %2594 = vmatpush1.msra.mxu0 %v2593
    %2595 = vmatprep.subr.mxu0 0.0
    %v2596 = vand.u32 %v97, 4294901760
    %v2597 = vsub.f32 %v97, %v2596
    %v2598 = vand.u32 %v2597, 4294901760
    %2599 = vmatpush1.msra.mxu0 %v2598
    %2600 = vmatprep.subr.mxu0 0.0
    %v2601 = vand.u32 %v98, 4294901760
    %v2602 = vsub.f32 %v98, %v2601
    %v2603 = vand.u32 %v2602, 4294901760
    %2604 = vmatpush1.msra.mxu0 %v2603
    %2605 = vmatprep.subr.mxu0 0.0
    %v2606 = vand.u32 %v99, 4294901760
    %v2607 = vsub.f32 %v99, %v2606
    %v2608 = vand.u32 %v2607, 4294901760
    %2609 = vmatpush1.msra.mxu0 %v2608
    %2610 = vmatprep.subr.mxu0 0.0
    %v2611 = vand.u32 %v100, 4294901760
    %v2612 = vsub.f32 %v100, %v2611
    %v2613 = vand.u32 %v2612, 4294901760
    %2614 = vmatpush1.msra.mxu0 %v2613
    %2615 = vmatprep.subr.mxu0 0.0
    %v2616 = vand.u32 %v101, 4294901760
    %v2617 = vsub.f32 %v101, %v2616
    %v2618 = vand.u32 %v2617, 4294901760
    %2619 = vmatpush1.msra.mxu0 %v2618
    %2620 = vmatprep.subr.mxu0 0.0
    %v2621 = vand.u32 %v102, 4294901760
    %v2622 = vsub.f32 %v102, %v2621
    %v2623 = vand.u32 %v2622, 4294901760
    %2624 = vmatpush1.msra.mxu0 %v2623
    %2625 = vmatprep.subr.mxu0 0.0
    %v2626 = vand.u32 %v103, 4294901760
    %v2627 = vsub.f32 %v103, %v2626
    %v2628 = vand.u32 %v2627, 4294901760
    %2629 = vmatpush1.msra.mxu0 %v2628
    %2630 = vmatprep.subr.mxu0 0.0
    %v2631 = vand.u32 %v104, 4294901760
    %v2632 = vsub.f32 %v104, %v2631
    %v2633 = vand.u32 %v2632, 4294901760
    %2634 = vmatpush1.msra.mxu0 %v2633
    %2635 = vmatprep.subr.mxu0 0.0
    %v2636 = vand.u32 %v105, 4294901760
    %v2637 = vsub.f32 %v105, %v2636
    %v2638 = vand.u32 %v2637, 4294901760
    %2639 = vmatpush1.msra.mxu0 %v2638
    %2640 = vmatprep.subr.mxu0 0.0
    %v2641 = vand.u32 %v106, 4294901760
    %v2642 = vsub.f32 %v106, %v2641
    %v2643 = vand.u32 %v2642, 4294901760
    %2644 = vmatpush1.msra.mxu0 %v2643
    %2645 = vmatprep.subr.mxu0 0.0
    %v2646 = vand.u32 %v107, 4294901760
    %v2647 = vsub.f32 %v107, %v2646
    %v2648 = vand.u32 %v2647, 4294901760
    %2649 = vmatpush1.msra.mxu0 %v2648
    %2650 = vmatprep.subr.mxu0 0.0
    %v2651 = vand.u32 %v108, 4294901760
    %v2652 = vsub.f32 %v108, %v2651
    %v2653 = vand.u32 %v2652, 4294901760
    %2654 = vmatpush1.msra.mxu0 %v2653
    %2655 = vmatprep.subr.mxu0 0.0
    %v2656 = vand.u32 %v109, 4294901760
    %v2657 = vsub.f32 %v109, %v2656
    %v2658 = vand.u32 %v2657, 4294901760
    %2659 = vmatpush1.msra.mxu0 %v2658
    %v2660 = vand.u32 %v176, 4294901760
    %2661 = vmatprep.mubr.f32.mxu0 %v2660
    %v2662 = vand.u32 %v168, 4294901760
    %2663 = vmatmul.mubr.f32.gmra.mrb[0].mxu0 %v2662
    %v2664 = vpop.f32.mrb[0].mxu0
    %v2665 = vadd.f32 %v2497, %v2664
    %v2666 = vpop.f32.mrb[0].mxu0
    %2667 = vdwg.mxu0
    %2668 = vmatprep.subr.mxu0 0.0
    %v2669 = vand.u32 %v78, 4294901760
    %2670 = vmatpush1.msra.mxu0 %v2669
    %2671 = vmatprep.subr.mxu0 0.0
    %v2672 = vand.u32 %v79, 4294901760
    %2673 = vmatpush1.msra.mxu0 %v2672
    %2674 = vmatprep.subr.mxu0 0.0
    %v2675 = vand.u32 %v80, 4294901760
    %2676 = vmatpush1.msra.mxu0 %v2675
    %2677 = vmatprep.subr.mxu0 0.0
    %v2678 = vand.u32 %v81, 4294901760
    %2679 = vmatpush1.msra.mxu0 %v2678
    %2680 = vmatprep.subr.mxu0 0.0
    %v2681 = vand.u32 %v82, 4294901760
    %2682 = vmatpush1.msra.mxu0 %v2681
    %2683 = vmatprep.subr.mxu0 0.0
    %v2684 = vand.u32 %v83, 4294901760
    %2685 = vmatpush1.msra.mxu0 %v2684
    %2686 = vmatprep.subr.mxu0 0.0
    %v2687 = vand.u32 %v84, 4294901760
    %2688 = vmatpush1.msra.mxu0 %v2687
    %2689 = vmatprep.subr.mxu0 0.0
    %v2690 = vand.u32 %v85, 4294901760
    %2691 = vmatpush1.msra.mxu0 %v2690
    %2692 = vmatprep.subr.mxu0 0.0
    %v2693 = vand.u32 %v86, 4294901760
    %2694 = vmatpush1.msra.mxu0 %v2693
    %2695 = vmatprep.subr.mxu0 0.0
    %v2696 = vand.u32 %v87, 4294901760
    %2697 = vmatpush1.msra.mxu0 %v2696
    %2698 = vmatprep.subr.mxu0 0.0
    %v2699 = vand.u32 %v88, 4294901760
    %2700 = vmatpush1.msra.mxu0 %v2699
    %2701 = vmatprep.subr.mxu0 0.0
    %v2702 = vand.u32 %v89, 4294901760
    %2703 = vmatpush1.msra.mxu0 %v2702
    %2704 = vmatprep.subr.mxu0 0.0
    %v2705 = vand.u32 %v90, 4294901760
    %2706 = vmatpush1.msra.mxu0 %v2705
    %2707 = vmatprep.subr.mxu0 0.0
    %v2708 = vand.u32 %v91, 4294901760
    %2709 = vmatpush1.msra.mxu0 %v2708
    %2710 = vmatprep.subr.mxu0 0.0
    %v2711 = vand.u32 %v92, 4294901760
    %2712 = vmatpush1.msra.mxu0 %v2711
    %2713 = vmatprep.subr.mxu0 0.0
    %v2714 = vand.u32 %v93, 4294901760
    %2715 = vmatpush1.msra.mxu0 %v2714
    %2716 = vmatprep.subr.mxu0 0.0
    %v2717 = vand.u32 %v94, 4294901760
    %2718 = vmatpush1.msra.mxu0 %v2717
    %2719 = vmatprep.subr.mxu0 0.0
    %v2720 = vand.u32 %v95, 4294901760
    %2721 = vmatpush1.msra.mxu0 %v2720
    %2722 = vmatprep.subr.mxu0 0.0
    %v2723 = vand.u32 %v96, 4294901760
    %2724 = vmatpush1.msra.mxu0 %v2723
    %2725 = vmatprep.subr.mxu0 0.0
    %v2726 = vand.u32 %v97, 4294901760
    %2727 = vmatpush1.msra.mxu0 %v2726
    %2728 = vmatprep.subr.mxu0 0.0
    %v2729 = vand.u32 %v98, 4294901760
    %2730 = vmatpush1.msra.mxu0 %v2729
    %2731 = vmatprep.subr.mxu0 0.0
    %v2732 = vand.u32 %v99, 4294901760
    %2733 = vmatpush1.msra.mxu0 %v2732
    %2734 = vmatprep.subr.mxu0 0.0
    %v2735 = vand.u32 %v100, 4294901760
    %2736 = vmatpush1.msra.mxu0 %v2735
    %2737 = vmatprep.subr.mxu0 0.0
    %v2738 = vand.u32 %v101, 4294901760
    %2739 = vmatpush1.msra.mxu0 %v2738
    %2740 = vmatprep.subr.mxu0 0.0
    %v2741 = vand.u32 %v102, 4294901760
    %2742 = vmatpush1.msra.mxu0 %v2741
    %2743 = vmatprep.subr.mxu0 0.0
    %v2744 = vand.u32 %v103, 4294901760
    %2745 = vmatpush1.msra.mxu0 %v2744
    %2746 = vmatprep.subr.mxu0 0.0
    %v2747 = vand.u32 %v104, 4294901760
    %2748 = vmatpush1.msra.mxu0 %v2747
    %2749 = vmatprep.subr.mxu0 0.0
    %v2750 = vand.u32 %v105, 4294901760
    %2751 = vmatpush1.msra.mxu0 %v2750
    %2752 = vmatprep.subr.mxu0 0.0
    %v2753 = vand.u32 %v106, 4294901760
    %2754 = vmatpush1.msra.mxu0 %v2753
    %2755 = vmatprep.subr.mxu0 0.0
    %v2756 = vand.u32 %v107, 4294901760
    %2757 = vmatpush1.msra.mxu0 %v2756
    %2758 = vmatprep.subr.mxu0 0.0
    %v2759 = vand.u32 %v108, 4294901760
    %2760 = vmatpush1.msra.mxu0 %v2759
    %2761 = vmatprep.subr.mxu0 0.0
    %v2762 = vand.u32 %v109, 4294901760
    %2763 = vmatpush1.msra.mxu0 %v2762
    %v2764 = vand.u32 %v176, 4294901760
    %2765 = vmatprep.mubr.f32.mxu0 %v2764
    %v2766 = vand.u32 %v168, 4294901760
    %2767 = vmatmul.mubr.f32.gmra.mrb[0].mxu0 %v2766
    %v2768 = vpop.f32.mrb[0].mxu0
    %v2769 = vadd.f32 %v2665, %v2768
    %v2770 = vpop.f32.mrb[0].mxu0
    %2771 = vdwg.mxu0
    %2772 = vmatprep.subr.mxu0 0.0
    %v2773 = vand.u32 %v110, 4294901760
    %2774 = vmatpush1.msra.mxu0 %v2773
    %2775 = vmatprep.subr.mxu0 0.0
    %v2776 = vand.u32 %v111, 4294901760
    %2777 = vmatpush1.msra.mxu0 %v2776
    %2778 = vmatprep.subr.mxu0 0.0
    %v2779 = vand.u32 %v112, 4294901760
    %2780 = vmatpush1.msra.mxu0 %v2779
    %2781 = vmatprep.subr.mxu0 0.0
    %v2782 = vand.u32 %v113, 4294901760
    %2783 = vmatpush1.msra.mxu0 %v2782
    %2784 = vmatprep.subr.mxu0 0.0
    %v2785 = vand.u32 %v114, 4294901760
    %2786 = vmatpush1.msra.mxu0 %v2785
    %2787 = vmatprep.subr.mxu0 0.0
    %v2788 = vand.u32 %v115, 4294901760
    %2789 = vmatpush1.msra.mxu0 %v2788
    %2790 = vmatprep.subr.mxu0 0.0
    %v2791 = vand.u32 %v116, 4294901760
    %2792 = vmatpush1.msra.mxu0 %v2791
    %2793 = vmatprep.subr.mxu0 0.0
    %v2794 = vand.u32 %v117, 4294901760
    %2795 = vmatpush1.msra.mxu0 %v2794
    %2796 = vmatprep.subr.mxu0 0.0
    %v2797 = vand.u32 %v118, 4294901760
    %2798 = vmatpush1.msra.mxu0 %v2797
    %2799 = vmatprep.subr.mxu0 0.0
    %v2800 = vand.u32 %v119, 4294901760
    %2801 = vmatpush1.msra.mxu0 %v2800
    %2802 = vmatprep.subr.mxu0 0.0
    %v2803 = vand.u32 %v120, 4294901760
    %2804 = vmatpush1.msra.mxu0 %v2803
    %2805 = vmatprep.subr.mxu0 0.0
    %v2806 = vand.u32 %v121, 4294901760
    %2807 = vmatpush1.msra.mxu0 %v2806
    %2808 = vmatprep.subr.mxu0 0.0
    %v2809 = vand.u32 %v122, 4294901760
    %2810 = vmatpush1.msra.mxu0 %v2809
    %2811 = vmatprep.subr.mxu0 0.0
    %v2812 = vand.u32 %v123, 4294901760
    %2813 = vmatpush1.msra.mxu0 %v2812
    %2814 = vmatprep.subr.mxu0 0.0
    %v2815 = vand.u32 %v124, 4294901760
    %2816 = vmatpush1.msra.mxu0 %v2815
    %2817 = vmatprep.subr.mxu0 0.0
    %v2818 = vand.u32 %v125, 4294901760
    %2819 = vmatpush1.msra.mxu0 %v2818
    %2820 = vmatprep.subr.mxu0 0.0
    %v2821 = vand.u32 %v126, 4294901760
    %2822 = vmatpush1.msra.mxu0 %v2821
    %2823 = vmatprep.subr.mxu0 0.0
    %v2824 = vand.u32 %v127, 4294901760
    %2825 = vmatpush1.msra.mxu0 %v2824
    %2826 = vmatprep.subr.mxu0 0.0
    %v2827 = vand.u32 %v128, 4294901760
    %2828 = vmatpush1.msra.mxu0 %v2827
    %2829 = vmatprep.subr.mxu0 0.0
    %v2830 = vand.u32 %v129, 4294901760
    %2831 = vmatpush1.msra.mxu0 %v2830
    %2832 = vmatprep.subr.mxu0 0.0
    %v2833 = vand.u32 %v130, 4294901760
    %2834 = vmatpush1.msra.mxu0 %v2833
    %2835 = vmatprep.subr.mxu0 0.0
    %v2836 = vand.u32 %v131, 4294901760
    %2837 = vmatpush1.msra.mxu0 %v2836
    %2838 = vmatprep.subr.mxu0 0.0
    %v2839 = vand.u32 %v132, 4294901760
    %2840 = vmatpush1.msra.mxu0 %v2839
    %2841 = vmatprep.subr.mxu0 0.0
    %v2842 = vand.u32 %v133, 4294901760
    %2843 = vmatpush1.msra.mxu0 %v2842
    %2844 = vmatprep.subr.mxu0 0.0
    %v2845 = vand.u32 %v134, 4294901760
    %2846 = vmatpush1.msra.mxu0 %v2845
    %2847 = vmatprep.subr.mxu0 0.0
    %v2848 = vand.u32 %v135, 4294901760
    %2849 = vmatpush1.msra.mxu0 %v2848
    %2850 = vmatprep.subr.mxu0 0.0
    %v2851 = vand.u32 %v136, 4294901760
    %2852 = vmatpush1.msra.mxu0 %v2851
    %2853 = vmatprep.subr.mxu0 0.0
    %v2854 = vand.u32 %v137, 4294901760
    %2855 = vmatpush1.msra.mxu0 %v2854
    %2856 = vmatprep.subr.mxu0 0.0
    %v2857 = vand.u32 %v138, 4294901760
    %2858 = vmatpush1.msra.mxu0 %v2857
    %2859 = vmatprep.subr.mxu0 0.0
    %v2860 = vand.u32 %v139, 4294901760
    %2861 = vmatpush1.msra.mxu0 %v2860
    %2862 = vmatprep.subr.mxu0 0.0
    %v2863 = vand.u32 %v140, 4294901760
    %2864 = vmatpush1.msra.mxu0 %v2863
    %2865 = vmatprep.subr.mxu0 0.0
    %v2866 = vand.u32 %v141, 4294901760
    %2867 = vmatpush1.msra.mxu0 %v2866
    %v2868 = vand.u32 %v177, 4294901760
    %v2869 = vsub.f32 %v177, %v2868
    %v2870 = vand.u32 %v2869, 4294901760
    %v2871 = vsub.f32 %v2869, %v2870
    %v2872 = vand.u32 %v2871, 4294901760
    %2873 = vmatprep.mubr.f32.mxu0 %v2872
    %v2874 = vand.u32 %v175, 4294901760
    %v2875 = vsub.f32 %v175, %v2874
    %v2876 = vand.u32 %v2875, 4294901760
    %v2877 = vsub.f32 %v2875, %v2876
    %v2878 = vand.u32 %v2877, 4294901760
    %2879 = vmatmul.mubr.f32.gmra.mrb[0].mxu0 %v2878
    %v2880 = vpop.f32.mrb[0].mxu0
    %v2881 = vadd.f32 %v2769, %v2880
    %v2882 = vpop.f32.mrb[0].mxu0
    %2883 = vdwg.mxu0
    %2884 = vmatprep.subr.mxu0 0.0
    %v2885 = vand.u32 %v110, 4294901760
    %v2886 = vsub.f32 %v110, %v2885
    %v2887 = vand.u32 %v2886, 4294901760
    %v2888 = vsub.f32 %v2886, %v2887
    %v2889 = vand.u32 %v2888, 4294901760
    %2890 = vmatpush1.msra.mxu0 %v2889
    %2891 = vmatprep.subr.mxu0 0.0
    %v2892 = vand.u32 %v111, 4294901760
    %v2893 = vsub.f32 %v111, %v2892
    %v2894 = vand.u32 %v2893, 4294901760
    %v2895 = vsub.f32 %v2893, %v2894
    %v2896 = vand.u32 %v2895, 4294901760
    %2897 = vmatpush1.msra.mxu0 %v2896
    %2898 = vmatprep.subr.mxu0 0.0
    %v2899 = vand.u32 %v112, 4294901760
    %v2900 = vsub.f32 %v112, %v2899
    %v2901 = vand.u32 %v2900, 4294901760
    %v2902 = vsub.f32 %v2900, %v2901
    %v2903 = vand.u32 %v2902, 4294901760
    %2904 = vmatpush1.msra.mxu0 %v2903
    %2905 = vmatprep.subr.mxu0 0.0
    %v2906 = vand.u32 %v113, 4294901760
    %v2907 = vsub.f32 %v113, %v2906
    %v2908 = vand.u32 %v2907, 4294901760
    %v2909 = vsub.f32 %v2907, %v2908
    %v2910 = vand.u32 %v2909, 4294901760
    %2911 = vmatpush1.msra.mxu0 %v2910
    %2912 = vmatprep.subr.mxu0 0.0
    %v2913 = vand.u32 %v114, 4294901760
    %v2914 = vsub.f32 %v114, %v2913
    %v2915 = vand.u32 %v2914, 4294901760
    %v2916 = vsub.f32 %v2914, %v2915
    %v2917 = vand.u32 %v2916, 4294901760
    %2918 = vmatpush1.msra.mxu0 %v2917
    %2919 = vmatprep.subr.mxu0 0.0
    %v2920 = vand.u32 %v115, 4294901760
    %v2921 = vsub.f32 %v115, %v2920
    %v2922 = vand.u32 %v2921, 4294901760
    %v2923 = vsub.f32 %v2921, %v2922
    %v2924 = vand.u32 %v2923, 4294901760
    %2925 = vmatpush1.msra.mxu0 %v2924
    %2926 = vmatprep.subr.mxu0 0.0
    %v2927 = vand.u32 %v116, 4294901760
    %v2928 = vsub.f32 %v116, %v2927
    %v2929 = vand.u32 %v2928, 4294901760
    %v2930 = vsub.f32 %v2928, %v2929
    %v2931 = vand.u32 %v2930, 4294901760
    %2932 = vmatpush1.msra.mxu0 %v2931
    %2933 = vmatprep.subr.mxu0 0.0
    %v2934 = vand.u32 %v117, 4294901760
    %v2935 = vsub.f32 %v117, %v2934
    %v2936 = vand.u32 %v2935, 4294901760
    %v2937 = vsub.f32 %v2935, %v2936
    %v2938 = vand.u32 %v2937, 4294901760
    %2939 = vmatpush1.msra.mxu0 %v2938
    %2940 = vmatprep.subr.mxu0 0.0
    %v2941 = vand.u32 %v118, 4294901760
    %v2942 = vsub.f32 %v118, %v2941
    %v2943 = vand.u32 %v2942, 4294901760
    %v2944 = vsub.f32 %v2942, %v2943
    %v2945 = vand.u32 %v2944, 4294901760
    %2946 = vmatpush1.msra.mxu0 %v2945
    %2947 = vmatprep.subr.mxu0 0.0
    %v2948 = vand.u32 %v119, 4294901760
    %v2949 = vsub.f32 %v119, %v2948
    %v2950 = vand.u32 %v2949, 4294901760
    %v2951 = vsub.f32 %v2949, %v2950
    %v2952 = vand.u32 %v2951, 4294901760
    %2953 = vmatpush1.msra.mxu0 %v2952
    %2954 = vmatprep.subr.mxu0 0.0
    %v2955 = vand.u32 %v120, 4294901760
    %v2956 = vsub.f32 %v120, %v2955
    %v2957 = vand.u32 %v2956, 4294901760
    %v2958 = vsub.f32 %v2956, %v2957
    %v2959 = vand.u32 %v2958, 4294901760
    %2960 = vmatpush1.msra.mxu0 %v2959
    %2961 = vmatprep.subr.mxu0 0.0
    %v2962 = vand.u32 %v121, 4294901760
    %v2963 = vsub.f32 %v121, %v2962
    %v2964 = vand.u32 %v2963, 4294901760
    %v2965 = vsub.f32 %v2963, %v2964
    %v2966 = vand.u32 %v2965, 4294901760
    %2967 = vmatpush1.msra.mxu0 %v2966
    %2968 = vmatprep.subr.mxu0 0.0
    %v2969 = vand.u32 %v122, 4294901760
    %v2970 = vsub.f32 %v122, %v2969
    %v2971 = vand.u32 %v2970, 4294901760
    %v2972 = vsub.f32 %v2970, %v2971
    %v2973 = vand.u32 %v2972, 4294901760
    %2974 = vmatpush1.msra.mxu0 %v2973
    %2975 = vmatprep.subr.mxu0 0.0
    %v2976 = vand.u32 %v123, 4294901760
    %v2977 = vsub.f32 %v123, %v2976
    %v2978 = vand.u32 %v2977, 4294901760
    %v2979 = vsub.f32 %v2977, %v2978
    %v2980 = vand.u32 %v2979, 4294901760
    %2981 = vmatpush1.msra.mxu0 %v2980
    %2982 = vmatprep.subr.mxu0 0.0
    %v2983 = vand.u32 %v124, 4294901760
    %v2984 = vsub.f32 %v124, %v2983
    %v2985 = vand.u32 %v2984, 4294901760
    %v2986 = vsub.f32 %v2984, %v2985
    %v2987 = vand.u32 %v2986, 4294901760
    %2988 = vmatpush1.msra.mxu0 %v2987
    %2989 = vmatprep.subr.mxu0 0.0
    %v2990 = vand.u32 %v125, 4294901760
    %v2991 = vsub.f32 %v125, %v2990
    %v2992 = vand.u32 %v2991, 4294901760
    %v2993 = vsub.f32 %v2991, %v2992
    %v2994 = vand.u32 %v2993, 4294901760
    %2995 = vmatpush1.msra.mxu0 %v2994
    %2996 = vmatprep.subr.mxu0 0.0
    %v2997 = vand.u32 %v126, 4294901760
    %v2998 = vsub.f32 %v126, %v2997
    %v2999 = vand.u32 %v2998, 4294901760
    %v3000 = vsub.f32 %v2998, %v2999
    %v3001 = vand.u32 %v3000, 4294901760
    %3002 = vmatpush1.msra.mxu0 %v3001
    %3003 = vmatprep.subr.mxu0 0.0
    %v3004 = vand.u32 %v127, 4294901760
    %v3005 = vsub.f32 %v127, %v3004
    %v3006 = vand.u32 %v3005, 4294901760
    %v3007 = vsub.f32 %v3005, %v3006
    %v3008 = vand.u32 %v3007, 4294901760
    %3009 = vmatpush1.msra.mxu0 %v3008
    %3010 = vmatprep.subr.mxu0 0.0
    %v3011 = vand.u32 %v128, 4294901760
    %v3012 = vsub.f32 %v128, %v3011
    %v3013 = vand.u32 %v3012, 4294901760
    %v3014 = vsub.f32 %v3012, %v3013
    %v3015 = vand.u32 %v3014, 4294901760
    %3016 = vmatpush1.msra.mxu0 %v3015
    %3017 = vmatprep.subr.mxu0 0.0
    %v3018 = vand.u32 %v129, 4294901760
    %v3019 = vsub.f32 %v129, %v3018
    %v3020 = vand.u32 %v3019, 4294901760
    %v3021 = vsub.f32 %v3019, %v3020
    %v3022 = vand.u32 %v3021, 4294901760
    %3023 = vmatpush1.msra.mxu0 %v3022
    %3024 = vmatprep.subr.mxu0 0.0
    %v3025 = vand.u32 %v130, 4294901760
    %v3026 = vsub.f32 %v130, %v3025
    %v3027 = vand.u32 %v3026, 4294901760
    %v3028 = vsub.f32 %v3026, %v3027
    %v3029 = vand.u32 %v3028, 4294901760
    %3030 = vmatpush1.msra.mxu0 %v3029
    %3031 = vmatprep.subr.mxu0 0.0
    %v3032 = vand.u32 %v131, 4294901760
    %v3033 = vsub.f32 %v131, %v3032
    %v3034 = vand.u32 %v3033, 4294901760
    %v3035 = vsub.f32 %v3033, %v3034
    %v3036 = vand.u32 %v3035, 4294901760
    %3037 = vmatpush1.msra.mxu0 %v3036
    %3038 = vmatprep.subr.mxu0 0.0
    %v3039 = vand.u32 %v132, 4294901760
    %v3040 = vsub.f32 %v132, %v3039
    %v3041 = vand.u32 %v3040, 4294901760
    %v3042 = vsub.f32 %v3040, %v3041
    %v3043 = vand.u32 %v3042, 4294901760
    %3044 = vmatpush1.msra.mxu0 %v3043
    %3045 = vmatprep.subr.mxu0 0.0
    %v3046 = vand.u32 %v133, 4294901760
    %v3047 = vsub.f32 %v133, %v3046
    %v3048 = vand.u32 %v3047, 4294901760
    %v3049 = vsub.f32 %v3047, %v3048
    %v3050 = vand.u32 %v3049, 4294901760
    %3051 = vmatpush1.msra.mxu0 %v3050
    %3052 = vmatprep.subr.mxu0 0.0
    %v3053 = vand.u32 %v134, 4294901760
    %v3054 = vsub.f32 %v134, %v3053
    %v3055 = vand.u32 %v3054, 4294901760
    %v3056 = vsub.f32 %v3054, %v3055
    %v3057 = vand.u32 %v3056, 4294901760
    %3058 = vmatpush1.msra.mxu0 %v3057
    %3059 = vmatprep.subr.mxu0 0.0
    %v3060 = vand.u32 %v135, 4294901760
    %v3061 = vsub.f32 %v135, %v3060
    %v3062 = vand.u32 %v3061, 4294901760
    %v3063 = vsub.f32 %v3061, %v3062
    %v3064 = vand.u32 %v3063, 4294901760
    %3065 = vmatpush1.msra.mxu0 %v3064
    %3066 = vmatprep.subr.mxu0 0.0
    %v3067 = vand.u32 %v136, 4294901760
    %v3068 = vsub.f32 %v136, %v3067
    %v3069 = vand.u32 %v3068, 4294901760
    %v3070 = vsub.f32 %v3068, %v3069
    %v3071 = vand.u32 %v3070, 4294901760
    %3072 = vmatpush1.msra.mxu0 %v3071
    %3073 = vmatprep.subr.mxu0 0.0
    %v3074 = vand.u32 %v137, 4294901760
    %v3075 = vsub.f32 %v137, %v3074
    %v3076 = vand.u32 %v3075, 4294901760
    %v3077 = vsub.f32 %v3075, %v3076
    %v3078 = vand.u32 %v3077, 4294901760
    %3079 = vmatpush1.msra.mxu0 %v3078
    %3080 = vmatprep.subr.mxu0 0.0
    %v3081 = vand.u32 %v138, 4294901760
    %v3082 = vsub.f32 %v138, %v3081
    %v3083 = vand.u32 %v3082, 4294901760
    %v3084 = vsub.f32 %v3082, %v3083
    %v3085 = vand.u32 %v3084, 4294901760
    %3086 = vmatpush1.msra.mxu0 %v3085
    %3087 = vmatprep.subr.mxu0 0.0
    %v3088 = vand.u32 %v139, 4294901760
    %v3089 = vsub.f32 %v139, %v3088
    %v3090 = vand.u32 %v3089, 4294901760
    %v3091 = vsub.f32 %v3089, %v3090
    %v3092 = vand.u32 %v3091, 4294901760
    %3093 = vmatpush1.msra.mxu0 %v3092
    %3094 = vmatprep.subr.mxu0 0.0
    %v3095 = vand.u32 %v140, 4294901760
    %v3096 = vsub.f32 %v140, %v3095
    %v3097 = vand.u32 %v3096, 4294901760
    %v3098 = vsub.f32 %v3096, %v3097
    %v3099 = vand.u32 %v3098, 4294901760
    %3100 = vmatpush1.msra.mxu0 %v3099
    %3101 = vmatprep.subr.mxu0 0.0
    %v3102 = vand.u32 %v141, 4294901760
    %v3103 = vsub.f32 %v141, %v3102
    %v3104 = vand.u32 %v3103, 4294901760
    %v3105 = vsub.f32 %v3103, %v3104
    %v3106 = vand.u32 %v3105, 4294901760
    %3107 = vmatpush1.msra.mxu0 %v3106
    %v3108 = vand.u32 %v177, 4294901760
    %3109 = vmatprep.mubr.f32.mxu0 %v3108
    %v3110 = vand.u32 %v175, 4294901760
    %3111 = vmatmul.mubr.f32.gmra.mrb[0].mxu0 %v3110
    %v3112 = vpop.f32.mrb[0].mxu0
    %v3113 = vadd.f32 %v2881, %v3112
    %v3114 = vpop.f32.mrb[0].mxu0
    %3115 = vdwg.mxu0
    %3116 = vmatprep.subr.mxu0 0.0
    %v3117 = vand.u32 %v110, 4294901760
    %v3118 = vsub.f32 %v110, %v3117
    %3119 = vmatpush1.msra.mxu0 %v3118
    %3120 = vmatprep.subr.mxu0 0.0
    %v3121 = vand.u32 %v111, 4294901760
    %v3122 = vsub.f32 %v111, %v3121
    %3123 = vmatpush1.msra.mxu0 %v3122
    %3124 = vmatprep.subr.mxu0 0.0
    %v3125 = vand.u32 %v112, 4294901760
    %v3126 = vsub.f32 %v112, %v3125
    %3127 = vmatpush1.msra.mxu0 %v3126
    %3128 = vmatprep.subr.mxu0 0.0
    %v3129 = vand.u32 %v113, 4294901760
    %v3130 = vsub.f32 %v113, %v3129
    %3131 = vmatpush1.msra.mxu0 %v3130
    %3132 = vmatprep.subr.mxu0 0.0
    %v3133 = vand.u32 %v114, 4294901760
    %v3134 = vsub.f32 %v114, %v3133
    %3135 = vmatpush1.msra.mxu0 %v3134
    %3136 = vmatprep.subr.mxu0 0.0
    %v3137 = vand.u32 %v115, 4294901760
    %v3138 = vsub.f32 %v115, %v3137
    %3139 = vmatpush1.msra.mxu0 %v3138
    %3140 = vmatprep.subr.mxu0 0.0
    %v3141 = vand.u32 %v116, 4294901760
    %v3142 = vsub.f32 %v116, %v3141
    %3143 = vmatpush1.msra.mxu0 %v3142
    %3144 = vmatprep.subr.mxu0 0.0
    %v3145 = vand.u32 %v117, 4294901760
    %v3146 = vsub.f32 %v117, %v3145
    %3147 = vmatpush1.msra.mxu0 %v3146
    %3148 = vmatprep.subr.mxu0 0.0
    %v3149 = vand.u32 %v118, 4294901760
    %v3150 = vsub.f32 %v118, %v3149
    %3151 = vmatpush1.msra.mxu0 %v3150
    %3152 = vmatprep.subr.mxu0 0.0
    %v3153 = vand.u32 %v119, 4294901760
    %v3154 = vsub.f32 %v119, %v3153
    %3155 = vmatpush1.msra.mxu0 %v3154
    %3156 = vmatprep.subr.mxu0 0.0
    %v3157 = vand.u32 %v120, 4294901760
    %v3158 = vsub.f32 %v120, %v3157
    %3159 = vmatpush1.msra.mxu0 %v3158
    %3160 = vmatprep.subr.mxu0 0.0
    %v3161 = vand.u32 %v121, 4294901760
    %v3162 = vsub.f32 %v121, %v3161
    %3163 = vmatpush1.msra.mxu0 %v3162
    %3164 = vmatprep.subr.mxu0 0.0
    %v3165 = vand.u32 %v122, 4294901760
    %v3166 = vsub.f32 %v122, %v3165
    %3167 = vmatpush1.msra.mxu0 %v3166
    %3168 = vmatprep.subr.mxu0 0.0
    %v3169 = vand.u32 %v123, 4294901760
    %v3170 = vsub.f32 %v123, %v3169
    %3171 = vmatpush1.msra.mxu0 %v3170
    %3172 = vmatprep.subr.mxu0 0.0
    %v3173 = vand.u32 %v124, 4294901760
    %v3174 = vsub.f32 %v124, %v3173
    %3175 = vmatpush1.msra.mxu0 %v3174
    %3176 = vmatprep.subr.mxu0 0.0
    %v3177 = vand.u32 %v125, 4294901760
    %v3178 = vsub.f32 %v125, %v3177
    %3179 = vmatpush1.msra.mxu0 %v3178
    %3180 = vmatprep.subr.mxu0 0.0
    %v3181 = vand.u32 %v126, 4294901760
    %v3182 = vsub.f32 %v126, %v3181
    %3183 = vmatpush1.msra.mxu0 %v3182
    %3184 = vmatprep.subr.mxu0 0.0
    %v3185 = vand.u32 %v127, 4294901760
    %v3186 = vsub.f32 %v127, %v3185
    %3187 = vmatpush1.msra.mxu0 %v3186
    %3188 = vmatprep.subr.mxu0 0.0
    %v3189 = vand.u32 %v128, 4294901760
    %v3190 = vsub.f32 %v128, %v3189
    %3191 = vmatpush1.msra.mxu0 %v3190
    %3192 = vmatprep.subr.mxu0 0.0
    %v3193 = vand.u32 %v129, 4294901760
    %v3194 = vsub.f32 %v129, %v3193
    %3195 = vmatpush1.msra.mxu0 %v3194
    %3196 = vmatprep.subr.mxu0 0.0
    %v3197 = vand.u32 %v130, 4294901760
    %v3198 = vsub.f32 %v130, %v3197
    %3199 = vmatpush1.msra.mxu0 %v3198
    %3200 = vmatprep.subr.mxu0 0.0
    %v3201 = vand.u32 %v131, 4294901760
    %v3202 = vsub.f32 %v131, %v3201
    %3203 = vmatpush1.msra.mxu0 %v3202
    %3204 = vmatprep.subr.mxu0 0.0
    %v3205 = vand.u32 %v132, 4294901760
    %v3206 = vsub.f32 %v132, %v3205
    %3207 = vmatpush1.msra.mxu0 %v3206
    %3208 = vmatprep.subr.mxu0 0.0
    %v3209 = vand.u32 %v133, 4294901760
    %v3210 = vsub.f32 %v133, %v3209
    %3211 = vmatpush1.msra.mxu0 %v3210
    %3212 = vmatprep.subr.mxu0 0.0
    %v3213 = vand.u32 %v134, 4294901760
    %v3214 = vsub.f32 %v134, %v3213
    %3215 = vmatpush1.msra.mxu0 %v3214
    %3216 = vmatprep.subr.mxu0 0.0
    %v3217 = vand.u32 %v135, 4294901760
    %v3218 = vsub.f32 %v135, %v3217
    %3219 = vmatpush1.msra.mxu0 %v3218
    %3220 = vmatprep.subr.mxu0 0.0
    %v3221 = vand.u32 %v136, 4294901760
    %v3222 = vsub.f32 %v136, %v3221
    %3223 = vmatpush1.msra.mxu0 %v3222
    %3224 = vmatprep.subr.mxu0 0.0
    %v3225 = vand.u32 %v137, 4294901760
    %v3226 = vsub.f32 %v137, %v3225
    %3227 = vmatpush1.msra.mxu0 %v3226
    %3228 = vmatprep.subr.mxu0 0.0
    %v3229 = vand.u32 %v138, 4294901760
    %v3230 = vsub.f32 %v138, %v3229
    %3231 = vmatpush1.msra.mxu0 %v3230
    %3232 = vmatprep.subr.mxu0 0.0
    %v3233 = vand.u32 %v139, 4294901760
    %v3234 = vsub.f32 %v139, %v3233
    %3235 = vmatpush1.msra.mxu0 %v3234
    %3236 = vmatprep.subr.mxu0 0.0
    %v3237 = vand.u32 %v140, 4294901760
    %v3238 = vsub.f32 %v140, %v3237
    %3239 = vmatpush1.msra.mxu0 %v3238
    %3240 = vmatprep.subr.mxu0 0.0
    %v3241 = vand.u32 %v141, 4294901760
    %v3242 = vsub.f32 %v141, %v3241
    %3243 = vmatpush1.msra.mxu0 %v3242
    %v3244 = vand.u32 %v177, 4294901760
    %v3245 = vsub.f32 %v177, %v3244
    %3246 = vmatprep.mubr.f32.mxu0 %v3245
    %v3247 = vand.u32 %v175, 4294901760
    %v3248 = vsub.f32 %v175, %v3247
    %3249 = vmatmul.mubr.f32.gmra.mrb[0].mxu0 %v3248
    %v3250 = vpop.f32.mrb[0].mxu0
    %v3251 = vadd.f32 %v3113, %v3250
    %v3252 = vpop.f32.mrb[0].mxu0
    %3253 = vdwg.mxu0
    %3254 = vmatprep.subr.mxu0 0.0
    %v3255 = vand.u32 %v110, 4294901760
    %3256 = vmatpush1.msra.mxu0 %v3255
    %3257 = vmatprep.subr.mxu0 0.0
    %v3258 = vand.u32 %v111, 4294901760
    %3259 = vmatpush1.msra.mxu0 %v3258
    %3260 = vmatprep.subr.mxu0 0.0
    %v3261 = vand.u32 %v112, 4294901760
    %3262 = vmatpush1.msra.mxu0 %v3261
    %3263 = vmatprep.subr.mxu0 0.0
    %v3264 = vand.u32 %v113, 4294901760
    %3265 = vmatpush1.msra.mxu0 %v3264
    %3266 = vmatprep.subr.mxu0 0.0
    %v3267 = vand.u32 %v114, 4294901760
    %3268 = vmatpush1.msra.mxu0 %v3267
    %3269 = vmatprep.subr.mxu0 0.0
    %v3270 = vand.u32 %v115, 4294901760
    %3271 = vmatpush1.msra.mxu0 %v3270
    %3272 = vmatprep.subr.mxu0 0.0
    %v3273 = vand.u32 %v116, 4294901760
    %3274 = vmatpush1.msra.mxu0 %v3273
    %3275 = vmatprep.subr.mxu0 0.0
    %v3276 = vand.u32 %v117, 4294901760
    %3277 = vmatpush1.msra.mxu0 %v3276
    %3278 = vmatprep.subr.mxu0 0.0
    %v3279 = vand.u32 %v118, 4294901760
    %3280 = vmatpush1.msra.mxu0 %v3279
    %3281 = vmatprep.subr.mxu0 0.0
    %v3282 = vand.u32 %v119, 4294901760
    %3283 = vmatpush1.msra.mxu0 %v3282
    %3284 = vmatprep.subr.mxu0 0.0
    %v3285 = vand.u32 %v120, 4294901760
    %3286 = vmatpush1.msra.mxu0 %v3285
    %3287 = vmatprep.subr.mxu0 0.0
    %v3288 = vand.u32 %v121, 4294901760
    %3289 = vmatpush1.msra.mxu0 %v3288
    %3290 = vmatprep.subr.mxu0 0.0
    %v3291 = vand.u32 %v122, 4294901760
    %3292 = vmatpush1.msra.mxu0 %v3291
    %3293 = vmatprep.subr.mxu0 0.0
    %v3294 = vand.u32 %v123, 4294901760
    %3295 = vmatpush1.msra.mxu0 %v3294
    %3296 = vmatprep.subr.mxu0 0.0
    %v3297 = vand.u32 %v124, 4294901760
    %3298 = vmatpush1.msra.mxu0 %v3297
    %3299 = vmatprep.subr.mxu0 0.0
    %v3300 = vand.u32 %v125, 4294901760
    %3301 = vmatpush1.msra.mxu0 %v3300
    %3302 = vmatprep.subr.mxu0 0.0
    %v3303 = vand.u32 %v126, 4294901760
    %3304 = vmatpush1.msra.mxu0 %v3303
    %3305 = vmatprep.subr.mxu0 0.0
    %v3306 = vand.u32 %v127, 4294901760
    %3307 = vmatpush1.msra.mxu0 %v3306
    %3308 = vmatprep.subr.mxu0 0.0
    %v3309 = vand.u32 %v128, 4294901760
    %3310 = vmatpush1.msra.mxu0 %v3309
    %3311 = vmatprep.subr.mxu0 0.0
    %v3312 = vand.u32 %v129, 4294901760
    %3313 = vmatpush1.msra.mxu0 %v3312
    %3314 = vmatprep.subr.mxu0 0.0
    %v3315 = vand.u32 %v130, 4294901760
    %3316 = vmatpush1.msra.mxu0 %v3315
    %3317 = vmatprep.subr.mxu0 0.0
    %v3318 = vand.u32 %v131, 4294901760
    %3319 = vmatpush1.msra.mxu0 %v3318
    %3320 = vmatprep.subr.mxu0 0.0
    %v3321 = vand.u32 %v132, 4294901760
    %3322 = vmatpush1.msra.mxu0 %v3321
    %3323 = vmatprep.subr.mxu0 0.0
    %v3324 = vand.u32 %v133, 4294901760
    %3325 = vmatpush1.msra.mxu0 %v3324
    %3326 = vmatprep.subr.mxu0 0.0
    %v3327 = vand.u32 %v134, 4294901760
    %3328 = vmatpush1.msra.mxu0 %v3327
    %3329 = vmatprep.subr.mxu0 0.0
    %v3330 = vand.u32 %v135, 4294901760
    %3331 = vmatpush1.msra.mxu0 %v3330
    %3332 = vmatprep.subr.mxu0 0.0
    %v3333 = vand.u32 %v136, 4294901760
    %3334 = vmatpush1.msra.mxu0 %v3333
    %3335 = vmatprep.subr.mxu0 0.0
    %v3336 = vand.u32 %v137, 4294901760
    %3337 = vmatpush1.msra.mxu0 %v3336
    %3338 = vmatprep.subr.mxu0 0.0
    %v3339 = vand.u32 %v138, 4294901760
    %3340 = vmatpush1.msra.mxu0 %v3339
    %3341 = vmatprep.subr.mxu0 0.0
    %v3342 = vand.u32 %v139, 4294901760
    %3343 = vmatpush1.msra.mxu0 %v3342
    %3344 = vmatprep.subr.mxu0 0.0
    %v3345 = vand.u32 %v140, 4294901760
    %3346 = vmatpush1.msra.mxu0 %v3345
    %3347 = vmatprep.subr.mxu0 0.0
    %v3348 = vand.u32 %v141, 4294901760
    %3349 = vmatpush1.msra.mxu0 %v3348
    %v3350 = vand.u32 %v177, 4294901760
    %v3351 = vsub.f32 %v177, %v3350
    %v3352 = vand.u32 %v3351, 4294901760
    %3353 = vmatprep.mubr.f32.mxu0 %v3352
    %v3354 = vand.u32 %v175, 4294901760
    %v3355 = vsub.f32 %v175, %v3354
    %v3356 = vand.u32 %v3355, 4294901760
    %3357 = vmatmul.mubr.f32.gmra.mrb[0].mxu0 %v3356
    %v3358 = vpop.f32.mrb[0].mxu0
    %v3359 = vadd.f32 %v3251, %v3358
    %v3360 = vpop.f32.mrb[0].mxu0
    %3361 = vdwg.mxu0
    %3362 = vmatprep.subr.mxu0 0.0
    %v3363 = vand.u32 %v110, 4294901760
    %v3364 = vsub.f32 %v110, %v3363
    %v3365 = vand.u32 %v3364, 4294901760
    %3366 = vmatpush1.msra.mxu0 %v3365
    %3367 = vmatprep.subr.mxu0 0.0
    %v3368 = vand.u32 %v111, 4294901760
    %v3369 = vsub.f32 %v111, %v3368
    %v3370 = vand.u32 %v3369, 4294901760
    %3371 = vmatpush1.msra.mxu0 %v3370
    %3372 = vmatprep.subr.mxu0 0.0
    %v3373 = vand.u32 %v112, 4294901760
    %v3374 = vsub.f32 %v112, %v3373
    %v3375 = vand.u32 %v3374, 4294901760
    %3376 = vmatpush1.msra.mxu0 %v3375
    %3377 = vmatprep.subr.mxu0 0.0
    %v3378 = vand.u32 %v113, 4294901760
    %v3379 = vsub.f32 %v113, %v3378
    %v3380 = vand.u32 %v3379, 4294901760
    %3381 = vmatpush1.msra.mxu0 %v3380
    %3382 = vmatprep.subr.mxu0 0.0
    %v3383 = vand.u32 %v114, 4294901760
    %v3384 = vsub.f32 %v114, %v3383
    %v3385 = vand.u32 %v3384, 4294901760
    %3386 = vmatpush1.msra.mxu0 %v3385
    %3387 = vmatprep.subr.mxu0 0.0
    %v3388 = vand.u32 %v115, 4294901760
    %v3389 = vsub.f32 %v115, %v3388
    %v3390 = vand.u32 %v3389, 4294901760
    %3391 = vmatpush1.msra.mxu0 %v3390
    %3392 = vmatprep.subr.mxu0 0.0
    %v3393 = vand.u32 %v116, 4294901760
    %v3394 = vsub.f32 %v116, %v3393
    %v3395 = vand.u32 %v3394, 4294901760
    %3396 = vmatpush1.msra.mxu0 %v3395
    %3397 = vmatprep.subr.mxu0 0.0
    %v3398 = vand.u32 %v117, 4294901760
    %v3399 = vsub.f32 %v117, %v3398
    %v3400 = vand.u32 %v3399, 4294901760
    %3401 = vmatpush1.msra.mxu0 %v3400
    %3402 = vmatprep.subr.mxu0 0.0
    %v3403 = vand.u32 %v118, 4294901760
    %v3404 = vsub.f32 %v118, %v3403
    %v3405 = vand.u32 %v3404, 4294901760
    %3406 = vmatpush1.msra.mxu0 %v3405
    %3407 = vmatprep.subr.mxu0 0.0
    %v3408 = vand.u32 %v119, 4294901760
    %v3409 = vsub.f32 %v119, %v3408
    %v3410 = vand.u32 %v3409, 4294901760
    %3411 = vmatpush1.msra.mxu0 %v3410
    %3412 = vmatprep.subr.mxu0 0.0
    %v3413 = vand.u32 %v120, 4294901760
    %v3414 = vsub.f32 %v120, %v3413
    %v3415 = vand.u32 %v3414, 4294901760
    %3416 = vmatpush1.msra.mxu0 %v3415
    %3417 = vmatprep.subr.mxu0 0.0
    %v3418 = vand.u32 %v121, 4294901760
    %v3419 = vsub.f32 %v121, %v3418
    %v3420 = vand.u32 %v3419, 4294901760
    %3421 = vmatpush1.msra.mxu0 %v3420
    %3422 = vmatprep.subr.mxu0 0.0
    %v3423 = vand.u32 %v122, 4294901760
    %v3424 = vsub.f32 %v122, %v3423
    %v3425 = vand.u32 %v3424, 4294901760
    %3426 = vmatpush1.msra.mxu0 %v3425
    %3427 = vmatprep.subr.mxu0 0.0
    %v3428 = vand.u32 %v123, 4294901760
    %v3429 = vsub.f32 %v123, %v3428
    %v3430 = vand.u32 %v3429, 4294901760
    %3431 = vmatpush1.msra.mxu0 %v3430
    %3432 = vmatprep.subr.mxu0 0.0
    %v3433 = vand.u32 %v124, 4294901760
    %v3434 = vsub.f32 %v124, %v3433
    %v3435 = vand.u32 %v3434, 4294901760
    %3436 = vmatpush1.msra.mxu0 %v3435
    %3437 = vmatprep.subr.mxu0 0.0
    %v3438 = vand.u32 %v125, 4294901760
    %v3439 = vsub.f32 %v125, %v3438
    %v3440 = vand.u32 %v3439, 4294901760
    %3441 = vmatpush1.msra.mxu0 %v3440
    %3442 = vmatprep.subr.mxu0 0.0
    %v3443 = vand.u32 %v126, 4294901760
    %v3444 = vsub.f32 %v126, %v3443
    %v3445 = vand.u32 %v3444, 4294901760
    %3446 = vmatpush1.msra.mxu0 %v3445
    %3447 = vmatprep.subr.mxu0 0.0
    %v3448 = vand.u32 %v127, 4294901760
    %v3449 = vsub.f32 %v127, %v3448
    %v3450 = vand.u32 %v3449, 4294901760
    %3451 = vmatpush1.msra.mxu0 %v3450
    %3452 = vmatprep.subr.mxu0 0.0
    %v3453 = vand.u32 %v128, 4294901760
    %v3454 = vsub.f32 %v128, %v3453
    %v3455 = vand.u32 %v3454, 4294901760
    %3456 = vmatpush1.msra.mxu0 %v3455
    %3457 = vmatprep.subr.mxu0 0.0
    %v3458 = vand.u32 %v129, 4294901760
    %v3459 = vsub.f32 %v129, %v3458
    %v3460 = vand.u32 %v3459, 4294901760
    %3461 = vmatpush1.msra.mxu0 %v3460
    %3462 = vmatprep.subr.mxu0 0.0
    %v3463 = vand.u32 %v130, 4294901760
    %v3464 = vsub.f32 %v130, %v3463
    %v3465 = vand.u32 %v3464, 4294901760
    %3466 = vmatpush1.msra.mxu0 %v3465
    %3467 = vmatprep.subr.mxu0 0.0
    %v3468 = vand.u32 %v131, 4294901760
    %v3469 = vsub.f32 %v131, %v3468
    %v3470 = vand.u32 %v3469, 4294901760
    %3471 = vmatpush1.msra.mxu0 %v3470
    %3472 = vmatprep.subr.mxu0 0.0
    %v3473 = vand.u32 %v132, 4294901760
    %v3474 = vsub.f32 %v132, %v3473
    %v3475 = vand.u32 %v3474, 4294901760
    %3476 = vmatpush1.msra.mxu0 %v3475
    %3477 = vmatprep.subr.mxu0 0.0
    %v3478 = vand.u32 %v133, 4294901760
    %v3479 = vsub.f32 %v133, %v3478
    %v3480 = vand.u32 %v3479, 4294901760
    %3481 = vmatpush1.msra.mxu0 %v3480
    %3482 = vmatprep.subr.mxu0 0.0
    %v3483 = vand.u32 %v134, 4294901760
    %v3484 = vsub.f32 %v134, %v3483
    %v3485 = vand.u32 %v3484, 4294901760
    %3486 = vmatpush1.msra.mxu0 %v3485
    %3487 = vmatprep.subr.mxu0 0.0
    %v3488 = vand.u32 %v135, 4294901760
    %v3489 = vsub.f32 %v135, %v3488
    %v3490 = vand.u32 %v3489, 4294901760
    %3491 = vmatpush1.msra.mxu0 %v3490
    %3492 = vmatprep.subr.mxu0 0.0
    %v3493 = vand.u32 %v136, 4294901760
    %v3494 = vsub.f32 %v136, %v3493
    %v3495 = vand.u32 %v3494, 4294901760
    %3496 = vmatpush1.msra.mxu0 %v3495
    %3497 = vmatprep.subr.mxu0 0.0
    %v3498 = vand.u32 %v137, 4294901760
    %v3499 = vsub.f32 %v137, %v3498
    %v3500 = vand.u32 %v3499, 4294901760
    %3501 = vmatpush1.msra.mxu0 %v3500
    %3502 = vmatprep.subr.mxu0 0.0
    %v3503 = vand.u32 %v138, 4294901760
    %v3504 = vsub.f32 %v138, %v3503
    %v3505 = vand.u32 %v3504, 4294901760
    %3506 = vmatpush1.msra.mxu0 %v3505
    %3507 = vmatprep.subr.mxu0 0.0
    %v3508 = vand.u32 %v139, 4294901760
    %v3509 = vsub.f32 %v139, %v3508
    %v3510 = vand.u32 %v3509, 4294901760
    %3511 = vmatpush1.msra.mxu0 %v3510
    %3512 = vmatprep.subr.mxu0 0.0
    %v3513 = vand.u32 %v140, 4294901760
    %v3514 = vsub.f32 %v140, %v3513
    %v3515 = vand.u32 %v3514, 4294901760
    %3516 = vmatpush1.msra.mxu0 %v3515
    %3517 = vmatprep.subr.mxu0 0.0
    %v3518 = vand.u32 %v141, 4294901760
    %v3519 = vsub.f32 %v141, %v3518
    %v3520 = vand.u32 %v3519, 4294901760
    %3521 = vmatpush1.msra.mxu0 %v3520
    %v3522 = vand.u32 %v177, 4294901760
    %3523 = vmatprep.mubr.f32.mxu0 %v3522
    %v3524 = vand.u32 %v175, 4294901760
    %3525 = vmatmul.mubr.f32.gmra.mrb[0].mxu0 %v3524
    %v3526 = vpop.f32.mrb[0].mxu0
    %v3527 = vadd.f32 %v3359, %v3526
    %v3528 = vpop.f32.mrb[0].mxu0
    %3529 = vdwg.mxu0
    %3530 = vmatprep.subr.mxu0 0.0
    %v3531 = vand.u32 %v110, 4294901760
    %3532 = vmatpush1.msra.mxu0 %v3531
    %3533 = vmatprep.subr.mxu0 0.0
    %v3534 = vand.u32 %v111, 4294901760
    %3535 = vmatpush1.msra.mxu0 %v3534
    %3536 = vmatprep.subr.mxu0 0.0
    %v3537 = vand.u32 %v112, 4294901760
    %3538 = vmatpush1.msra.mxu0 %v3537
    %3539 = vmatprep.subr.mxu0 0.0
    %v3540 = vand.u32 %v113, 4294901760
    %3541 = vmatpush1.msra.mxu0 %v3540
    %3542 = vmatprep.subr.mxu0 0.0
    %v3543 = vand.u32 %v114, 4294901760
    %3544 = vmatpush1.msra.mxu0 %v3543
    %3545 = vmatprep.subr.mxu0 0.0
    %v3546 = vand.u32 %v115, 4294901760
    %3547 = vmatpush1.msra.mxu0 %v3546
    %3548 = vmatprep.subr.mxu0 0.0
    %v3549 = vand.u32 %v116, 4294901760
    %3550 = vmatpush1.msra.mxu0 %v3549
    %3551 = vmatprep.subr.mxu0 0.0
    %v3552 = vand.u32 %v117, 4294901760
    %3553 = vmatpush1.msra.mxu0 %v3552
    %3554 = vmatprep.subr.mxu0 0.0
    %v3555 = vand.u32 %v118, 4294901760
    %3556 = vmatpush1.msra.mxu0 %v3555
    %3557 = vmatprep.subr.mxu0 0.0
    %v3558 = vand.u32 %v119, 4294901760
    %3559 = vmatpush1.msra.mxu0 %v3558
    %3560 = vmatprep.subr.mxu0 0.0
    %v3561 = vand.u32 %v120, 4294901760
    %3562 = vmatpush1.msra.mxu0 %v3561
    %3563 = vmatprep.subr.mxu0 0.0
    %v3564 = vand.u32 %v121, 4294901760
    %3565 = vmatpush1.msra.mxu0 %v3564
    %3566 = vmatprep.subr.mxu0 0.0
    %v3567 = vand.u32 %v122, 4294901760
    %3568 = vmatpush1.msra.mxu0 %v3567
    %3569 = vmatprep.subr.mxu0 0.0
    %v3570 = vand.u32 %v123, 4294901760
    %3571 = vmatpush1.msra.mxu0 %v3570
    %3572 = vmatprep.subr.mxu0 0.0
    %v3573 = vand.u32 %v124, 4294901760
    %3574 = vmatpush1.msra.mxu0 %v3573
    %3575 = vmatprep.subr.mxu0 0.0
    %v3576 = vand.u32 %v125, 4294901760
    %3577 = vmatpush1.msra.mxu0 %v3576
    %3578 = vmatprep.subr.mxu0 0.0
    %v3579 = vand.u32 %v126, 4294901760
    %3580 = vmatpush1.msra.mxu0 %v3579
    %3581 = vmatprep.subr.mxu0 0.0
    %v3582 = vand.u32 %v127, 4294901760
    %3583 = vmatpush1.msra.mxu0 %v3582
    %3584 = vmatprep.subr.mxu0 0.0
    %v3585 = vand.u32 %v128, 4294901760
    %3586 = vmatpush1.msra.mxu0 %v3585
    %3587 = vmatprep.subr.mxu0 0.0
    %v3588 = vand.u32 %v129, 4294901760
    %3589 = vmatpush1.msra.mxu0 %v3588
    %3590 = vmatprep.subr.mxu0 0.0
    %v3591 = vand.u32 %v130, 4294901760
    %3592 = vmatpush1.msra.mxu0 %v3591
    %3593 = vmatprep.subr.mxu0 0.0
    %v3594 = vand.u32 %v131, 4294901760
    %3595 = vmatpush1.msra.mxu0 %v3594
    %3596 = vmatprep.subr.mxu0 0.0
    %v3597 = vand.u32 %v132, 4294901760
    %3598 = vmatpush1.msra.mxu0 %v3597
    %3599 = vmatprep.subr.mxu0 0.0
    %v3600 = vand.u32 %v133, 4294901760
    %3601 = vmatpush1.msra.mxu0 %v3600
    %3602 = vmatprep.subr.mxu0 0.0
    %v3603 = vand.u32 %v134, 4294901760
    %3604 = vmatpush1.msra.mxu0 %v3603
    %3605 = vmatprep.subr.mxu0 0.0
    %v3606 = vand.u32 %v135, 4294901760
    %3607 = vmatpush1.msra.mxu0 %v3606
    %3608 = vmatprep.subr.mxu0 0.0
    %v3609 = vand.u32 %v136, 4294901760
    %3610 = vmatpush1.msra.mxu0 %v3609
    %3611 = vmatprep.subr.mxu0 0.0
    %v3612 = vand.u32 %v137, 4294901760
    %3613 = vmatpush1.msra.mxu0 %v3612
    %3614 = vmatprep.subr.mxu0 0.0
    %v3615 = vand.u32 %v138, 4294901760
    %3616 = vmatpush1.msra.mxu0 %v3615
    %3617 = vmatprep.subr.mxu0 0.0
    %v3618 = vand.u32 %v139, 4294901760
    %3619 = vmatpush1.msra.mxu0 %v3618
    %3620 = vmatprep.subr.mxu0 0.0
    %v3621 = vand.u32 %v140, 4294901760
    %3622 = vmatpush1.msra.mxu0 %v3621
    %3623 = vmatprep.subr.mxu0 0.0
    %v3624 = vand.u32 %v141, 4294901760
    %3625 = vmatpush1.msra.mxu0 %v3624
    %v3626 = vand.u32 %v177, 4294901760
    %3627 = vmatprep.mubr.f32.mxu0 %v3626
    %v3628 = vand.u32 %v175, 4294901760
    %3629 = vmatmul.mubr.f32.gmra.mrb[0].mxu0 %v3628
    %v3630 = vpop.f32.mrb[0].mxu0
    %v3631 = vadd.f32 %v3527, %v3630
    %v3632 = vpop.f32.mrb[0].mxu0
    %3633 = vdwg.mxu0
    %vm3634 = vcmask 25600
    %3635 = vst.msk [vmem:[#allocation2] sm:$0x3] %vm3634, %v3631
    // Predicated region
    $region10: #{tpu_custom_call.1} parent=1 // pred_check
      _
    $region11: #{tpu_custom_call.1} parent=1 // pred_check_branch
      %3637 = sbr.rel (0) target = $region13
    $region12: #{tpu_custom_call.1} parent=1 // pred_region
      %s3639 = ssub.s32 32, 32
      %3640 = vsyncadd [#allocation3], %s3639
      %s3642 = sshll.u32 [#allocation2], 4
      %s3643 = int_to_ptr.vmem [resolvable:$true] %s3642
      %3645 = dma.vmem_to_hbm [thread:$0]  %s3643, 32, %s2, [#allocation3]
    $region13: #{tpu_custom_call.1} parent=1 // pred_fallthru
      _
    // Predicated region
    $region14: #{tpu_custom_call.1} parent=1 // pred_check
      _
    $region15: #{tpu_custom_call.1} parent=1 // pred_check_branch
      %3647 = sbr.rel (0) target = $region17
    $region16: #{tpu_custom_call.1} parent=1 // pred_region
      %3648 = dma.done [#allocation3], 32
    $region17: #{tpu_custom_call.1} parent=1 // pred_fallthru
      _
    %3649 = vsyncpa [#allocation3], 1

</llo_original>
